<compile_context>
chip_gen: v7x
topology: tpu7x:2x2x1
jax: 0.10.0
libtpu: 0.0.40
codegen_flags: <defaults>
</compile_context>

<pallas_src>
import functools

import jax
import jax.numpy as jnp
from jax.experimental import pallas as pl
from jax.experimental.pallas import tpu as pltpu

EMB1_VOCAB, EMB1_DIM = 316, 16
EMB2_VOCAB, EMB2_DIM = 289, 8
HIDDEN = 100                  # LSTM hidden size (PyTorch)
HID_PAD = 128                 # lane-aligned hidden
GATES = 4 * HIDDEN            # i, f, g, o (PyTorch gate order)
GATES_PAD = 4 * HID_PAD       # 512 per direction
CONV_K = 3 * 16 + 4 * 16 + 5 * 16 + 4 * 8   # 224 im2col features (all branches)
CONV_K_PAD = 256              # padded to the MXU depth


# ----------------------------------------------------------------------------
# Kernel 1: fused conv branches (one block-diagonal matmul) + ReLU +
# bidirectional LSTM input-gate projection.  Output is bf16, bias deferred.
# ----------------------------------------------------------------------------
def _features_kernel(x_ref, cw_ref, cb_ref, wih_ref, o_ref):
    f = jnp.dot(x_ref[...], cw_ref[...],
                preferred_element_type=jnp.float32)          # (TM, 512) f32
    feats = jnp.maximum(f + cb_ref[...], 0.0).astype(jnp.bfloat16)
    o_ref[...] = jnp.dot(feats, wih_ref[...],
                         preferred_element_type=jnp.float32
                         ).astype(jnp.bfloat16)              # (TM, 1024) bf16


def features_projection(x_cat, p, tm):
    M = x_cat.shape[0]
    row = lambda i: (i, 0)
    rep = lambda i: (0, 0)
    return pl.pallas_call(
        _features_kernel,
        out_shape=jax.ShapeDtypeStruct((M, 2 * GATES_PAD), jnp.bfloat16),
        grid=(M // tm,),
        in_specs=[
            pl.BlockSpec((tm, CONV_K_PAD), row),
            pl.BlockSpec(p["conv_w_bd"].shape, rep),
            pl.BlockSpec(p["conv_b"].shape, rep),
            pl.BlockSpec(p["w_ih_all"].shape, rep),
        ],
        out_specs=pl.BlockSpec((tm, 2 * GATES_PAD), row),
        compiler_params=pltpu.CompilerParams(dimension_semantics=("parallel",)),
    )(x_cat, p["conv_w_bd"], p["conv_b"], p["w_ih_all"])


# ----------------------------------------------------------------------------
# Kernel 2: combined bidirectional LSTM recurrence + fused MLP head.
# Both directions share ONE fori_loop over T (halves sequential steps on
# single-TC v5e/v6e); one (B, 256) x (256, 1024) bf16 block-diagonal matmul
# per step handles fw and bw recurrences together.  The whole xg block stays
# resident in VMEM (bf16), the MLP head runs as an epilogue, and only the
# (B, 1) result is written back.
# ----------------------------------------------------------------------------
def _lstm_head_kernel(xg_ref, b_ref, whh_ref,
                      l1w_ref, l1b_ref, l2w_ref, l2b_ref, l3w_ref, l3b_ref,
                      o_ref):
    T, B, G2 = xg_ref.shape          # G2 = 2 * GATES_PAD
    GP = G2 // 2                     # 512 gates per direction
    HP = GP // 4                     # 128 padded hidden
    bias = b_ref[...]                # (1, 2*GP) f32, hoisted out of the loop

    def step(t, carry):
        h, c = carry                                         # (B, 2*HP) f32 each
        x_fw = xg_ref[t].astype(jnp.float32)                 # forward reads t
        x_bw = xg_ref[T - 1 - t].astype(jnp.float32)         # backward reads T-1-t
        # TODO(synk): could hold W_hh stationary in the MXU weight registers
        # via pltpu.matmul_push_rhs/acc_lhs/pop instead of re-issuing jnp.dot.
        rec = jnp.dot(h.astype(jnp.bfloat16), whh_ref[...],
                      preferred_element_type=jnp.float32)    # (B, 2*GP) f32
        gates = (jnp.concatenate([x_fw[:, :GP], x_bw[:, GP:]], axis=-1)
                 + bias + rec)

        def g(a):  # lane-aligned 128-wide fw/bw chunks of gate a (i,f,g,o)
            return jnp.concatenate(
                [gates[:, a * HP:(a + 1) * HP],
                 gates[:, GP + a * HP:GP + (a + 1) * HP]], axis=-1)

        i_g = jax.nn.sigmoid(g(0))
        f_g = jax.nn.sigmoid(g(1))
        g_g = jnp.tanh(g(2))
        o_g = jax.nn.sigmoid(g(3))
        c_new = f_g * c + i_g * g_g
        h_new = o_g * jnp.tanh(c_new)
        return h_new, c_new

    z = jnp.zeros((B, 2 * HP), jnp.float32)
    h_fin, _ = jax.lax.fori_loop(0, T, step, (z, z))         # (B, 2*HP)

    # Fused MLP head (F.dropout is identity at inference).  lin1 weight is
    # pre-padded to (256, 64) with zero rows at the padded hidden lanes.
    y = jnp.dot(h_fin, l1w_ref[...],
                preferred_element_type=jnp.float32) + l1b_ref[...]
    y = jnp.maximum(y, 0.0)
    y = jnp.dot(y, l2w_ref[...],
                preferred_element_type=jnp.float32) + l2b_ref[...]
    y = jnp.maximum(y, 0.0)
    logit = jnp.sum(y * l3w_ref[...], axis=-1, keepdims=True) + l3b_ref[...]
    o_ref[...] = jax.nn.sigmoid(logit).astype(o_ref.dtype)


def lstm_head(xg, p):
    T, B, _ = xg.shape
    rep = lambda i: (0, 0)
    # TODO(synk): at the real T=1000 on v7x (64 MiB VMEM) the xg block should
    # be streamed in time-chunks (BlockSpec over t) instead of fully resident.
    return pl.pallas_call(
        _lstm_head_kernel,
        out_shape=jax.ShapeDtypeStruct((B, 1), jnp.float32),
        grid=(1,),
        in_specs=[
            pl.BlockSpec((T, B, 2 * GATES_PAD), lambda i: (0, 0, 0)),
            pl.BlockSpec(p["b_all"].shape, rep),
            pl.BlockSpec(p["w_hh_bd"].shape, rep),
            pl.BlockSpec(p["lin1_w"].shape, rep),
            pl.BlockSpec(p["lin1_b"].shape, rep),
            pl.BlockSpec(p["lin2_w"].shape, rep),
            pl.BlockSpec(p["lin2_b"].shape, rep),
            pl.BlockSpec(p["lin3_w"].shape, rep),
            pl.BlockSpec(p["lin3_b"].shape, rep),
        ],
        out_specs=pl.BlockSpec((B, 1), rep),
    )(xg, p["b_all"], p["w_hh_bd"], p["lin1_w"], p["lin1_b"],
      p["lin2_w"], p["lin2_b"], p["lin3_w"], p["lin3_b"])


# ----------------------------------------------------------------------------
# Parameters (deterministic synthetic init; shapes follow the PyTorch module,
# with lane-aligned padding of the LSTM gates / hidden and block-diagonal
# packing of the conv and recurrent weights).
# ----------------------------------------------------------------------------
def _pad_gate_cols(w):
    """(K, 4*HIDDEN) -> (K, 4*HID_PAD): gate chunk g placed at g*HID_PAD."""
    K = w.shape[0]
    out = jnp.zeros((K, 4 * HID_PAD), w.dtype)
    for g in range(4):
        out = out.at[:, g * HID_PAD:g * HID_PAD + HIDDEN].set(
            w[:, g * HIDDEN:(g + 1) * HIDDEN])
    return out


def _pad_hh(w):
    """(HIDDEN, 4*HIDDEN) -> (HID_PAD, 4*HID_PAD), zero padded rows/cols."""
    return jnp.pad(_pad_gate_cols(w), ((0, HID_PAD - HIDDEN), (0, 0)))


def init_params(key):
    ks = jax.random.split(key, 24)

    def u(k, shape, scale=0.1):
        return jax.random.uniform(k, shape, jnp.float32, -scale, scale)

    p = {}
    p["emb1"] = u(ks[0], (EMB1_VOCAB, EMB1_DIM), 1.0)
    p["emb2"] = u(ks[1], (EMB2_VOCAB, EMB2_DIM), 1.0)

    # Conv weights pre-flattened (kh*emb_dim, 128), packed block-diagonally
    # into one (256, 512) bf16 matrix (rows 224:256 are zero padding).
    c11 = u(ks[2], (3 * 16, 128))
    c12 = u(ks[3], (4 * 16, 128))
    c13 = u(ks[4], (5 * 16, 128))
    c2 = u(ks[5], (4 * 8, 128))
    cw = jnp.zeros((CONV_K_PAD, 4 * 128), jnp.float32)
    cw = cw.at[0:48, 0:128].set(c11)
    cw = cw.at[48:112, 128:256].set(c12)
    cw = cw.at[112:192, 256:384].set(c13)
    cw = cw.at[192:224, 384:512].set(c2)
    p["conv_w_bd"] = cw.astype(jnp.bfloat16)
    p["conv_b"] = jnp.concatenate(
        [u(ks[6], (128,)), u(ks[7], (128,)), u(ks[8], (128,)), u(ks[9], (128,))]
    ).reshape(1, 4 * 128)

    # LSTM (PyTorch gate order i,f,g,o); b = b_ih + b_hh pre-summed.
    w_ih_fw, w_hh_fw, b_fw = (u(ks[10], (512, GATES)),
                              u(ks[11], (HIDDEN, GATES)), u(ks[12], (GATES,)))
    w_ih_bw, w_hh_bw, b_bw = (u(ks[13], (512, GATES)),
                              u(ks[14], (HIDDEN, GATES)), u(ks[15], (GATES,)))
    p["w_ih_all"] = jnp.concatenate(
        [_pad_gate_cols(w_ih_fw), _pad_gate_cols(w_ih_bw)], axis=1
    ).astype(jnp.bfloat16)                                     # (512, 1024)
    p["b_all"] = jnp.concatenate(
        [_pad_gate_cols(b_fw.reshape(1, GATES)),
         _pad_gate_cols(b_bw.reshape(1, GATES))], axis=1)      # (1, 1024) f32
    # Block-diagonal recurrent weight: [h_fw | h_bw] (B,256) -> gates (B,1024).
    whh_bd = jnp.zeros((2 * HID_PAD, 2 * GATES_PAD), jnp.float32)
    whh_bd = whh_bd.at[:HID_PAD, :GATES_PAD].set(_pad_hh(w_hh_fw))
    whh_bd = whh_bd.at[HID_PAD:, GATES_PAD:].set(_pad_hh(w_hh_bw))
    p["w_hh_bd"] = whh_bd.astype(jnp.bfloat16)                 # (256, 1024)

    # MLP head: lin1 input padded 200 -> 256 (fw rows 0:100, bw rows 128:228).
    lin1 = u(ks[16], (2 * HIDDEN, 64))
    l1p = jnp.zeros((2 * HID_PAD, 64), jnp.float32)
    l1p = l1p.at[:HIDDEN].set(lin1[:HIDDEN])
    l1p = l1p.at[HID_PAD:HID_PAD + HIDDEN].set(lin1[HIDDEN:])
    p["lin1_w"], p["lin1_b"] = l1p, u(ks[17], (1, 64))
    p["lin2_w"], p["lin2_b"] = u(ks[18], (64, 32)), u(ks[19], (1, 32))
    p["lin3_w"], p["lin3_b"] = u(ks[20], (1, 32)), u(ks[21], (1, 1))
    return p


# ----------------------------------------------------------------------------
# Forward pass
# ----------------------------------------------------------------------------
def _windows(x, k, pad_top, pad_bot):
    """im2col over the sequence axis: (B, L, E) -> (B, L_out, k*E)."""
    xpad = jnp.pad(x, ((0, 0), (pad_top, pad_bot), (0, 0)))
    L = xpad.shape[1]
    return jnp.concatenate([xpad[:, i:L - k + 1 + i, :] for i in range(k)], axis=-1)


@functools.partial(jax.jit, static_argnames=("name_len", "behav_len"))
def forward(params, data, name_len, behav_len):
    B = data.shape[0]
    T = name_len                                   # behav_len // 4 == name_len
    name_ids = data[:, :name_len]
    behav_ids = data[:, name_len:name_len + behav_len]

    # Embedding lookup (gather) kept as plain-JAX glue.
    xn = jnp.take(params["emb1"], name_ids, axis=0)      # (B, T, 16)
    xb = jnp.take(params["emb2"], behav_ids, axis=0)     # (B, 4T, 8)

    def time_major(w):
        # (B, T, K) -> (T*B, K) with row order t*B + b, bf16 for the MXU.
        Tt, K = w.shape[1], w.shape[2]
        return w.transpose(1, 0, 2).reshape(Tt * B, K).astype(jnp.bfloat16)

    # Conv2d layers collapse to 1-D convs (kernel width == emb dim, W-out=1).
    # TODO(synk): im2col is materialized in the JAX wrapper; negligible at T=64.
    w1 = time_major(_windows(xn, 3, 1, 1))               # cnn1_1: pad (1,0)
    w2 = time_major(_windows(xn, 4, 2, 1))               # cnn1_2 on ZeroPad2d(0,0,2,1)
    w3 = time_major(_windows(xn, 5, 2, 2))               # cnn1_3: pad (2,0)
    wb = time_major(xb.reshape(B, T, 4 * 8))             # cnn2: kernel 4, stride 4
    x_cat = jnp.concatenate([w1, w2, w3, wb], axis=-1)   # (M, 224) bf16

    M = T * B
    m_pad = -(-M // 128) * 128                           # round up to 128
    tm = 256 if (m_pad % 256 == 0) else 128
    x_cat = jnp.pad(x_cat, ((0, m_pad - M), (0, CONV_K_PAD - CONV_K)))

    # Kernel 1: block-diag conv matmul + relu + input-gate projection (bf16).
    xg = features_projection(x_cat, params, tm)          # (m_pad, 1024) bf16
    xg = xg[:M].reshape(T, B, 2 * GATES_PAD)             # time-major, free

    # Kernel 2: combined bidirectional LSTM recurrence + fused MLP head.
    return lstm_head(xg, params)                         # (B, 1)


if __name__ == "__main__":
    # Scaled-down sequence lengths (original forward splits [1000, 4000]).
    NAME_LEN, BEHAV_LEN = 64, 256
    B = 2

    key = jax.random.PRNGKey(0)
    pkey, dk1, dk2 = jax.random.split(key, 3)
    params = init_params(pkey)

    name_ids = jax.random.randint(dk1, (B, NAME_LEN), 0, EMB1_VOCAB)
    behav_ids = jax.random.randint(dk2, (B, BEHAV_LEN), 0, EMB2_VOCAB)
    data = jnp.concatenate([name_ids, behav_ids], axis=1).astype(jnp.int32)

    out = forward(params, data, name_len=NAME_LEN, behav_len=BEHAV_LEN)
    out = jax.block_until_ready(out)
    assert out.shape == (B, 1) and out.dtype == jnp.float32
    assert bool(jnp.all((out >= 0.0) & (out <= 1.0)))
    assert bool(jnp.all(jnp.isfinite(out)))
    print("KERNEL_OK")
</pallas_src>

<mosaic_0001>
module attributes {stable_mosaic.version = 11 : i64} {
  func.func @_features_kernel(%arg0: i32, %arg1: memref<128x256xbf16, #tpu.memory_space<vmem>>, %arg2: memref<256x512xbf16, #tpu.memory_space<vmem>>, %arg3: memref<1x512xf32, #tpu.memory_space<vmem>>, %arg4: memref<512x1024xbf16, #tpu.memory_space<vmem>>, %arg5: memref<128x1024xbf16, #tpu.memory_space<vmem>>) attributes {dimension_semantics = [#tpu.dimension_semantics<parallel>], iteration_bounds = array<i64: 1>, scalar_prefetch = 0 : i64, scratch_operands = 0 : i64, tpu.core_type = #tpu.core_type<tc>, window_params = [{transform_indices = @transform_0, window_bounds = array<i64: 128, 256>}, {pipeline_mode = #tpu.pipeline_mode<synchronous>, transform_indices = @transform_1, window_bounds = array<i64: 256, 512>}, {pipeline_mode = #tpu.pipeline_mode<synchronous>, transform_indices = @transform_2, window_bounds = array<i64: 1, 512>}, {pipeline_mode = #tpu.pipeline_mode<synchronous>, transform_indices = @transform_3, window_bounds = array<i64: 512, 1024>}, {transform_indices = @transform_4, window_bounds = array<i64: 128, 1024>}]} {
    %c0 = arith.constant 0 : index
    %c0_0 = arith.constant 0 : index
    %0 = vector.load %arg1[%c0, %c0_0] : memref<128x256xbf16, #tpu.memory_space<vmem>>, vector<128x256xbf16>
    %c0_1 = arith.constant 0 : index
    %c0_2 = arith.constant 0 : index
    %1 = vector.load %arg2[%c0_1, %c0_2] : memref<256x512xbf16, #tpu.memory_space<vmem>>, vector<256x512xbf16>
    %cst = arith.constant dense<0.000000e+00> : vector<128x512xf32>
    %2 = tpu.matmul %0, %1, %cst {dimension_numbers = #tpu.dot_dimension_numbers<[1], [0], [0], [1], [0, 0, 1, 1], [], []>} : vector<128x256xbf16>, vector<256x512xbf16>, vector<128x512xf32> -> vector<128x512xf32>
    %c0_3 = arith.constant 0 : index
    %c0_4 = arith.constant 0 : index
    %3 = vector.load %arg3[%c0_3, %c0_4] : memref<1x512xf32, #tpu.memory_space<vmem>>, vector<1x512xf32>
    %4 = vector.broadcast %3 : vector<1x512xf32> to vector<128x512xf32>
    %5 = arith.addf %2, %4 : vector<128x512xf32>
    %cst_5 = arith.constant 0.000000e+00 : f32
    %6 = vector.broadcast %cst_5 : f32 to vector<128x512xf32>
    %7 = arith.maximumf %5, %6 : vector<128x512xf32>
    %8 = arith.truncf %7 : vector<128x512xf32> to vector<128x512xbf16>
    %c0_6 = arith.constant 0 : index
    %c0_7 = arith.constant 0 : index
    %9 = vector.load %arg4[%c0_6, %c0_7] : memref<512x1024xbf16, #tpu.memory_space<vmem>>, vector<512x1024xbf16>
    %cst_8 = arith.constant dense<0.000000e+00> : vector<128x1024xf32>
    %10 = tpu.matmul %8, %9, %cst_8 {dimension_numbers = #tpu.dot_dimension_numbers<[1], [0], [0], [1], [0, 0, 1, 1], [], []>} : vector<128x512xbf16>, vector<512x1024xbf16>, vector<128x1024xf32> -> vector<128x1024xf32>
    %11 = arith.truncf %10 : vector<128x1024xf32> to vector<128x1024xbf16>
    %c0_9 = arith.constant 0 : index
    %c0_10 = arith.constant 0 : index
    %12 = vector.load %arg5[%c0_9, %c0_10] : memref<128x1024xbf16, #tpu.memory_space<vmem>>, vector<128x1024xbf16>
    tpu.vector_store %arg5[%c0_9, %c0_10], %11 {strides = array<i32>} : memref<128x1024xbf16, #tpu.memory_space<vmem>>, vector<128x1024xbf16>,
    return
  }
  func.func @transform_0(%arg0: i32) -> (i32, i32) {
    %c0_i32 = arith.constant 0 : i32
    %c0_i32_0 = arith.constant 0 : i32
    return %arg0, %c0_i32 : i32, i32
  }
  func.func @transform_1(%arg0: i32) -> (i32, i32) {
    %c0_i32 = arith.constant 0 : i32
    %c0_i32_0 = arith.constant 0 : i32
    %c0_i32_1 = arith.constant 0 : i32
    return %c0_i32, %c0_i32_0 : i32, i32
  }
  func.func @transform_2(%arg0: i32) -> (i32, i32) {
    %c0_i32 = arith.constant 0 : i32
    %c0_i32_0 = arith.constant 0 : i32
    %c0_i32_1 = arith.constant 0 : i32
    return %c0_i32, %c0_i32_0 : i32, i32
  }
  func.func @transform_3(%arg0: i32) -> (i32, i32) {
    %c0_i32 = arith.constant 0 : i32
    %c0_i32_0 = arith.constant 0 : i32
    %c0_i32_1 = arith.constant 0 : i32
    return %c0_i32, %c0_i32_0 : i32, i32
  }
  func.func @transform_4(%arg0: i32) -> (i32, i32) {
    %c0_i32 = arith.constant 0 : i32
    %c0_i32_0 = arith.constant 0 : i32
    return %arg0, %c0_i32 : i32, i32
  }
}

module attributes {stable_mosaic.version = 11 : i64} {
  func.func @_lstm_head_kernel(%arg0: i32, %arg1: memref<64x2x1024xbf16, #tpu.memory_space<vmem>>, %arg2: memref<1x1024xf32, #tpu.memory_space<vmem>>, %arg3: memref<256x1024xbf16, #tpu.memory_space<vmem>>, %arg4: memref<256x64xf32, #tpu.memory_space<vmem>>, %arg5: memref<1x64xf32, #tpu.memory_space<vmem>>, %arg6: memref<64x32xf32, #tpu.memory_space<vmem>>, %arg7: memref<1x32xf32, #tpu.memory_space<vmem>>, %arg8: memref<1x32xf32, #tpu.memory_space<vmem>>, %arg9: memref<1x1xf32, #tpu.memory_space<vmem>>, %arg10: memref<2x1xf32, #tpu.memory_space<vmem>>) attributes {dimension_semantics = [#tpu.dimension_semantics<arbitrary>], iteration_bounds = array<i64: 1>, scalar_prefetch = 0 : i64, scratch_operands = 0 : i64, tpu.core_type = #tpu.core_type<tc>, window_params = [{pipeline_mode = #tpu.pipeline_mode<synchronous>, transform_indices = @transform_0, window_bounds = array<i64: 64, 2, 1024>}, {pipeline_mode = #tpu.pipeline_mode<synchronous>, transform_indices = @transform_1, window_bounds = array<i64: 1, 1024>}, {pipeline_mode = #tpu.pipeline_mode<synchronous>, transform_indices = @transform_2, window_bounds = array<i64: 256, 1024>}, {pipeline_mode = #tpu.pipeline_mode<synchronous>, transform_indices = @transform_3, window_bounds = array<i64: 256, 64>}, {pipeline_mode = #tpu.pipeline_mode<synchronous>, transform_indices = @transform_4, window_bounds = array<i64: 1, 64>}, {pipeline_mode = #tpu.pipeline_mode<synchronous>, transform_indices = @transform_5, window_bounds = array<i64: 64, 32>}, {pipeline_mode = #tpu.pipeline_mode<synchronous>, transform_indices = @transform_6, window_bounds = array<i64: 1, 32>}, {pipeline_mode = #tpu.pipeline_mode<synchronous>, transform_indices = @transform_7, window_bounds = array<i64: 1, 32>}, {pipeline_mode = #tpu.pipeline_mode<synchronous>, transform_indices = @transform_8, window_bounds = array<i64: 1, 1>}, {pipeline_mode = #tpu.pipeline_mode<synchronous>, transform_indices = @transform_9, window_bounds = array<i64: 2, 1>}]} {
    %c0 = arith.constant 0 : index
    %c0_0 = arith.constant 0 : index
    %0 = vector.load %arg2[%c0, %c0_0] : memref<1x1024xf32, #tpu.memory_space<vmem>>, vector<1x1024xf32>
    %cst = arith.constant 0.000000e+00 : f32
    %1 = vector.broadcast %cst : f32 to vector<2x256xf32>
    %c0_i32 = arith.constant 0 : i32
    %c64_i32 = arith.constant 64 : i32
    %2 = arith.addi %c0_i32, %c64_i32 : i32
    %c1_i32 = arith.constant 1 : i32
    %3:2 = scf.for %arg11 = %c0_i32 to %2 step %c1_i32 iter_args(%arg12 = %1, %arg13 = %1) -> (vector<2x256xf32>, vector<2x256xf32>)  : i32 {
      %32 = arith.index_cast %arg11 : i32 to index
      %c0_22 = arith.constant 0 : index
      %c0_23 = arith.constant 0 : index
      %33 = vector.load %arg1[%32, %c0_22, %c0_23] : memref<64x2x1024xbf16, #tpu.memory_space<vmem>>, vector<1x2x1024xbf16>
      %34 = vector.shape_cast %33 : vector<1x2x1024xbf16> to vector<2x1024xbf16>
      %35 = arith.extf %34 : vector<2x1024xbf16> to vector<2x1024xf32>
      %c63_i32 = arith.constant 63 : i32
      %36 = arith.subi %c63_i32, %arg11 : i32
      %37 = arith.index_cast %36 : i32 to index
      %c0_24 = arith.constant 0 : index
      %c0_25 = arith.constant 0 : index
      %38 = vector.load %arg1[%37, %c0_24, %c0_25] : memref<64x2x1024xbf16, #tpu.memory_space<vmem>>, vector<1x2x1024xbf16>
      %39 = vector.shape_cast %38 : vector<1x2x1024xbf16> to vector<2x1024xbf16>
      %40 = arith.extf %39 : vector<2x1024xbf16> to vector<2x1024xf32>
      %41 = arith.truncf %arg12 : vector<2x256xf32> to vector<2x256xbf16>
      %c0_26 = arith.constant 0 : index
      %c0_27 = arith.constant 0 : index
      %42 = vector.load %arg3[%c0_26, %c0_27] : memref<256x1024xbf16, #tpu.memory_space<vmem>>, vector<256x1024xbf16>
      %cst_28 = arith.constant dense<0.000000e+00> : vector<2x1024xf32>
      %43 = tpu.matmul %41, %42, %cst_28 {dimension_numbers = #tpu.dot_dimension_numbers<[1], [0], [0], [1], [0, 0, 1, 1], [], []>} : vector<2x256xbf16>, vector<256x1024xbf16>, vector<2x1024xf32> -> vector<2x1024xf32>
      %44 = vector.extract_strided_slice %35 {offsets = [0, 0], sizes = [2, 512], strides = [1, 1]} : vector<2x1024xf32> to vector<2x512xf32>
      %45 = vector.extract_strided_slice %40 {offsets = [0, 512], sizes = [2, 512], strides = [1, 1]} : vector<2x1024xf32> to vector<2x512xf32>
      %46 = tpu.concatenate %44, %45 in 1 : vector<2x512xf32>, vector<2x512xf32> -> vector<2x1024xf32>
      %47 = vector.broadcast %0 : vector<1x1024xf32> to vector<2x1024xf32>
      %48 = arith.addf %46, %47 : vector<2x1024xf32>
      %49 = arith.addf %48, %43 : vector<2x1024xf32>
      %50 = vector.extract_strided_slice %49 {offsets = [0, 0], sizes = [2, 128], strides = [1, 1]} : vector<2x1024xf32> to vector<2x128xf32>
      %51 = vector.extract_strided_slice %49 {offsets = [0, 512], sizes = [2, 128], strides = [1, 1]} : vector<2x1024xf32> to vector<2x128xf32>
      %52 = tpu.concatenate %50, %51 in 1 : vector<2x128xf32>, vector<2x128xf32> -> vector<2x256xf32>
      %53 = arith.negf %52 : vector<2x256xf32>
      %54 = math.exp %53 : vector<2x256xf32>
      %cst_29 = arith.constant 1.000000e+00 : f32
      %55 = vector.broadcast %cst_29 : f32 to vector<2x256xf32>
      %56 = arith.addf %55, %54 : vector<2x256xf32>
      %57 = arith.divf %55, %56 : vector<2x256xf32>
      %58 = vector.extract_strided_slice %49 {offsets = [0, 128], sizes = [2, 128], strides = [1, 1]} : vector<2x1024xf32> to vector<2x128xf32>
      %59 = vector.extract_strided_slice %49 {offsets = [0, 640], sizes = [2, 128], strides = [1, 1]} : vector<2x1024xf32> to vector<2x128xf32>
      %60 = tpu.concatenate %58, %59 in 1 : vector<2x128xf32>, vector<2x128xf32> -> vector<2x256xf32>
      %61 = arith.negf %60 : vector<2x256xf32>
      %62 = math.exp %61 : vector<2x256xf32>
      %cst_30 = arith.constant 1.000000e+00 : f32
      %63 = vector.broadcast %cst_30 : f32 to vector<2x256xf32>
      %64 = arith.addf %63, %62 : vector<2x256xf32>
      %65 = arith.divf %63, %64 : vector<2x256xf32>
      %66 = vector.extract_strided_slice %49 {offsets = [0, 256], sizes = [2, 128], strides = [1, 1]} : vector<2x1024xf32> to vector<2x128xf32>
      %67 = vector.extract_strided_slice %49 {offsets = [0, 768], sizes = [2, 128], strides = [1, 1]} : vector<2x1024xf32> to vector<2x128xf32>
      %68 = tpu.concatenate %66, %67 in 1 : vector<2x128xf32>, vector<2x128xf32> -> vector<2x256xf32>
      %69 = math.tanh %68 : vector<2x256xf32>
      %70 = vector.extract_strided_slice %49 {offsets = [0, 384], sizes = [2, 128], strides = [1, 1]} : vector<2x1024xf32> to vector<2x128xf32>
      %71 = vector.extract_strided_slice %49 {offsets = [0, 896], sizes = [2, 128], strides = [1, 1]} : vector<2x1024xf32> to vector<2x128xf32>
      %72 = tpu.concatenate %70, %71 in 1 : vector<2x128xf32>, vector<2x128xf32> -> vector<2x256xf32>
      %73 = arith.negf %72 : vector<2x256xf32>
      %74 = math.exp %73 : vector<2x256xf32>
      %cst_31 = arith.constant 1.000000e+00 : f32
      %75 = vector.broadcast %cst_31 : f32 to vector<2x256xf32>
      %76 = arith.addf %75, %74 : vector<2x256xf32>
      %77 = arith.divf %75, %76 : vector<2x256xf32>
      %78 = arith.mulf %65, %arg13 : vector<2x256xf32>
      %79 = arith.mulf %57, %69 : vector<2x256xf32>
      %80 = arith.addf %78, %79 : vector<2x256xf32>
      %81 = math.tanh %80 : vector<2x256xf32>
      %82 = arith.mulf %77, %81 : vector<2x256xf32>
      scf.yield %82, %80 : vector<2x256xf32>, vector<2x256xf32>
    }
    %c64_i32_1 = arith.constant 64 : i32
    %c0_2 = arith.constant 0 : index
    %c0_3 = arith.constant 0 : index
    %4 = vector.load %arg4[%c0_2, %c0_3] : memref<256x64xf32, #tpu.memory_space<vmem>>, vector<256x64xf32>
    %cst_4 = arith.constant dense<0.000000e+00> : vector<2x64xf32>
    %5 = tpu.matmul %3#0, %4, %cst_4 {dimension_numbers = #tpu.dot_dimension_numbers<[1], [0], [0], [1], [0, 0, 1, 1], [], []>} : vector<2x256xf32>, vector<256x64xf32>, vector<2x64xf32> -> vector<2x64xf32>
    %c0_5 = arith.constant 0 : index
    %c0_6 = arith.constant 0 : index
    %6 = vector.load %arg5[%c0_5, %c0_6] : memref<1x64xf32, #tpu.memory_space<vmem>>, vector<1x64xf32>
    %7 = vector.broadcast %6 : vector<1x64xf32> to vector<2x64xf32>
    %8 = arith.addf %5, %7 : vector<2x64xf32>
    %cst_7 = arith.constant 0.000000e+00 : f32
    %9 = vector.broadcast %cst_7 : f32 to vector<2x64xf32>
    %10 = arith.maximumf %8, %9 : vector<2x64xf32>
    %c0_8 = arith.constant 0 : index
    %c0_9 = arith.constant 0 : index
    %11 = vector.load %arg6[%c0_8, %c0_9] : memref<64x32xf32, #tpu.memory_space<vmem>>, vector<64x32xf32>
    %cst_10 = arith.constant dense<0.000000e+00> : vector<2x32xf32>
    %12 = tpu.matmul %10, %11, %cst_10 {dimension_numbers = #tpu.dot_dimension_numbers<[1], [0], [0], [1], [0, 0, 1, 1], [], []>} : vector<2x64xf32>, vector<64x32xf32>, vector<2x32xf32> -> vector<2x32xf32>
    %c0_11 = arith.constant 0 : index
    %c0_12 = arith.constant 0 : index
    %13 = vector.load %arg7[%c0_11, %c0_12] : memref<1x32xf32, #tpu.memory_space<vmem>>, vector<1x32xf32>
    %14 = vector.broadcast %13 : vector<1x32xf32> to vector<2x32xf32>
    %15 = arith.addf %12, %14 : vector<2x32xf32>
    %cst_13 = arith.constant 0.000000e+00 : f32
    %16 = vector.broadcast %cst_13 : f32 to vector<2x32xf32>
    %17 = arith.maximumf %15, %16 : vector<2x32xf32>
    %c0_14 = arith.constant 0 : index
    %c0_15 = arith.constant 0 : index
    %18 = vector.load %arg8[%c0_14, %c0_15] : memref<1x32xf32, #tpu.memory_space<vmem>>, vector<1x32xf32>
    %19 = vector.broadcast %18 : vector<1x32xf32> to vector<2x32xf32>
    %20 = arith.mulf %17, %19 : vector<2x32xf32>
    %cst_16 = arith.constant dense<0.000000e+00> : vector<2xf32>
    %21 = vector.multi_reduction <add>, %20, %cst_16 [1] : vector<2x32xf32> to vector<2xf32>
    %22 = vector.shape_cast %21 : vector<2xf32> to vector<2x1xf32>
    %c0_17 = arith.constant 0 : index
    %c0_18 = arith.constant 0 : index
    %23 = vector.load %arg9[%c0_17, %c0_18] : memref<1x1xf32, #tpu.memory_space<vmem>>, vector<1x1xf32>
    %24 = vector.broadcast %23 : vector<1x1xf32> to vector<2x1xf32>
    %25 = arith.addf %22, %24 : vector<2x1xf32>
    %26 = arith.negf %25 : vector<2x1xf32>
    %27 = math.exp %26 : vector<2x1xf32>
    %cst_19 = arith.constant 1.000000e+00 : f32
    %28 = vector.broadcast %cst_19 : f32 to vector<2x1xf32>
    %29 = arith.addf %28, %27 : vector<2x1xf32>
    %30 = arith.divf %28, %29 : vector<2x1xf32>
    %c0_20 = arith.constant 0 : index
    %c0_21 = arith.constant 0 : index
    %31 = vector.load %arg10[%c0_20, %c0_21] : memref<2x1xf32, #tpu.memory_space<vmem>>, vector<2x1xf32>
    tpu.vector_store %arg10[%c0_20, %c0_21], %30 {strides = array<i32>} : memref<2x1xf32, #tpu.memory_space<vmem>>, vector<2x1xf32>,
    return
  }
  func.func @transform_0(%arg0: i32) -> (i32, i32, i32) {
    %c0_i32 = arith.constant 0 : i32
    %c0_i32_0 = arith.constant 0 : i32
    %c0_i32_1 = arith.constant 0 : i32
    %c0_i32_2 = arith.constant 0 : i32
    return %c0_i32, %c0_i32_0, %c0_i32_1 : i32, i32, i32
  }
  func.func @transform_1(%arg0: i32) -> (i32, i32) {
    %c0_i32 = arith.constant 0 : i32
    %c0_i32_0 = arith.constant 0 : i32
    %c0_i32_1 = arith.constant 0 : i32
    return %c0_i32, %c0_i32_0 : i32, i32
  }
  func.func @transform_2(%arg0: i32) -> (i32, i32) {
    %c0_i32 = arith.constant 0 : i32
    %c0_i32_0 = arith.constant 0 : i32
    %c0_i32_1 = arith.constant 0 : i32
    return %c0_i32, %c0_i32_0 : i32, i32
  }
  func.func @transform_3(%arg0: i32) -> (i32, i32) {
    %c0_i32 = arith.constant 0 : i32
    %c0_i32_0 = arith.constant 0 : i32
    %c0_i32_1 = arith.constant 0 : i32
    return %c0_i32, %c0_i32_0 : i32, i32
  }
  func.func @transform_4(%arg0: i32) -> (i32, i32) {
    %c0_i32 = arith.constant 0 : i32
    %c0_i32_0 = arith.constant 0 : i32
    %c0_i32_1 = arith.constant 0 : i32
    return %c0_i32, %c0_i32_0 : i32, i32
  }
  func.func @transform_5(%arg0: i32) -> (i32, i32) {
    %c0_i32 = arith.constant 0 : i32
    %c0_i32_0 = arith.constant 0 : i32
    %c0_i32_1 = arith.constant 0 : i32
    return %c0_i32, %c0_i32_0 : i32, i32
  }
  func.func @transform_6(%arg0: i32) -> (i32, i32) {
    %c0_i32 = arith.constant 0 : i32
    %c0_i32_0 = arith.constant 0 : i32
    %c0_i32_1 = arith.constant 0 : i32
    return %c0_i32, %c0_i32_0 : i32, i32
  }
  func.func @transform_7(%arg0: i32) -> (i32, i32) {
    %c0_i32 = arith.constant 0 : i32
    %c0_i32_0 = arith.constant 0 : i32
    %c0_i32_1 = arith.constant 0 : i32
    return %c0_i32, %c0_i32_0 : i32, i32
  }
  func.func @transform_8(%arg0: i32) -> (i32, i32) {
    %c0_i32 = arith.constant 0 : i32
    %c0_i32_0 = arith.constant 0 : i32
    %c0_i32_1 = arith.constant 0 : i32
    return %c0_i32, %c0_i32_0 : i32, i32
  }
  func.func @transform_9(%arg0: i32) -> (i32, i32) {
    %c0_i32 = arith.constant 0 : i32
    %c0_i32_0 = arith.constant 0 : i32
    %c0_i32_1 = arith.constant 0 : i32
    return %c0_i32, %c0_i32_0 : i32, i32
  }
}

</mosaic_0001>

<llo_original>
// kernel: forward.3
$region0: #{forward.3}
  #allocation0 [shape = 'u32[]', space=smem, size = 0x4, offset = 0x4, fixed_abs, tag = 'smem constant byte address 0x4 - core index']
  #allocation1 [shape = 'u32[144,128]{1,0:T(1,128)}', space=vmem, size = 0x12000, scoped, tag = 'internal scratch']
  #allocation2 [shape = 'f32[1,1]{1,0:T(1,128)S(1)}', space=vmem, size = 0x200, scoped, tag = 'scoped memory for forward.3']
  %s0 = inlined_call_operand.vmem [shape: bf16[64,2,1024], index: 0, kind: input, shape index: {}]
  %s1 = inlined_call_operand.vmem [shape: f32[1,1024], index: 1, kind: input, shape index: {}]
  %s2 = inlined_call_operand.vmem [shape: bf16[256,1024], index: 2, kind: input, shape index: {}]
  %s3 = inlined_call_operand.vmem [shape: f32[256,64], index: 3, kind: input, shape index: {}]
  %s4 = inlined_call_operand.vmem [shape: f32[1,64], index: 4, kind: input, shape index: {}]
  %s5 = inlined_call_operand.vmem [shape: f32[64,32], index: 5, kind: input, shape index: {}]
  %s6 = inlined_call_operand.vmem [shape: f32[1,32], index: 6, kind: input, shape index: {}]
  %s7 = inlined_call_operand.vmem [shape: f32[1,32], index: 7, kind: input, shape index: {}]
  %s8 = inlined_call_operand.<no memory space> [shape: f32[1,1], index: 8, kind: input, shape index: {}]
  %s9 = inlined_call_operand.vmem [shape: f32[2,1], index: 9, kind: output, shape index: {}]
  %s10 = sld [smem:[#allocation0]]
  $region53: #{forward.3} parent=0
    _
  %s12 = ssub.s32 1, %s10
  %s13 = scalar_select 0, %s12, %s10
  %v14 = vstv %s8
  %15 = vst [vmem:[#allocation2] sm:$0x1] %v14
  // Predicated region
  $region2: #{forward.3} parent=0 // pred_check
    _
  $region3: #{forward.3} parent=0 // pred_check_branch
    %17 = sbr.rel (0) target = $region5
  $region4: #{forward.3} parent=0 // pred_region
    _
  $region5: #{forward.3} parent=0 // pred_fallthru
    _
  // Predicated region
  $region6: #{forward.3} parent=0 // pred_check
    _
  $region7: #{forward.3} parent=0 // pred_check_branch
    %19 = sbr.rel (0) target = $region9
  $region8: #{forward.3} parent=0 // pred_region
    _
  $region9: #{forward.3} parent=0 // pred_fallthru
    _
  // Predicated region
  $region10: #{forward.3} parent=0 // pred_check
    _
  $region11: #{forward.3} parent=0 // pred_check_branch
    %21 = sbr.rel (0) target = $region13
  $region12: #{forward.3} parent=0 // pred_region
    _
  $region13: #{forward.3} parent=0 // pred_fallthru
    _
  // Predicated region
  $region14: #{forward.3} parent=0 // pred_check
    _
  $region15: #{forward.3} parent=0 // pred_check_branch
    %23 = sbr.rel (0) target = $region17
  $region16: #{forward.3} parent=0 // pred_region
    _
  $region17: #{forward.3} parent=0 // pred_fallthru
    _
  // Predicated region
  $region18: #{forward.3} parent=0 // pred_check
    _
  $region19: #{forward.3} parent=0 // pred_check_branch
    %25 = sbr.rel (0) target = $region21
  $region20: #{forward.3} parent=0 // pred_region
    _
  $region21: #{forward.3} parent=0 // pred_fallthru
    _
  // Predicated region
  $region22: #{forward.3} parent=0 // pred_check
    _
  $region23: #{forward.3} parent=0 // pred_check_branch
    %27 = sbr.rel (0) target = $region25
  $region24: #{forward.3} parent=0 // pred_region
    _
  $region25: #{forward.3} parent=0 // pred_fallthru
    _
  // Predicated region
  $region26: #{forward.3} parent=0 // pred_check
    _
  $region27: #{forward.3} parent=0 // pred_check_branch
    %29 = sbr.rel (0) target = $region29
  $region28: #{forward.3} parent=0 // pred_region
    _
  $region29: #{forward.3} parent=0 // pred_fallthru
    _
  // Predicated region
  $region30: #{forward.3} parent=0 // pred_check
    _
  $region31: #{forward.3} parent=0 // pred_check_branch
    %31 = sbr.rel (0) target = $region33
  $region32: #{forward.3} parent=0 // pred_region
    _
  $region33: #{forward.3} parent=0 // pred_fallthru
    _
  // Predicated region
  $region34: #{forward.3} parent=0 // pred_check
    _
  $region35: #{forward.3} parent=0 // pred_check_branch
    %33 = sbr.rel (0) target = $region37
  $region36: #{forward.3} parent=0 // pred_region
    _
  $region37: #{forward.3} parent=0 // pred_fallthru
    _
  %v34 = vld [vmem:[%s1] sm:$0xff]
  loop: start=0, step=1, limit=64
  $region38: #{forward.3} parent=0 // loop_pre_header
    _
  $region39: #{forward.3} parent=0 // loop_header
    %s36 = sphi 0, %s40
    %p37 = scmp.ge.s32.totalorder %s36, 64
    %v41 = vphi 0.0, %v1135
    %v42 = vphi 0.0, %v1136
    %v43 = vphi 0.0, %v1131
    %v44 = vphi 0.0, %v1132
  $region40: #{forward.3} parent=0 // loop_header_branch
    %39 = sbr.rel (%p37) target = $region44
  $region41: #{forward.3} parent=0 // loop_body
    %s45 = smul.u32 %s36, 8
    %s46 = scalar_lea.vmem %s0, %s45
    %v47 = vld [vmem:[%s46] sm:$0xff]
    %v48 = vunpack.c.l.bf16 %v47
    %s49 = ssub.s32 63, %s36
    %s50 = smul.u32 %s49, 8
    %s51 = scalar_lea.vmem %s0, %s50
    %v52 = vld [vmem:[%s51] sm:$0xff]
    %v53 = vunpack.c.h.bf16 %v52
    %v54 = vpack.c.bf16 %v41, %v41
    %v55 = vpack.c.bf16 %v42, %v42
    %v56 = vld [vmem:[%s2] sm:$0xff]
    %v57 = vld [vmem:[%s2 + $0x8] sm:$0xff]
    %v58 = vld [vmem:[%s2 + $0x10] sm:$0xff]
    %v59 = vld [vmem:[%s2 + $0x18] sm:$0xff]
    %v60 = vld [vmem:[%s2 + $0x20] sm:$0xff]
    %v61 = vld [vmem:[%s2 + $0x28] sm:$0xff]
    %v62 = vld [vmem:[%s2 + $0x30] sm:$0xff]
    %v63 = vld [vmem:[%s2 + $0x38] sm:$0xff]
    %v64 = vld [vmem:[%s2 + $0x40] sm:$0xff]
    %v65 = vld [vmem:[%s2 + $0x48] sm:$0xff]
    %v66 = vld [vmem:[%s2 + $0x50] sm:$0xff]
    %v67 = vld [vmem:[%s2 + $0x58] sm:$0xff]
    %v68 = vld [vmem:[%s2 + $0x60] sm:$0xff]
    %v69 = vld [vmem:[%s2 + $0x68] sm:$0xff]
    %v70 = vld [vmem:[%s2 + $0x70] sm:$0xff]
    %v71 = vld [vmem:[%s2 + $0x78] sm:$0xff]
    %v72 = vld [vmem:[%s2 + $0x80] sm:$0xff]
    %v73 = vld [vmem:[%s2 + $0x88] sm:$0xff]
    %v74 = vld [vmem:[%s2 + $0x90] sm:$0xff]
    %v75 = vld [vmem:[%s2 + $0x98] sm:$0xff]
    %v76 = vld [vmem:[%s2 + $0xa0] sm:$0xff]
    %v77 = vld [vmem:[%s2 + $0xa8] sm:$0xff]
    %v78 = vld [vmem:[%s2 + $0xb0] sm:$0xff]
    %v79 = vld [vmem:[%s2 + $0xb8] sm:$0xff]
    %v80 = vld [vmem:[%s2 + $0xc0] sm:$0xff]
    %v81 = vld [vmem:[%s2 + $0xc8] sm:$0xff]
    %v82 = vld [vmem:[%s2 + $0xd0] sm:$0xff]
    %v83 = vld [vmem:[%s2 + $0xd8] sm:$0xff]
    %v84 = vld [vmem:[%s2 + $0xe0] sm:$0xff]
    %v85 = vld [vmem:[%s2 + $0xe8] sm:$0xff]
    %v86 = vld [vmem:[%s2 + $0xf0] sm:$0xff]
    %v87 = vld [vmem:[%s2 + $0xf8] sm:$0xff]
    %v88 = vld [vmem:[%s2 + $0x100] sm:$0xff]
    %v89 = vld [vmem:[%s2 + $0x108] sm:$0xff]
    %v90 = vld [vmem:[%s2 + $0x110] sm:$0xff]
    %v91 = vld [vmem:[%s2 + $0x118] sm:$0xff]
    %v92 = vld [vmem:[%s2 + $0x120] sm:$0xff]
    %v93 = vld [vmem:[%s2 + $0x128] sm:$0xff]
    %v94 = vld [vmem:[%s2 + $0x130] sm:$0xff]
    %v95 = vld [vmem:[%s2 + $0x138] sm:$0xff]
    %v96 = vld [vmem:[%s2 + $0x140] sm:$0xff]
    %v97 = vld [vmem:[%s2 + $0x148] sm:$0xff]
    %v98 = vld [vmem:[%s2 + $0x150] sm:$0xff]
    %v99 = vld [vmem:[%s2 + $0x158] sm:$0xff]
    %v100 = vld [vmem:[%s2 + $0x160] sm:$0xff]
    %v101 = vld [vmem:[%s2 + $0x168] sm:$0xff]
    %v102 = vld [vmem:[%s2 + $0x170] sm:$0xff]
    %v103 = vld [vmem:[%s2 + $0x178] sm:$0xff]
    %v104 = vld [vmem:[%s2 + $0x180] sm:$0xff]
    %v105 = vld [vmem:[%s2 + $0x188] sm:$0xff]
    %v106 = vld [vmem:[%s2 + $0x190] sm:$0xff]
    %v107 = vld [vmem:[%s2 + $0x198] sm:$0xff]
    %v108 = vld [vmem:[%s2 + $0x1a0] sm:$0xff]
    %v109 = vld [vmem:[%s2 + $0x1a8] sm:$0xff]
    %v110 = vld [vmem:[%s2 + $0x1b0] sm:$0xff]
    %v111 = vld [vmem:[%s2 + $0x1b8] sm:$0xff]
    %v112 = vld [vmem:[%s2 + $0x1c0] sm:$0xff]
    %v113 = vld [vmem:[%s2 + $0x1c8] sm:$0xff]
    %v114 = vld [vmem:[%s2 + $0x1d0] sm:$0xff]
    %v115 = vld [vmem:[%s2 + $0x1d8] sm:$0xff]
    %v116 = vld [vmem:[%s2 + $0x1e0] sm:$0xff]
    %v117 = vld [vmem:[%s2 + $0x1e8] sm:$0xff]
    %v118 = vld [vmem:[%s2 + $0x1f0] sm:$0xff]
    %v119 = vld [vmem:[%s2 + $0x1f8] sm:$0xff]
    %v120 = vld [vmem:[%s2 + $0x200] sm:$0xff]
    %v121 = vld [vmem:[%s2 + $0x208] sm:$0xff]
    %v122 = vld [vmem:[%s2 + $0x210] sm:$0xff]
    %v123 = vld [vmem:[%s2 + $0x218] sm:$0xff]
    %v124 = vld [vmem:[%s2 + $0x220] sm:$0xff]
    %v125 = vld [vmem:[%s2 + $0x228] sm:$0xff]
    %v126 = vld [vmem:[%s2 + $0x230] sm:$0xff]
    %v127 = vld [vmem:[%s2 + $0x238] sm:$0xff]
    %v128 = vld [vmem:[%s2 + $0x240] sm:$0xff]
    %v129 = vld [vmem:[%s2 + $0x248] sm:$0xff]
    %v130 = vld [vmem:[%s2 + $0x250] sm:$0xff]
    %v131 = vld [vmem:[%s2 + $0x258] sm:$0xff]
    %v132 = vld [vmem:[%s2 + $0x260] sm:$0xff]
    %v133 = vld [vmem:[%s2 + $0x268] sm:$0xff]
    %v134 = vld [vmem:[%s2 + $0x270] sm:$0xff]
    %v135 = vld [vmem:[%s2 + $0x278] sm:$0xff]
    %v136 = vld [vmem:[%s2 + $0x280] sm:$0xff]
    %v137 = vld [vmem:[%s2 + $0x288] sm:$0xff]
    %v138 = vld [vmem:[%s2 + $0x290] sm:$0xff]
    %v139 = vld [vmem:[%s2 + $0x298] sm:$0xff]
    %v140 = vld [vmem:[%s2 + $0x2a0] sm:$0xff]
    %v141 = vld [vmem:[%s2 + $0x2a8] sm:$0xff]
    %v142 = vld [vmem:[%s2 + $0x2b0] sm:$0xff]
    %v143 = vld [vmem:[%s2 + $0x2b8] sm:$0xff]
    %v144 = vld [vmem:[%s2 + $0x2c0] sm:$0xff]
    %v145 = vld [vmem:[%s2 + $0x2c8] sm:$0xff]
    %v146 = vld [vmem:[%s2 + $0x2d0] sm:$0xff]
    %v147 = vld [vmem:[%s2 + $0x2d8] sm:$0xff]
    %v148 = vld [vmem:[%s2 + $0x2e0] sm:$0xff]
    %v149 = vld [vmem:[%s2 + $0x2e8] sm:$0xff]
    %v150 = vld [vmem:[%s2 + $0x2f0] sm:$0xff]
    %v151 = vld [vmem:[%s2 + $0x2f8] sm:$0xff]
    %v152 = vld [vmem:[%s2 + $0x300] sm:$0xff]
    %v153 = vld [vmem:[%s2 + $0x308] sm:$0xff]
    %v154 = vld [vmem:[%s2 + $0x310] sm:$0xff]
    %v155 = vld [vmem:[%s2 + $0x318] sm:$0xff]
    %v156 = vld [vmem:[%s2 + $0x320] sm:$0xff]
    %v157 = vld [vmem:[%s2 + $0x328] sm:$0xff]
    %v158 = vld [vmem:[%s2 + $0x330] sm:$0xff]
    %v159 = vld [vmem:[%s2 + $0x338] sm:$0xff]
    %v160 = vld [vmem:[%s2 + $0x340] sm:$0xff]
    %v161 = vld [vmem:[%s2 + $0x348] sm:$0xff]
    %v162 = vld [vmem:[%s2 + $0x350] sm:$0xff]
    %v163 = vld [vmem:[%s2 + $0x358] sm:$0xff]
    %v164 = vld [vmem:[%s2 + $0x360] sm:$0xff]
    %v165 = vld [vmem:[%s2 + $0x368] sm:$0xff]
    %v166 = vld [vmem:[%s2 + $0x370] sm:$0xff]
    %v167 = vld [vmem:[%s2 + $0x378] sm:$0xff]
    %v168 = vld [vmem:[%s2 + $0x380] sm:$0xff]
    %v169 = vld [vmem:[%s2 + $0x388] sm:$0xff]
    %v170 = vld [vmem:[%s2 + $0x390] sm:$0xff]
    %v171 = vld [vmem:[%s2 + $0x398] sm:$0xff]
    %v172 = vld [vmem:[%s2 + $0x3a0] sm:$0xff]
    %v173 = vld [vmem:[%s2 + $0x3a8] sm:$0xff]
    %v174 = vld [vmem:[%s2 + $0x3b0] sm:$0xff]
    %v175 = vld [vmem:[%s2 + $0x3b8] sm:$0xff]
    %v176 = vld [vmem:[%s2 + $0x3c0] sm:$0xff]
    %v177 = vld [vmem:[%s2 + $0x3c8] sm:$0xff]
    %v178 = vld [vmem:[%s2 + $0x3d0] sm:$0xff]
    %v179 = vld [vmem:[%s2 + $0x3d8] sm:$0xff]
    %v180 = vld [vmem:[%s2 + $0x3e0] sm:$0xff]
    %v181 = vld [vmem:[%s2 + $0x3e8] sm:$0xff]
    %v182 = vld [vmem:[%s2 + $0x3f0] sm:$0xff]
    %v183 = vld [vmem:[%s2 + $0x3f8] sm:$0xff]
    %v312 = vunpack.c.l.b16 %v56
    %v313 = vunpack.c.h.b16 %v56
    %v314 = vunpack.c.l.b16 %v57
    %v315 = vunpack.c.h.b16 %v57
    %v316 = vunpack.c.l.b16 %v58
    %v317 = vunpack.c.h.b16 %v58
    %v318 = vunpack.c.l.b16 %v59
    %v319 = vunpack.c.h.b16 %v59
    %v320 = vunpack.c.l.b16 %v60
    %v321 = vunpack.c.h.b16 %v60
    %v322 = vunpack.c.l.b16 %v61
    %v323 = vunpack.c.h.b16 %v61
    %v324 = vunpack.c.l.b16 %v62
    %v325 = vunpack.c.h.b16 %v62
    %v326 = vunpack.c.l.b16 %v63
    %v327 = vunpack.c.h.b16 %v63
    %v328 = vunpack.c.l.b16 %v64
    %v329 = vunpack.c.h.b16 %v64
    %v330 = vunpack.c.l.b16 %v65
    %v331 = vunpack.c.h.b16 %v65
    %v332 = vunpack.c.l.b16 %v66
    %v333 = vunpack.c.h.b16 %v66
    %v334 = vunpack.c.l.b16 %v67
    %v335 = vunpack.c.h.b16 %v67
    %v336 = vunpack.c.l.b16 %v68
    %v337 = vunpack.c.h.b16 %v68
    %v338 = vunpack.c.l.b16 %v69
    %v339 = vunpack.c.h.b16 %v69
    %v340 = vunpack.c.l.b16 %v70
    %v341 = vunpack.c.h.b16 %v70
    %v342 = vunpack.c.l.b16 %v71
    %v343 = vunpack.c.h.b16 %v71
    %v344 = vunpack.c.l.b16 %v72
    %v345 = vunpack.c.h.b16 %v72
    %v346 = vunpack.c.l.b16 %v73
    %v347 = vunpack.c.h.b16 %v73
    %v348 = vunpack.c.l.b16 %v74
    %v349 = vunpack.c.h.b16 %v74
    %v350 = vunpack.c.l.b16 %v75
    %v351 = vunpack.c.h.b16 %v75
    %v352 = vunpack.c.l.b16 %v76
    %v353 = vunpack.c.h.b16 %v76
    %v354 = vunpack.c.l.b16 %v77
    %v355 = vunpack.c.h.b16 %v77
    %v356 = vunpack.c.l.b16 %v78
    %v357 = vunpack.c.h.b16 %v78
    %v358 = vunpack.c.l.b16 %v79
    %v359 = vunpack.c.h.b16 %v79
    %v360 = vunpack.c.l.b16 %v80
    %v361 = vunpack.c.h.b16 %v80
    %v362 = vunpack.c.l.b16 %v81
    %v363 = vunpack.c.h.b16 %v81
    %v364 = vunpack.c.l.b16 %v82
    %v365 = vunpack.c.h.b16 %v82
    %v366 = vunpack.c.l.b16 %v83
    %v367 = vunpack.c.h.b16 %v83
    %v368 = vunpack.c.l.b16 %v84
    %v369 = vunpack.c.h.b16 %v84
    %v370 = vunpack.c.l.b16 %v85
    %v371 = vunpack.c.h.b16 %v85
    %v372 = vunpack.c.l.b16 %v86
    %v373 = vunpack.c.h.b16 %v86
    %v374 = vunpack.c.l.b16 %v87
    %v375 = vunpack.c.h.b16 %v87
    %v376 = vunpack.c.l.b16 %v88
    %v377 = vunpack.c.h.b16 %v88
    %v378 = vunpack.c.l.b16 %v89
    %v379 = vunpack.c.h.b16 %v89
    %v380 = vunpack.c.l.b16 %v90
    %v381 = vunpack.c.h.b16 %v90
    %v382 = vunpack.c.l.b16 %v91
    %v383 = vunpack.c.h.b16 %v91
    %v384 = vunpack.c.l.b16 %v92
    %v385 = vunpack.c.h.b16 %v92
    %v386 = vunpack.c.l.b16 %v93
    %v387 = vunpack.c.h.b16 %v93
    %v388 = vunpack.c.l.b16 %v94
    %v389 = vunpack.c.h.b16 %v94
    %v390 = vunpack.c.l.b16 %v95
    %v391 = vunpack.c.h.b16 %v95
    %v392 = vunpack.c.l.b16 %v96
    %v393 = vunpack.c.h.b16 %v96
    %v394 = vunpack.c.l.b16 %v97
    %v395 = vunpack.c.h.b16 %v97
    %v396 = vunpack.c.l.b16 %v98
    %v397 = vunpack.c.h.b16 %v98
    %v398 = vunpack.c.l.b16 %v99
    %v399 = vunpack.c.h.b16 %v99
    %v400 = vunpack.c.l.b16 %v100
    %v401 = vunpack.c.h.b16 %v100
    %v402 = vunpack.c.l.b16 %v101
    %v403 = vunpack.c.h.b16 %v101
    %v404 = vunpack.c.l.b16 %v102
    %v405 = vunpack.c.h.b16 %v102
    %v406 = vunpack.c.l.b16 %v103
    %v407 = vunpack.c.h.b16 %v103
    %v408 = vunpack.c.l.b16 %v104
    %v409 = vunpack.c.h.b16 %v104
    %v410 = vunpack.c.l.b16 %v105
    %v411 = vunpack.c.h.b16 %v105
    %v412 = vunpack.c.l.b16 %v106
    %v413 = vunpack.c.h.b16 %v106
    %v414 = vunpack.c.l.b16 %v107
    %v415 = vunpack.c.h.b16 %v107
    %v416 = vunpack.c.l.b16 %v108
    %v417 = vunpack.c.h.b16 %v108
    %v418 = vunpack.c.l.b16 %v109
    %v419 = vunpack.c.h.b16 %v109
    %v420 = vunpack.c.l.b16 %v110
    %v421 = vunpack.c.h.b16 %v110
    %v422 = vunpack.c.l.b16 %v111
    %v423 = vunpack.c.h.b16 %v111
    %v424 = vunpack.c.l.b16 %v112
    %v425 = vunpack.c.h.b16 %v112
    %v426 = vunpack.c.l.b16 %v113
    %v427 = vunpack.c.h.b16 %v113
    %v428 = vunpack.c.l.b16 %v114
    %v429 = vunpack.c.h.b16 %v114
    %v430 = vunpack.c.l.b16 %v115
    %v431 = vunpack.c.h.b16 %v115
    %v432 = vunpack.c.l.b16 %v116
    %v433 = vunpack.c.h.b16 %v116
    %v434 = vunpack.c.l.b16 %v117
    %v435 = vunpack.c.h.b16 %v117
    %v436 = vunpack.c.l.b16 %v118
    %v437 = vunpack.c.h.b16 %v118
    %v438 = vunpack.c.l.b16 %v119
    %v439 = vunpack.c.h.b16 %v119
    %v440 = vunpack.c.l.b16 %v120
    %v441 = vunpack.c.h.b16 %v120
    %v442 = vunpack.c.l.b16 %v121
    %v443 = vunpack.c.h.b16 %v121
    %v444 = vunpack.c.l.b16 %v122
    %v445 = vunpack.c.h.b16 %v122
    %v446 = vunpack.c.l.b16 %v123
    %v447 = vunpack.c.h.b16 %v123
    %v448 = vunpack.c.l.b16 %v124
    %v449 = vunpack.c.h.b16 %v124
    %v450 = vunpack.c.l.b16 %v125
    %v451 = vunpack.c.h.b16 %v125
    %v452 = vunpack.c.l.b16 %v126
    %v453 = vunpack.c.h.b16 %v126
    %v454 = vunpack.c.l.b16 %v127
    %v455 = vunpack.c.h.b16 %v127
    %v456 = vunpack.c.l.b16 %v128
    %v457 = vunpack.c.h.b16 %v128
    %v458 = vunpack.c.l.b16 %v129
    %v459 = vunpack.c.h.b16 %v129
    %v460 = vunpack.c.l.b16 %v130
    %v461 = vunpack.c.h.b16 %v130
    %v462 = vunpack.c.l.b16 %v131
    %v463 = vunpack.c.h.b16 %v131
    %v464 = vunpack.c.l.b16 %v132
    %v465 = vunpack.c.h.b16 %v132
    %v466 = vunpack.c.l.b16 %v133
    %v467 = vunpack.c.h.b16 %v133
    %v468 = vunpack.c.l.b16 %v134
    %v469 = vunpack.c.h.b16 %v134
    %v470 = vunpack.c.l.b16 %v135
    %v471 = vunpack.c.h.b16 %v135
    %v472 = vunpack.c.l.b16 %v136
    %v473 = vunpack.c.h.b16 %v136
    %v474 = vunpack.c.l.b16 %v137
    %v475 = vunpack.c.h.b16 %v137
    %v476 = vunpack.c.l.b16 %v138
    %v477 = vunpack.c.h.b16 %v138
    %v478 = vunpack.c.l.b16 %v139
    %v479 = vunpack.c.h.b16 %v139
    %v480 = vunpack.c.l.b16 %v140
    %v481 = vunpack.c.h.b16 %v140
    %v482 = vunpack.c.l.b16 %v141
    %v483 = vunpack.c.h.b16 %v141
    %v484 = vunpack.c.l.b16 %v142
    %v485 = vunpack.c.h.b16 %v142
    %v486 = vunpack.c.l.b16 %v143
    %v487 = vunpack.c.h.b16 %v143
    %v488 = vunpack.c.l.b16 %v144
    %v489 = vunpack.c.h.b16 %v144
    %v490 = vunpack.c.l.b16 %v145
    %v491 = vunpack.c.h.b16 %v145
    %v492 = vunpack.c.l.b16 %v146
    %v493 = vunpack.c.h.b16 %v146
    %v494 = vunpack.c.l.b16 %v147
    %v495 = vunpack.c.h.b16 %v147
    %v496 = vunpack.c.l.b16 %v148
    %v497 = vunpack.c.h.b16 %v148
    %v498 = vunpack.c.l.b16 %v149
    %v499 = vunpack.c.h.b16 %v149
    %v500 = vunpack.c.l.b16 %v150
    %v501 = vunpack.c.h.b16 %v150
    %v502 = vunpack.c.l.b16 %v151
    %v503 = vunpack.c.h.b16 %v151
    %v504 = vunpack.c.l.b16 %v152
    %v505 = vunpack.c.h.b16 %v152
    %v506 = vunpack.c.l.b16 %v153
    %v507 = vunpack.c.h.b16 %v153
    %v508 = vunpack.c.l.b16 %v154
    %v509 = vunpack.c.h.b16 %v154
    %v510 = vunpack.c.l.b16 %v155
    %v511 = vunpack.c.h.b16 %v155
    %v512 = vunpack.c.l.b16 %v156
    %v513 = vunpack.c.h.b16 %v156
    %v514 = vunpack.c.l.b16 %v157
    %v515 = vunpack.c.h.b16 %v157
    %v516 = vunpack.c.l.b16 %v158
    %v517 = vunpack.c.h.b16 %v158
    %v518 = vunpack.c.l.b16 %v159
    %v519 = vunpack.c.h.b16 %v159
    %v520 = vunpack.c.l.b16 %v160
    %v521 = vunpack.c.h.b16 %v160
    %v522 = vunpack.c.l.b16 %v161
    %v523 = vunpack.c.h.b16 %v161
    %v524 = vunpack.c.l.b16 %v162
    %v525 = vunpack.c.h.b16 %v162
    %v526 = vunpack.c.l.b16 %v163
    %v527 = vunpack.c.h.b16 %v163
    %v528 = vunpack.c.l.b16 %v164
    %v529 = vunpack.c.h.b16 %v164
    %v530 = vunpack.c.l.b16 %v165
    %v531 = vunpack.c.h.b16 %v165
    %v532 = vunpack.c.l.b16 %v166
    %v533 = vunpack.c.h.b16 %v166
    %v534 = vunpack.c.l.b16 %v167
    %v535 = vunpack.c.h.b16 %v167
    %v536 = vunpack.c.l.b16 %v168
    %v537 = vunpack.c.h.b16 %v168
    %v538 = vunpack.c.l.b16 %v169
    %v539 = vunpack.c.h.b16 %v169
    %v540 = vunpack.c.l.b16 %v170
    %v541 = vunpack.c.h.b16 %v170
    %v542 = vunpack.c.l.b16 %v171
    %v543 = vunpack.c.h.b16 %v171
    %v544 = vunpack.c.l.b16 %v172
    %v545 = vunpack.c.h.b16 %v172
    %v546 = vunpack.c.l.b16 %v173
    %v547 = vunpack.c.h.b16 %v173
    %v548 = vunpack.c.l.b16 %v174
    %v549 = vunpack.c.h.b16 %v174
    %v550 = vunpack.c.l.b16 %v175
    %v551 = vunpack.c.h.b16 %v175
    %v552 = vunpack.c.l.b16 %v176
    %v553 = vunpack.c.h.b16 %v176
    %v554 = vunpack.c.l.b16 %v177
    %v555 = vunpack.c.h.b16 %v177
    %v556 = vunpack.c.l.b16 %v178
    %v557 = vunpack.c.h.b16 %v178
    %v558 = vunpack.c.l.b16 %v179
    %v559 = vunpack.c.h.b16 %v179
    %v560 = vunpack.c.l.b16 %v180
    %v561 = vunpack.c.h.b16 %v180
    %v562 = vunpack.c.l.b16 %v181
    %v563 = vunpack.c.h.b16 %v181
    %v564 = vunpack.c.l.b16 %v182
    %v565 = vunpack.c.h.b16 %v182
    %v566 = vunpack.c.l.b16 %v183
    %v567 = vunpack.c.h.b16 %v183
    %v568 = vpack.c.b16 %v320, %v312
    %v569 = vpack.c.b16 %v321, %v313
    %v570 = vpack.c.b16 %v322, %v314
    %v571 = vpack.c.b16 %v323, %v315
    %v572 = vpack.c.b16 %v324, %v316
    %v573 = vpack.c.b16 %v325, %v317
    %v574 = vpack.c.b16 %v326, %v318
    %v575 = vpack.c.b16 %v327, %v319
    %v576 = vpack.c.b16 %v336, %v328
    %v577 = vpack.c.b16 %v337, %v329
    %v578 = vpack.c.b16 %v338, %v330
    %v579 = vpack.c.b16 %v339, %v331
    %v580 = vpack.c.b16 %v340, %v332
    %v581 = vpack.c.b16 %v341, %v333
    %v582 = vpack.c.b16 %v342, %v334
    %v583 = vpack.c.b16 %v343, %v335
    %v584 = vpack.c.b16 %v352, %v344
    %v585 = vpack.c.b16 %v353, %v345
    %v586 = vpack.c.b16 %v354, %v346
    %v587 = vpack.c.b16 %v355, %v347
    %v588 = vpack.c.b16 %v356, %v348
    %v589 = vpack.c.b16 %v357, %v349
    %v590 = vpack.c.b16 %v358, %v350
    %v591 = vpack.c.b16 %v359, %v351
    %v592 = vpack.c.b16 %v368, %v360
    %v593 = vpack.c.b16 %v369, %v361
    %v594 = vpack.c.b16 %v370, %v362
    %v595 = vpack.c.b16 %v371, %v363
    %v596 = vpack.c.b16 %v372, %v364
    %v597 = vpack.c.b16 %v373, %v365
    %v598 = vpack.c.b16 %v374, %v366
    %v599 = vpack.c.b16 %v375, %v367
    %v600 = vpack.c.b16 %v384, %v376
    %v601 = vpack.c.b16 %v385, %v377
    %v602 = vpack.c.b16 %v386, %v378
    %v603 = vpack.c.b16 %v387, %v379
    %v604 = vpack.c.b16 %v388, %v380
    %v605 = vpack.c.b16 %v389, %v381
    %v606 = vpack.c.b16 %v390, %v382
    %v607 = vpack.c.b16 %v391, %v383
    %v608 = vpack.c.b16 %v400, %v392
    %v609 = vpack.c.b16 %v401, %v393
    %v610 = vpack.c.b16 %v402, %v394
    %v611 = vpack.c.b16 %v403, %v395
    %v612 = vpack.c.b16 %v404, %v396
    %v613 = vpack.c.b16 %v405, %v397
    %v614 = vpack.c.b16 %v406, %v398
    %v615 = vpack.c.b16 %v407, %v399
    %v616 = vpack.c.b16 %v416, %v408
    %v617 = vpack.c.b16 %v417, %v409
    %v618 = vpack.c.b16 %v418, %v410
    %v619 = vpack.c.b16 %v419, %v411
    %v620 = vpack.c.b16 %v420, %v412
    %v621 = vpack.c.b16 %v421, %v413
    %v622 = vpack.c.b16 %v422, %v414
    %v623 = vpack.c.b16 %v423, %v415
    %v624 = vpack.c.b16 %v432, %v424
    %v625 = vpack.c.b16 %v433, %v425
    %v626 = vpack.c.b16 %v434, %v426
    %v627 = vpack.c.b16 %v435, %v427
    %v628 = vpack.c.b16 %v436, %v428
    %v629 = vpack.c.b16 %v437, %v429
    %v630 = vpack.c.b16 %v438, %v430
    %v631 = vpack.c.b16 %v439, %v431
    %v632 = vpack.c.b16 %v448, %v440
    %v633 = vpack.c.b16 %v449, %v441
    %v634 = vpack.c.b16 %v450, %v442
    %v635 = vpack.c.b16 %v451, %v443
    %v636 = vpack.c.b16 %v452, %v444
    %v637 = vpack.c.b16 %v453, %v445
    %v638 = vpack.c.b16 %v454, %v446
    %v639 = vpack.c.b16 %v455, %v447
    %v640 = vpack.c.b16 %v464, %v456
    %v641 = vpack.c.b16 %v465, %v457
    %v642 = vpack.c.b16 %v466, %v458
    %v643 = vpack.c.b16 %v467, %v459
    %v644 = vpack.c.b16 %v468, %v460
    %v645 = vpack.c.b16 %v469, %v461
    %v646 = vpack.c.b16 %v470, %v462
    %v647 = vpack.c.b16 %v471, %v463
    %v648 = vpack.c.b16 %v480, %v472
    %v649 = vpack.c.b16 %v481, %v473
    %v650 = vpack.c.b16 %v482, %v474
    %v651 = vpack.c.b16 %v483, %v475
    %v652 = vpack.c.b16 %v484, %v476
    %v653 = vpack.c.b16 %v485, %v477
    %v654 = vpack.c.b16 %v486, %v478
    %v655 = vpack.c.b16 %v487, %v479
    %v656 = vpack.c.b16 %v496, %v488
    %v657 = vpack.c.b16 %v497, %v489
    %v658 = vpack.c.b16 %v498, %v490
    %v659 = vpack.c.b16 %v499, %v491
    %v660 = vpack.c.b16 %v500, %v492
    %v661 = vpack.c.b16 %v501, %v493
    %v662 = vpack.c.b16 %v502, %v494
    %v663 = vpack.c.b16 %v503, %v495
    %v664 = vpack.c.b16 %v512, %v504
    %v665 = vpack.c.b16 %v513, %v505
    %v666 = vpack.c.b16 %v514, %v506
    %v667 = vpack.c.b16 %v515, %v507
    %v668 = vpack.c.b16 %v516, %v508
    %v669 = vpack.c.b16 %v517, %v509
    %v670 = vpack.c.b16 %v518, %v510
    %v671 = vpack.c.b16 %v519, %v511
    %v672 = vpack.c.b16 %v528, %v520
    %v673 = vpack.c.b16 %v529, %v521
    %v674 = vpack.c.b16 %v530, %v522
    %v675 = vpack.c.b16 %v531, %v523
    %v676 = vpack.c.b16 %v532, %v524
    %v677 = vpack.c.b16 %v533, %v525
    %v678 = vpack.c.b16 %v534, %v526
    %v679 = vpack.c.b16 %v535, %v527
    %v680 = vpack.c.b16 %v544, %v536
    %v681 = vpack.c.b16 %v545, %v537
    %v682 = vpack.c.b16 %v546, %v538
    %v683 = vpack.c.b16 %v547, %v539
    %v684 = vpack.c.b16 %v548, %v540
    %v685 = vpack.c.b16 %v549, %v541
    %v686 = vpack.c.b16 %v550, %v542
    %v687 = vpack.c.b16 %v551, %v543
    %v688 = vpack.c.b16 %v560, %v552
    %v689 = vpack.c.b16 %v561, %v553
    %v690 = vpack.c.b16 %v562, %v554
    %v691 = vpack.c.b16 %v563, %v555
    %v692 = vpack.c.b16 %v564, %v556
    %v693 = vpack.c.b16 %v565, %v557
    %v694 = vpack.c.b16 %v566, %v558
    %v695 = vpack.c.b16 %v567, %v559
    %824 = vmatprep.subr.bf16.mxu0 %v569
    %825 = vmatpush1.bf16.msra.mxu0 %v568
    %826 = vmatprep.subr.bf16.mxu0 %v577
    %827 = vmatpush1.bf16.msra.mxu0 %v576
    %828 = vmatprep.subr.bf16.mxu0 %v585
    %829 = vmatpush1.bf16.msra.mxu0 %v584
    %830 = vmatprep.subr.bf16.mxu0 %v593
    %831 = vmatpush1.bf16.msra.mxu0 %v592
    %832 = vmatprep.subr.bf16.mxu0 %v601
    %833 = vmatpush1.bf16.msra.mxu0 %v600
    %834 = vmatprep.subr.bf16.mxu0 %v609
    %835 = vmatpush1.bf16.msra.mxu0 %v608
    %836 = vmatprep.subr.bf16.mxu0 %v617
    %837 = vmatpush1.bf16.msra.mxu0 %v616
    %838 = vmatprep.subr.bf16.mxu0 %v625
    %839 = vmatpush1.bf16.msra.mxu0 %v624
    %840 = vmatprep.subr.bf16.mxu0 %v633
    %841 = vmatpush1.bf16.msra.mxu0 %v632
    %842 = vmatprep.subr.bf16.mxu0 %v641
    %843 = vmatpush1.bf16.msra.mxu0 %v640
    %844 = vmatprep.subr.bf16.mxu0 %v649
    %845 = vmatpush1.bf16.msra.mxu0 %v648
    %846 = vmatprep.subr.bf16.mxu0 %v657
    %847 = vmatpush1.bf16.msra.mxu0 %v656
    %848 = vmatprep.subr.bf16.mxu0 %v665
    %849 = vmatpush1.bf16.msra.mxu0 %v664
    %850 = vmatprep.subr.bf16.mxu0 %v673
    %851 = vmatpush1.bf16.msra.mxu0 %v672
    %852 = vmatprep.subr.bf16.mxu0 %v681
    %853 = vmatpush1.bf16.msra.mxu0 %v680
    %854 = vmatprep.subr.bf16.mxu0 %v689
    %855 = vmatpush1.bf16.msra.mxu0 %v688
    %856 = vmatprep.mubr.bf16.mxu0 %v55
    %857 = vmatmul.mubr.bf16.gmra.mrb[0].mxu0 %v54
    %v858 = vpop.f32.mrb[0].mxu0
    %v859 = vadd.f32 0.0, %v858
    %v860 = vpop.f32.mrb[0].mxu0
    %v861 = vadd.f32 0.0, %v860
    %v862 = vpop.f32.mrb[0].mxu0
    %v863 = vpop.f32.mrb[0].mxu0
    %864 = vdwg.mxu0
    %865 = vmatprep.subr.bf16.mxu0 %v571
    %866 = vmatpush1.bf16.msra.mxu0 %v570
    %867 = vmatprep.subr.bf16.mxu0 %v579
    %868 = vmatpush1.bf16.msra.mxu0 %v578
    %869 = vmatprep.subr.bf16.mxu0 %v587
    %870 = vmatpush1.bf16.msra.mxu0 %v586
    %871 = vmatprep.subr.bf16.mxu0 %v595
    %872 = vmatpush1.bf16.msra.mxu0 %v594
    %873 = vmatprep.subr.bf16.mxu0 %v603
    %874 = vmatpush1.bf16.msra.mxu0 %v602
    %875 = vmatprep.subr.bf16.mxu0 %v611
    %876 = vmatpush1.bf16.msra.mxu0 %v610
    %877 = vmatprep.subr.bf16.mxu0 %v619
    %878 = vmatpush1.bf16.msra.mxu0 %v618
    %879 = vmatprep.subr.bf16.mxu0 %v627
    %880 = vmatpush1.bf16.msra.mxu0 %v626
    %881 = vmatprep.subr.bf16.mxu0 %v635
    %882 = vmatpush1.bf16.msra.mxu0 %v634
    %883 = vmatprep.subr.bf16.mxu0 %v643
    %884 = vmatpush1.bf16.msra.mxu0 %v642
    %885 = vmatprep.subr.bf16.mxu0 %v651
    %886 = vmatpush1.bf16.msra.mxu0 %v650
    %887 = vmatprep.subr.bf16.mxu0 %v659
    %888 = vmatpush1.bf16.msra.mxu0 %v658
    %889 = vmatprep.subr.bf16.mxu0 %v667
    %890 = vmatpush1.bf16.msra.mxu0 %v666
    %891 = vmatprep.subr.bf16.mxu0 %v675
    %892 = vmatpush1.bf16.msra.mxu0 %v674
    %893 = vmatprep.subr.bf16.mxu0 %v683
    %894 = vmatpush1.bf16.msra.mxu0 %v682
    %895 = vmatprep.subr.bf16.mxu0 %v691
    %896 = vmatpush1.bf16.msra.mxu0 %v690
    %897 = vmatprep.mubr.bf16.mxu0 %v55
    %898 = vmatmul.mubr.bf16.gmra.mrb[0].mxu0 %v54
    %v899 = vpop.f32.mrb[0].mxu0
    %v900 = vadd.f32 0.0, %v899
    %v901 = vpop.f32.mrb[0].mxu0
    %v902 = vadd.f32 0.0, %v901
    %v903 = vpop.f32.mrb[0].mxu0
    %v904 = vpop.f32.mrb[0].mxu0
    %905 = vdwg.mxu0
    %906 = vmatprep.subr.bf16.mxu0 %v573
    %907 = vmatpush1.bf16.msra.mxu0 %v572
    %908 = vmatprep.subr.bf16.mxu0 %v581
    %909 = vmatpush1.bf16.msra.mxu0 %v580
    %910 = vmatprep.subr.bf16.mxu0 %v589
    %911 = vmatpush1.bf16.msra.mxu0 %v588
    %912 = vmatprep.subr.bf16.mxu0 %v597
    %913 = vmatpush1.bf16.msra.mxu0 %v596
    %914 = vmatprep.subr.bf16.mxu0 %v605
    %915 = vmatpush1.bf16.msra.mxu0 %v604
    %916 = vmatprep.subr.bf16.mxu0 %v613
    %917 = vmatpush1.bf16.msra.mxu0 %v612
    %918 = vmatprep.subr.bf16.mxu0 %v621
    %919 = vmatpush1.bf16.msra.mxu0 %v620
    %920 = vmatprep.subr.bf16.mxu0 %v629
    %921 = vmatpush1.bf16.msra.mxu0 %v628
    %922 = vmatprep.subr.bf16.mxu0 %v637
    %923 = vmatpush1.bf16.msra.mxu0 %v636
    %924 = vmatprep.subr.bf16.mxu0 %v645
    %925 = vmatpush1.bf16.msra.mxu0 %v644
    %926 = vmatprep.subr.bf16.mxu0 %v653
    %927 = vmatpush1.bf16.msra.mxu0 %v652
    %928 = vmatprep.subr.bf16.mxu0 %v661
    %929 = vmatpush1.bf16.msra.mxu0 %v660
    %930 = vmatprep.subr.bf16.mxu0 %v669
    %931 = vmatpush1.bf16.msra.mxu0 %v668
    %932 = vmatprep.subr.bf16.mxu0 %v677
    %933 = vmatpush1.bf16.msra.mxu0 %v676
    %934 = vmatprep.subr.bf16.mxu0 %v685
    %935 = vmatpush1.bf16.msra.mxu0 %v684
    %936 = vmatprep.subr.bf16.mxu0 %v693
    %937 = vmatpush1.bf16.msra.mxu0 %v692
    %938 = vmatprep.mubr.bf16.mxu0 %v55
    %939 = vmatmul.mubr.bf16.gmra.mrb[0].mxu0 %v54
    %v940 = vpop.f32.mrb[0].mxu0
    %v941 = vadd.f32 0.0, %v940
    %v942 = vpop.f32.mrb[0].mxu0
    %v943 = vadd.f32 0.0, %v942
    %v944 = vpop.f32.mrb[0].mxu0
    %v945 = vpop.f32.mrb[0].mxu0
    %946 = vdwg.mxu0
    %947 = vmatprep.subr.bf16.mxu0 %v575
    %948 = vmatpush1.bf16.msra.mxu0 %v574
    %949 = vmatprep.subr.bf16.mxu0 %v583
    %950 = vmatpush1.bf16.msra.mxu0 %v582
    %951 = vmatprep.subr.bf16.mxu0 %v591
    %952 = vmatpush1.bf16.msra.mxu0 %v590
    %953 = vmatprep.subr.bf16.mxu0 %v599
    %954 = vmatpush1.bf16.msra.mxu0 %v598
    %955 = vmatprep.subr.bf16.mxu0 %v607
    %956 = vmatpush1.bf16.msra.mxu0 %v606
    %957 = vmatprep.subr.bf16.mxu0 %v615
    %958 = vmatpush1.bf16.msra.mxu0 %v614
    %959 = vmatprep.subr.bf16.mxu0 %v623
    %960 = vmatpush1.bf16.msra.mxu0 %v622
    %961 = vmatprep.subr.bf16.mxu0 %v631
    %962 = vmatpush1.bf16.msra.mxu0 %v630
    %963 = vmatprep.subr.bf16.mxu0 %v639
    %964 = vmatpush1.bf16.msra.mxu0 %v638
    %965 = vmatprep.subr.bf16.mxu0 %v647
    %966 = vmatpush1.bf16.msra.mxu0 %v646
    %967 = vmatprep.subr.bf16.mxu0 %v655
    %968 = vmatpush1.bf16.msra.mxu0 %v654
    %969 = vmatprep.subr.bf16.mxu0 %v663
    %970 = vmatpush1.bf16.msra.mxu0 %v662
    %971 = vmatprep.subr.bf16.mxu0 %v671
    %972 = vmatpush1.bf16.msra.mxu0 %v670
    %973 = vmatprep.subr.bf16.mxu0 %v679
    %974 = vmatpush1.bf16.msra.mxu0 %v678
    %975 = vmatprep.subr.bf16.mxu0 %v687
    %976 = vmatpush1.bf16.msra.mxu0 %v686
    %977 = vmatprep.subr.bf16.mxu0 %v695
    %978 = vmatpush1.bf16.msra.mxu0 %v694
    %979 = vmatprep.mubr.bf16.mxu0 %v55
    %980 = vmatmul.mubr.bf16.gmra.mrb[0].mxu0 %v54
    %v981 = vpop.f32.mrb[0].mxu0
    %v982 = vadd.f32 0.0, %v981
    %v983 = vpop.f32.mrb[0].mxu0
    %v984 = vadd.f32 0.0, %v983
    %v985 = vpop.f32.mrb[0].mxu0
    %v986 = vpop.f32.mrb[0].mxu0
    %987 = vdwg.mxu0
    %v989 = vcombine.high %v48, %v48
    %v991 = vunpack.c.l.s4 1983009808
    %v992 = vunpack.c.0.s8 %v991
    %v993 = vlaneseq
    %v994 = vshrl.u32 %v993, 7
    %v995 = vsub.s32 %v992, %v994
    %v996 = vrot.slane %v48, %v995
    %v998 = vunpack.c.l.s4 1983009808
    %v999 = vunpack.c.0.s8 %v998
    %v1000 = vlaneseq
    %v1001 = vshrl.u32 %v1000, 7
    %v1002 = vsub.s32 %v999, %v1001
    %v1003 = vrot.slane %v989, %v1002
    %v1004 = vcombine.high %v996, %v996
    %v1005 = vcombine.high %v1003, %v1003
    %v1011 = vcombine.high %v53, %v53
    %v1013 = vunpack.c.l.s4 1983009808
    %v1014 = vunpack.c.0.s8 %v1013
    %v1015 = vlaneseq
    %v1016 = vshrl.u32 %v1015, 7
    %v1017 = vsub.s32 %v1014, %v1016
    %v1018 = vrot.slane %v53, %v1017
    %v1020 = vunpack.c.l.s4 1983009808
    %v1021 = vunpack.c.0.s8 %v1020
    %v1022 = vlaneseq
    %v1023 = vshrl.u32 %v1022, 7
    %v1024 = vsub.s32 %v1021, %v1023
    %v1025 = vrot.slane %v1011, %v1024
    %v1026 = vcombine.high %v1018, %v1018
    %v1027 = vcombine.high %v1025, %v1025
    %v1033 = vlaneseq
    %v1034 = vshrl.u32 %v1033, 7
    %v1035 = vsub.s32 0, %v1034
    %v1036 = vrot.slane %v34, %v1035
    %v1037 = vlaneseq
    %v1038 = vshrl.u32 %v1037, 7
    %v1039 = vsub.s32 1, %v1038
    %v1040 = vrot.slane %v34, %v1039
    %v1041 = vlaneseq
    %v1042 = vshrl.u32 %v1041, 7
    %v1043 = vsub.s32 2, %v1042
    %v1044 = vrot.slane %v34, %v1043
    %v1045 = vlaneseq
    %v1046 = vshrl.u32 %v1045, 7
    %v1047 = vsub.s32 3, %v1046
    %v1048 = vrot.slane %v34, %v1047
    %v1049 = vlaneseq
    %v1050 = vshrl.u32 %v1049, 7
    %v1051 = vsub.s32 4, %v1050
    %v1052 = vrot.slane %v34, %v1051
    %v1053 = vlaneseq
    %v1054 = vshrl.u32 %v1053, 7
    %v1055 = vsub.s32 5, %v1054
    %v1056 = vrot.slane %v34, %v1055
    %v1057 = vlaneseq
    %v1058 = vshrl.u32 %v1057, 7
    %v1059 = vsub.s32 6, %v1058
    %v1060 = vrot.slane %v34, %v1059
    %v1061 = vlaneseq
    %v1062 = vshrl.u32 %v1061, 7
    %v1063 = vsub.s32 7, %v1062
    %v1064 = vrot.slane %v34, %v1063
    %v1073 = vadd.f32 %v996, %v1036
    %v1074 = vadd.f32 %v1004, %v1040
    %v1075 = vadd.f32 %v1003, %v1044
    %v1076 = vadd.f32 %v1005, %v1048
    %v1077 = vadd.f32 %v1018, %v1052
    %v1078 = vadd.f32 %v1026, %v1056
    %v1079 = vadd.f32 %v1025, %v1060
    %v1080 = vadd.f32 %v1027, %v1064
    %v1081 = vadd.f32 %v1073, %v859
    %v1082 = vadd.f32 %v1074, %v861
    %v1083 = vadd.f32 %v1075, %v900
    %v1084 = vadd.f32 %v1076, %v902
    %v1085 = vadd.f32 %v1077, %v941
    %v1086 = vadd.f32 %v1078, %v943
    %v1087 = vadd.f32 %v1079, %v982
    %v1088 = vadd.f32 %v1080, %v984
    %v1089 = vxor.u32 %v1081, 2147483648
    %v1090 = vxor.u32 %v1085, 2147483648
    %v1091 = vmul.f32 %v1089, 1.442695
    %v1092 = vpow.pop %v1091
    %v1093 = vmul.f32 %v1090, 1.442695
    %v1094 = vpow.pop %v1093
    %v1095 = vadd.f32 %v1092, 1.0
    %v1096 = vadd.f32 %v1094, 1.0
    %v1097 = vrcp.pop %v1095
    %v1098 = vmul.f32 1.0, %v1097
    %v1099 = vrcp.pop %v1096
    %v1100 = vmul.f32 1.0, %v1099
    %v1101 = vxor.u32 %v1082, 2147483648
    %v1102 = vxor.u32 %v1086, 2147483648
    %v1103 = vmul.f32 %v1101, 1.442695
    %v1104 = vpow.pop %v1103
    %v1105 = vmul.f32 %v1102, 1.442695
    %v1106 = vpow.pop %v1105
    %v1107 = vadd.f32 %v1104, 1.0
    %v1108 = vadd.f32 %v1106, 1.0
    %v1109 = vrcp.pop %v1107
    %v1110 = vmul.f32 1.0, %v1109
    %v1111 = vrcp.pop %v1108
    %v1112 = vmul.f32 1.0, %v1111
    %v1113 = vtanh.pop %v1083
    %v1114 = vtanh.pop %v1087
    %v1115 = vxor.u32 %v1084, 2147483648
    %v1116 = vxor.u32 %v1088, 2147483648
    %v1117 = vmul.f32 %v1115, 1.442695
    %v1118 = vpow.pop %v1117
    %v1119 = vmul.f32 %v1116, 1.442695
    %v1120 = vpow.pop %v1119
    %v1121 = vadd.f32 %v1118, 1.0
    %v1122 = vadd.f32 %v1120, 1.0
    %v1123 = vrcp.pop %v1121
    %v1124 = vmul.f32 1.0, %v1123
    %v1125 = vrcp.pop %v1122
    %v1126 = vmul.f32 1.0, %v1125
    %v1127 = vmul.f32 %v1110, %v43
    %v1128 = vmul.f32 %v1112, %v44
    %v1129 = vmul.f32 %v1098, %v1113
    %v1130 = vmul.f32 %v1100, %v1114
    %v1131 = vadd.f32 %v1127, %v1129
    %v1132 = vadd.f32 %v1128, %v1130
    %v1133 = vtanh.pop %v1131
    %v1134 = vtanh.pop %v1132
    %v1135 = vmul.f32 %v1124, %v1133
    %v1136 = vmul.f32 %v1126, %v1134
  $region42: #{forward.3} parent=0 // loop_footer
    %s40 = sadd.s32 1, %s36
  $region43: #{forward.3} parent=0 // loop_footer_branch
    %35 = sbr.rel target = $region39
  $region44: #{forward.3} parent=0 // loop_exit
    _
  %v1137 = vld [vmem:[%s3] sm:$0xff]
  %v1138 = vld [vmem:[%s3 + $0x8] sm:$0xff]
  %v1139 = vld [vmem:[%s3 + $0x10] sm:$0xff]
  %v1140 = vld [vmem:[%s3 + $0x18] sm:$0xff]
  %v1141 = vld [vmem:[%s3 + $0x20] sm:$0xff]
  %v1142 = vld [vmem:[%s3 + $0x28] sm:$0xff]
  %v1143 = vld [vmem:[%s3 + $0x30] sm:$0xff]
  %v1144 = vld [vmem:[%s3 + $0x38] sm:$0xff]
  %v1145 = vld [vmem:[%s3 + $0x40] sm:$0xff]
  %v1146 = vld [vmem:[%s3 + $0x48] sm:$0xff]
  %v1147 = vld [vmem:[%s3 + $0x50] sm:$0xff]
  %v1148 = vld [vmem:[%s3 + $0x58] sm:$0xff]
  %v1149 = vld [vmem:[%s3 + $0x60] sm:$0xff]
  %v1150 = vld [vmem:[%s3 + $0x68] sm:$0xff]
  %v1151 = vld [vmem:[%s3 + $0x70] sm:$0xff]
  %v1152 = vld [vmem:[%s3 + $0x78] sm:$0xff]
  %v1153 = vld [vmem:[%s3 + $0x80] sm:$0xff]
  %v1154 = vld [vmem:[%s3 + $0x88] sm:$0xff]
  %v1155 = vld [vmem:[%s3 + $0x90] sm:$0xff]
  %v1156 = vld [vmem:[%s3 + $0x98] sm:$0xff]
  %v1157 = vld [vmem:[%s3 + $0xa0] sm:$0xff]
  %v1158 = vld [vmem:[%s3 + $0xa8] sm:$0xff]
  %v1159 = vld [vmem:[%s3 + $0xb0] sm:$0xff]
  %v1160 = vld [vmem:[%s3 + $0xb8] sm:$0xff]
  %v1161 = vld [vmem:[%s3 + $0xc0] sm:$0xff]
  %v1162 = vld [vmem:[%s3 + $0xc8] sm:$0xff]
  %v1163 = vld [vmem:[%s3 + $0xd0] sm:$0xff]
  %v1164 = vld [vmem:[%s3 + $0xd8] sm:$0xff]
  %v1165 = vld [vmem:[%s3 + $0xe0] sm:$0xff]
  %v1166 = vld [vmem:[%s3 + $0xe8] sm:$0xff]
  %v1167 = vld [vmem:[%s3 + $0xf0] sm:$0xff]
  %v1168 = vld [vmem:[%s3 + $0xf8] sm:$0xff]
  %v1169 = vld [vmem:[%s4] sm:$0x1]
  %v1171 = vlaneseq
  %v1172 = vshrl.u32 %v1171, 7
  %v1173 = vsub.s32 0, %v1172
  %v1174 = vrot.slane %v1169, %v1173
  %1176 = vmatprep.subr.mxu0 0.0
  %1177 = vmatpush1.msra.mxu0 %v1137
  %1178 = vmatprep.subr.mxu0 0.0
  %1179 = vmatpush1.msra.mxu0 %v1138
  %1180 = vmatprep.subr.mxu0 0.0
  %1181 = vmatpush1.msra.mxu0 %v1139
  %1182 = vmatprep.subr.mxu0 0.0
  %1183 = vmatpush1.msra.mxu0 %v1140
  %1184 = vmatprep.subr.mxu0 0.0
  %1185 = vmatpush1.msra.mxu0 %v1141
  %1186 = vmatprep.subr.mxu0 0.0
  %1187 = vmatpush1.msra.mxu0 %v1142
  %1188 = vmatprep.subr.mxu0 0.0
  %1189 = vmatpush1.msra.mxu0 %v1143
  %1190 = vmatprep.subr.mxu0 0.0
  %1191 = vmatpush1.msra.mxu0 %v1144
  %1192 = vmatprep.subr.mxu0 0.0
  %1193 = vmatpush1.msra.mxu0 %v1145
  %1194 = vmatprep.subr.mxu0 0.0
  %1195 = vmatpush1.msra.mxu0 %v1146
  %1196 = vmatprep.subr.mxu0 0.0
  %1197 = vmatpush1.msra.mxu0 %v1147
  %1198 = vmatprep.subr.mxu0 0.0
  %1199 = vmatpush1.msra.mxu0 %v1148
  %1200 = vmatprep.subr.mxu0 0.0
  %1201 = vmatpush1.msra.mxu0 %v1149
  %1202 = vmatprep.subr.mxu0 0.0
  %1203 = vmatpush1.msra.mxu0 %v1150
  %1204 = vmatprep.subr.mxu0 0.0
  %1205 = vmatpush1.msra.mxu0 %v1151
  %1206 = vmatprep.subr.mxu0 0.0
  %1207 = vmatpush1.msra.mxu0 %v1152
  %1208 = vmatprep.subr.mxu0 0.0
  %1209 = vmatpush1.msra.mxu0 %v1153
  %1210 = vmatprep.subr.mxu0 0.0
  %1211 = vmatpush1.msra.mxu0 %v1154
  %1212 = vmatprep.subr.mxu0 0.0
  %1213 = vmatpush1.msra.mxu0 %v1155
  %1214 = vmatprep.subr.mxu0 0.0
  %1215 = vmatpush1.msra.mxu0 %v1156
  %1216 = vmatprep.subr.mxu0 0.0
  %1217 = vmatpush1.msra.mxu0 %v1157
  %1218 = vmatprep.subr.mxu0 0.0
  %1219 = vmatpush1.msra.mxu0 %v1158
  %1220 = vmatprep.subr.mxu0 0.0
  %1221 = vmatpush1.msra.mxu0 %v1159
  %1222 = vmatprep.subr.mxu0 0.0
  %1223 = vmatpush1.msra.mxu0 %v1160
  %1224 = vmatprep.subr.mxu0 0.0
  %1225 = vmatpush1.msra.mxu0 %v1161
  %1226 = vmatprep.subr.mxu0 0.0
  %1227 = vmatpush1.msra.mxu0 %v1162
  %1228 = vmatprep.subr.mxu0 0.0
  %1229 = vmatpush1.msra.mxu0 %v1163
  %1230 = vmatprep.subr.mxu0 0.0
  %1231 = vmatpush1.msra.mxu0 %v1164
  %1232 = vmatprep.subr.mxu0 0.0
  %1233 = vmatpush1.msra.mxu0 %v1165
  %1234 = vmatprep.subr.mxu0 0.0
  %1235 = vmatpush1.msra.mxu0 %v1166
  %1236 = vmatprep.subr.mxu0 0.0
  %1237 = vmatpush1.msra.mxu0 %v1167
  %1238 = vmatprep.subr.mxu0 0.0
  %1239 = vmatpush1.msra.mxu0 %v1168
  %1240 = vmatprep.mubr.f32.mxu0 %v42
  %1241 = vmatmul.mubr.f32.gmra.mrb[0].mxu0 %v41
  %v1242 = vpop.f32.mrb[0].mxu0
  %v1243 = vadd.f32 %v1174, %v1242
  %v1244 = vpop.f32.mrb[0].mxu0
  %1245 = vdwg.mxu0
  %v1246 = vmax.f32 %v1243, 0.0
  %v1247 = vld [vmem:[%s5] sm:$0xff]
  %v1248 = vld [vmem:[%s5 + $0x8] sm:$0xff]
  %v1249 = vld [vmem:[%s5 + $0x10] sm:$0xff]
  %v1250 = vld [vmem:[%s5 + $0x18] sm:$0xff]
  %v1251 = vld [vmem:[%s5 + $0x20] sm:$0xff]
  %v1252 = vld [vmem:[%s5 + $0x28] sm:$0xff]
  %v1253 = vld [vmem:[%s5 + $0x30] sm:$0xff]
  %v1254 = vld [vmem:[%s5 + $0x38] sm:$0xff]
  %v1255 = vld [vmem:[%s6] sm:$0x1]
  %v1257 = vlaneseq
  %v1258 = vshrl.u32 %v1257, 7
  %v1259 = vsub.s32 0, %v1258
  %v1260 = vrot.slane %v1255, %v1259
  %vm1262 = vcmask 523264
  %v1264 = vsel %vm1262, %v1246, 0
  %1266 = vmatprep.subr.mxu0 0.0
  %1267 = vmatpush1.msra.mxu0 %v1247
  %1268 = vmatprep.subr.mxu0 0.0
  %1269 = vmatpush1.msra.mxu0 %v1248
  %1270 = vmatprep.subr.mxu0 0.0
  %1271 = vmatpush1.msra.mxu0 %v1249
  %1272 = vmatprep.subr.mxu0 0.0
  %1273 = vmatpush1.msra.mxu0 %v1250
  %1274 = vmatprep.subr.mxu0 0.0
  %1275 = vmatpush1.msra.mxu0 %v1251
  %1276 = vmatprep.subr.mxu0 0.0
  %1277 = vmatpush1.msra.mxu0 %v1252
  %1278 = vmatprep.subr.mxu0 0.0
  %1279 = vmatpush1.msra.mxu0 %v1253
  %1280 = vmatprep.subr.mxu0 0.0
  %1281 = vmatpush1.msra.mxu0 %v1254
  %1282 = vmatprep.subr.mxu0 0.0
  %1283 = vmatpush1.msra.mxu0 0.0
  %1284 = vmatprep.subr.mxu0 0.0
  %1285 = vmatpush1.msra.mxu0 0.0
  %1286 = vmatprep.subr.mxu0 0.0
  %1287 = vmatpush1.msra.mxu0 0.0
  %1288 = vmatprep.subr.mxu0 0.0
  %1289 = vmatpush1.msra.mxu0 0.0
  %1290 = vmatprep.subr.mxu0 0.0
  %1291 = vmatpush1.msra.mxu0 0.0
  %1292 = vmatprep.subr.mxu0 0.0
  %1293 = vmatpush1.msra.mxu0 0.0
  %1294 = vmatprep.subr.mxu0 0.0
  %1295 = vmatpush1.msra.mxu0 0.0
  %1296 = vmatprep.subr.mxu0 0.0
  %1297 = vmatpush1.msra.mxu0 0.0
  %1298 = vmatprep.subr.mxu0 0.0
  %1299 = vmatpush1.msra.mxu0 0.0
  %1300 = vmatprep.subr.mxu0 0.0
  %1301 = vmatpush1.msra.mxu0 0.0
  %1302 = vmatprep.subr.mxu0 0.0
  %1303 = vmatpush1.msra.mxu0 0.0
  %1304 = vmatprep.subr.mxu0 0.0
  %1305 = vmatpush1.msra.mxu0 0.0
  %1306 = vmatprep.subr.mxu0 0.0
  %1307 = vmatpush1.msra.mxu0 0.0
  %1308 = vmatprep.subr.mxu0 0.0
  %1309 = vmatpush1.msra.mxu0 0.0
  %1310 = vmatprep.subr.mxu0 0.0
  %1311 = vmatpush1.msra.mxu0 0.0
  %1312 = vmatprep.subr.mxu0 0.0
  %1313 = vmatpush1.msra.mxu0 0.0
  %1314 = vmatprep.subr.mxu0 0.0
  %1315 = vmatpush1.msra.mxu0 0.0
  %1316 = vmatprep.subr.mxu0 0.0
  %1317 = vmatpush1.msra.mxu0 0.0
  %1318 = vmatprep.subr.mxu0 0.0
  %1319 = vmatpush1.msra.mxu0 0.0
  %1320 = vmatprep.subr.mxu0 0.0
  %1321 = vmatpush1.msra.mxu0 0.0
  %1322 = vmatprep.subr.mxu0 0.0
  %1323 = vmatpush1.msra.mxu0 0.0
  %1324 = vmatprep.subr.mxu0 0.0
  %1325 = vmatpush1.msra.mxu0 0.0
  %1326 = vmatprep.subr.mxu0 0.0
  %1327 = vmatpush1.msra.mxu0 0.0
  %1328 = vmatprep.subr.mxu0 0.0
  %1329 = vmatpush1.msra.mxu0 0.0
  %1330 = vmatprep.mubr.f32.mxu0 0.0
  %1331 = vmatmul.mubr.f32.gmra.mrb[0].mxu0 %v1264
  %v1332 = vpop.f32.mrb[0].mxu0
  %v1333 = vadd.f32 %v1260, %v1332
  %v1334 = vpop.f32.mrb[0].mxu0
  %1335 = vdwg.mxu0
  %v1336 = vmax.f32 %v1333, 0.0
  %v1337 = vld [vmem:[%s7] sm:$0x1]
  %v1339 = vlaneseq
  %v1340 = vshrl.u32 %v1339, 7
  %v1341 = vsub.s32 0, %v1340
  %v1342 = vrot.slane %v1337, %v1341
  %v1344 = vmul.f32 %v1336, %v1342
  %vm1345 = vcmask 254976
  %v1346 = vsel %vm1345, %v1344, 0.0
  %1347 = vadd.xlane.f32.xlu0 %v1346
  %v1348 = vpop.xlane.xlu0 %1347
  %v1349 = vld [vmem:[#allocation2] sm:$0x1]
  %v1351 = vlaneseq
  %v1352 = vshrl.u32 %v1351, 7
  %v1353 = vsub.s32 0, %v1352
  %v1354 = vrot.slane %v1349, %v1353
  %v1356 = vadd.f32 %v1348, %v1354
  %v1357 = vxor.u32 %v1356, 2147483648
  %v1358 = vmul.f32 %v1357, 1.442695
  %v1359 = vpow.pop %v1358
  %v1360 = vadd.f32 %v1359, 1.0
  %v1361 = vrcp.pop %v1360
  %v1362 = vmul.f32 1.0, %v1361
  %vm1363 = vcmask 1024
  %1364 = vst.msk [vmem:[%s9] sm:$0x3] %vm1363, %v1362
  // Predicated region
  $region45: #{forward.3} parent=0 // pred_check
    _
  $region46: #{forward.3} parent=0 // pred_check_branch
    %1366 = sbr.rel (0) target = $region48
  $region47: #{forward.3} parent=0 // pred_region
    _
  $region48: #{forward.3} parent=0 // pred_fallthru
    _
  // Predicated region
  $region49: #{forward.3} parent=0 // pred_check
    _
  $region50: #{forward.3} parent=0 // pred_check_branch
    %1368 = sbr.rel (0) target = $region52
  $region51: #{forward.3} parent=0 // pred_region
    _
  $region52: #{forward.3} parent=0 // pred_fallthru
    _

// kernel: forward.2
$region0: #{forward.2}
  #allocation0 [shape = 'u32[]', space=smem, size = 0x4, offset = 0x4, fixed_abs, tag = 'smem constant byte address 0x4 - core index']
  #allocation1 [shape = 'u32[144,128]{1,0:T(1,128)}', space=vmem, size = 0x12000, scoped, tag = 'internal scratch']
  %s0 = inlined_call_operand.vmem [shape: bf16[128,256], index: 0, kind: input, shape index: {}]
  %s1 = inlined_call_operand.vmem [shape: bf16[256,512], index: 1, kind: input, shape index: {}]
  %s2 = inlined_call_operand.vmem [shape: f32[1,512], index: 2, kind: input, shape index: {}]
  %s3 = inlined_call_operand.vmem [shape: bf16[512,1024], index: 3, kind: input, shape index: {}]
  %s4 = inlined_call_operand.vmem [shape: bf16[128,1024], index: 4, kind: output, shape index: {}]
  %s5 = sld [smem:[#allocation0]]
  $region26: #{forward.2} parent=0
    _
  %s7 = ssub.s32 1, %s5
  %s8 = scalar_select 0, %s7, %s5
  // Predicated region
  $region2: #{forward.2} parent=0 // pred_check
    _
  $region3: #{forward.2} parent=0 // pred_check_branch
    %10 = sbr.rel (0) target = $region5
  $region4: #{forward.2} parent=0 // pred_region
    _
  $region5: #{forward.2} parent=0 // pred_fallthru
    _
  // Predicated region
  $region6: #{forward.2} parent=0 // pred_check
    _
  $region7: #{forward.2} parent=0 // pred_check_branch
    %12 = sbr.rel (0) target = $region9
  $region8: #{forward.2} parent=0 // pred_region
    _
  $region9: #{forward.2} parent=0 // pred_fallthru
    _
  // Predicated region
  $region10: #{forward.2} parent=0 // pred_check
    _
  $region11: #{forward.2} parent=0 // pred_check_branch
    %14 = sbr.rel (0) target = $region13
  $region12: #{forward.2} parent=0 // pred_region
    _
  $region13: #{forward.2} parent=0 // pred_fallthru
    _
  // Predicated region
  $region14: #{forward.2} parent=0 // pred_check
    _
  $region15: #{forward.2} parent=0 // pred_check_branch
    %16 = sbr.rel (0) target = $region17
  $region16: #{forward.2} parent=0 // pred_region
    _
  $region17: #{forward.2} parent=0 // pred_fallthru
    _
  %v17 = vld [vmem:[%s0] sm:$0xff]
  %v18 = vld [vmem:[%s0 + $0x8] sm:$0xff]
  %v19 = vld [vmem:[%s0 + $0x10] sm:$0xff]
  %v20 = vld [vmem:[%s0 + $0x18] sm:$0xff]
  %v21 = vld [vmem:[%s0 + $0x20] sm:$0xff]
  %v22 = vld [vmem:[%s0 + $0x28] sm:$0xff]
  %v23 = vld [vmem:[%s0 + $0x30] sm:$0xff]
  %v24 = vld [vmem:[%s0 + $0x38] sm:$0xff]
  %v25 = vld [vmem:[%s0 + $0x40] sm:$0xff]
  %v26 = vld [vmem:[%s0 + $0x48] sm:$0xff]
  %v27 = vld [vmem:[%s0 + $0x50] sm:$0xff]
  %v28 = vld [vmem:[%s0 + $0x58] sm:$0xff]
  %v29 = vld [vmem:[%s0 + $0x60] sm:$0xff]
  %v30 = vld [vmem:[%s0 + $0x68] sm:$0xff]
  %v31 = vld [vmem:[%s0 + $0x70] sm:$0xff]
  %v32 = vld [vmem:[%s0 + $0x78] sm:$0xff]
  %v33 = vld [vmem:[%s1] sm:$0xff]
  %v34 = vld [vmem:[%s1 + $0x8] sm:$0xff]
  %v35 = vld [vmem:[%s1 + $0x10] sm:$0xff]
  %v36 = vld [vmem:[%s1 + $0x18] sm:$0xff]
  %v37 = vld [vmem:[%s1 + $0x20] sm:$0xff]
  %v38 = vld [vmem:[%s1 + $0x28] sm:$0xff]
  %v39 = vld [vmem:[%s1 + $0x30] sm:$0xff]
  %v40 = vld [vmem:[%s1 + $0x38] sm:$0xff]
  %v41 = vld [vmem:[%s1 + $0x40] sm:$0xff]
  %v42 = vld [vmem:[%s1 + $0x48] sm:$0xff]
  %v43 = vld [vmem:[%s1 + $0x50] sm:$0xff]
  %v44 = vld [vmem:[%s1 + $0x58] sm:$0xff]
  %v45 = vld [vmem:[%s1 + $0x60] sm:$0xff]
  %v46 = vld [vmem:[%s1 + $0x68] sm:$0xff]
  %v47 = vld [vmem:[%s1 + $0x70] sm:$0xff]
  %v48 = vld [vmem:[%s1 + $0x78] sm:$0xff]
  %v49 = vld [vmem:[%s1 + $0x80] sm:$0xff]
  %v50 = vld [vmem:[%s1 + $0x88] sm:$0xff]
  %v51 = vld [vmem:[%s1 + $0x90] sm:$0xff]
  %v52 = vld [vmem:[%s1 + $0x98] sm:$0xff]
  %v53 = vld [vmem:[%s1 + $0xa0] sm:$0xff]
  %v54 = vld [vmem:[%s1 + $0xa8] sm:$0xff]
  %v55 = vld [vmem:[%s1 + $0xb0] sm:$0xff]
  %v56 = vld [vmem:[%s1 + $0xb8] sm:$0xff]
  %v57 = vld [vmem:[%s1 + $0xc0] sm:$0xff]
  %v58 = vld [vmem:[%s1 + $0xc8] sm:$0xff]
  %v59 = vld [vmem:[%s1 + $0xd0] sm:$0xff]
  %v60 = vld [vmem:[%s1 + $0xd8] sm:$0xff]
  %v61 = vld [vmem:[%s1 + $0xe0] sm:$0xff]
  %v62 = vld [vmem:[%s1 + $0xe8] sm:$0xff]
  %v63 = vld [vmem:[%s1 + $0xf0] sm:$0xff]
  %v64 = vld [vmem:[%s1 + $0xf8] sm:$0xff]
  %v65 = vld [vmem:[%s1 + $0x100] sm:$0xff]
  %v66 = vld [vmem:[%s1 + $0x108] sm:$0xff]
  %v67 = vld [vmem:[%s1 + $0x110] sm:$0xff]
  %v68 = vld [vmem:[%s1 + $0x118] sm:$0xff]
  %v69 = vld [vmem:[%s1 + $0x120] sm:$0xff]
  %v70 = vld [vmem:[%s1 + $0x128] sm:$0xff]
  %v71 = vld [vmem:[%s1 + $0x130] sm:$0xff]
  %v72 = vld [vmem:[%s1 + $0x138] sm:$0xff]
  %v73 = vld [vmem:[%s1 + $0x140] sm:$0xff]
  %v74 = vld [vmem:[%s1 + $0x148] sm:$0xff]
  %v75 = vld [vmem:[%s1 + $0x150] sm:$0xff]
  %v76 = vld [vmem:[%s1 + $0x158] sm:$0xff]
  %v77 = vld [vmem:[%s1 + $0x160] sm:$0xff]
  %v78 = vld [vmem:[%s1 + $0x168] sm:$0xff]
  %v79 = vld [vmem:[%s1 + $0x170] sm:$0xff]
  %v80 = vld [vmem:[%s1 + $0x178] sm:$0xff]
  %v81 = vld [vmem:[%s1 + $0x180] sm:$0xff]
  %v82 = vld [vmem:[%s1 + $0x188] sm:$0xff]
  %v83 = vld [vmem:[%s1 + $0x190] sm:$0xff]
  %v84 = vld [vmem:[%s1 + $0x198] sm:$0xff]
  %v85 = vld [vmem:[%s1 + $0x1a0] sm:$0xff]
  %v86 = vld [vmem:[%s1 + $0x1a8] sm:$0xff]
  %v87 = vld [vmem:[%s1 + $0x1b0] sm:$0xff]
  %v88 = vld [vmem:[%s1 + $0x1b8] sm:$0xff]
  %v89 = vld [vmem:[%s1 + $0x1c0] sm:$0xff]
  %v90 = vld [vmem:[%s1 + $0x1c8] sm:$0xff]
  %v91 = vld [vmem:[%s1 + $0x1d0] sm:$0xff]
  %v92 = vld [vmem:[%s1 + $0x1d8] sm:$0xff]
  %v93 = vld [vmem:[%s1 + $0x1e0] sm:$0xff]
  %v94 = vld [vmem:[%s1 + $0x1e8] sm:$0xff]
  %v95 = vld [vmem:[%s1 + $0x1f0] sm:$0xff]
  %v96 = vld [vmem:[%s1 + $0x1f8] sm:$0xff]
  %v97 = vld [vmem:[%s2] sm:$0xf]
  %v99 = vlaneseq
  %v100 = vshrl.u32 %v99, 7
  %v101 = vsub.s32 0, %v100
  %v102 = vrot.slane %v97, %v101
  %v103 = vlaneseq
  %v104 = vshrl.u32 %v103, 7
  %v105 = vsub.s32 1, %v104
  %v106 = vrot.slane %v97, %v105
  %v107 = vlaneseq
  %v108 = vshrl.u32 %v107, 7
  %v109 = vsub.s32 2, %v108
  %v110 = vrot.slane %v97, %v109
  %v111 = vlaneseq
  %v112 = vshrl.u32 %v111, 7
  %v113 = vsub.s32 3, %v112
  %v114 = vrot.slane %v97, %v113
  %v135 = vunpack.c.l.b16 %v17
  %v136 = vunpack.c.h.b16 %v17
  %v137 = vunpack.c.l.b16 %v18
  %v138 = vunpack.c.h.b16 %v18
  %v139 = vunpack.c.l.b16 %v19
  %v140 = vunpack.c.h.b16 %v19
  %v141 = vunpack.c.l.b16 %v20
  %v142 = vunpack.c.h.b16 %v20
  %v143 = vunpack.c.l.b16 %v21
  %v144 = vunpack.c.h.b16 %v21
  %v145 = vunpack.c.l.b16 %v22
  %v146 = vunpack.c.h.b16 %v22
  %v147 = vunpack.c.l.b16 %v23
  %v148 = vunpack.c.h.b16 %v23
  %v149 = vunpack.c.l.b16 %v24
  %v150 = vunpack.c.h.b16 %v24
  %v151 = vunpack.c.l.b16 %v25
  %v152 = vunpack.c.h.b16 %v25
  %v153 = vunpack.c.l.b16 %v26
  %v154 = vunpack.c.h.b16 %v26
  %v155 = vunpack.c.l.b16 %v27
  %v156 = vunpack.c.h.b16 %v27
  %v157 = vunpack.c.l.b16 %v28
  %v158 = vunpack.c.h.b16 %v28
  %v159 = vunpack.c.l.b16 %v29
  %v160 = vunpack.c.h.b16 %v29
  %v161 = vunpack.c.l.b16 %v30
  %v162 = vunpack.c.h.b16 %v30
  %v163 = vunpack.c.l.b16 %v31
  %v164 = vunpack.c.h.b16 %v31
  %v165 = vunpack.c.l.b16 %v32
  %v166 = vunpack.c.h.b16 %v32
  %v167 = vpack.c.b16 %v137, %v135
  %v168 = vpack.c.b16 %v138, %v136
  %v169 = vpack.c.b16 %v141, %v139
  %v170 = vpack.c.b16 %v142, %v140
  %v171 = vpack.c.b16 %v145, %v143
  %v172 = vpack.c.b16 %v146, %v144
  %v173 = vpack.c.b16 %v149, %v147
  %v174 = vpack.c.b16 %v150, %v148
  %v175 = vpack.c.b16 %v153, %v151
  %v176 = vpack.c.b16 %v154, %v152
  %v177 = vpack.c.b16 %v157, %v155
  %v178 = vpack.c.b16 %v158, %v156
  %v179 = vpack.c.b16 %v161, %v159
  %v180 = vpack.c.b16 %v162, %v160
  %v181 = vpack.c.b16 %v165, %v163
  %v182 = vpack.c.b16 %v166, %v164
  %v263 = vunpack.c.l.b16 %v33
  %v264 = vunpack.c.h.b16 %v33
  %v265 = vunpack.c.l.b16 %v34
  %v266 = vunpack.c.h.b16 %v34
  %v267 = vunpack.c.l.b16 %v35
  %v268 = vunpack.c.h.b16 %v35
  %v269 = vunpack.c.l.b16 %v36
  %v270 = vunpack.c.h.b16 %v36
  %v271 = vunpack.c.l.b16 %v37
  %v272 = vunpack.c.h.b16 %v37
  %v273 = vunpack.c.l.b16 %v38
  %v274 = vunpack.c.h.b16 %v38
  %v275 = vunpack.c.l.b16 %v39
  %v276 = vunpack.c.h.b16 %v39
  %v277 = vunpack.c.l.b16 %v40
  %v278 = vunpack.c.h.b16 %v40
  %v279 = vunpack.c.l.b16 %v41
  %v280 = vunpack.c.h.b16 %v41
  %v281 = vunpack.c.l.b16 %v42
  %v282 = vunpack.c.h.b16 %v42
  %v283 = vunpack.c.l.b16 %v43
  %v284 = vunpack.c.h.b16 %v43
  %v285 = vunpack.c.l.b16 %v44
  %v286 = vunpack.c.h.b16 %v44
  %v287 = vunpack.c.l.b16 %v45
  %v288 = vunpack.c.h.b16 %v45
  %v289 = vunpack.c.l.b16 %v46
  %v290 = vunpack.c.h.b16 %v46
  %v291 = vunpack.c.l.b16 %v47
  %v292 = vunpack.c.h.b16 %v47
  %v293 = vunpack.c.l.b16 %v48
  %v294 = vunpack.c.h.b16 %v48
  %v295 = vunpack.c.l.b16 %v49
  %v296 = vunpack.c.h.b16 %v49
  %v297 = vunpack.c.l.b16 %v50
  %v298 = vunpack.c.h.b16 %v50
  %v299 = vunpack.c.l.b16 %v51
  %v300 = vunpack.c.h.b16 %v51
  %v301 = vunpack.c.l.b16 %v52
  %v302 = vunpack.c.h.b16 %v52
  %v303 = vunpack.c.l.b16 %v53
  %v304 = vunpack.c.h.b16 %v53
  %v305 = vunpack.c.l.b16 %v54
  %v306 = vunpack.c.h.b16 %v54
  %v307 = vunpack.c.l.b16 %v55
  %v308 = vunpack.c.h.b16 %v55
  %v309 = vunpack.c.l.b16 %v56
  %v310 = vunpack.c.h.b16 %v56
  %v311 = vunpack.c.l.b16 %v57
  %v312 = vunpack.c.h.b16 %v57
  %v313 = vunpack.c.l.b16 %v58
  %v314 = vunpack.c.h.b16 %v58
  %v315 = vunpack.c.l.b16 %v59
  %v316 = vunpack.c.h.b16 %v59
  %v317 = vunpack.c.l.b16 %v60
  %v318 = vunpack.c.h.b16 %v60
  %v319 = vunpack.c.l.b16 %v61
  %v320 = vunpack.c.h.b16 %v61
  %v321 = vunpack.c.l.b16 %v62
  %v322 = vunpack.c.h.b16 %v62
  %v323 = vunpack.c.l.b16 %v63
  %v324 = vunpack.c.h.b16 %v63
  %v325 = vunpack.c.l.b16 %v64
  %v326 = vunpack.c.h.b16 %v64
  %v327 = vunpack.c.l.b16 %v65
  %v328 = vunpack.c.h.b16 %v65
  %v329 = vunpack.c.l.b16 %v66
  %v330 = vunpack.c.h.b16 %v66
  %v331 = vunpack.c.l.b16 %v67
  %v332 = vunpack.c.h.b16 %v67
  %v333 = vunpack.c.l.b16 %v68
  %v334 = vunpack.c.h.b16 %v68
  %v335 = vunpack.c.l.b16 %v69
  %v336 = vunpack.c.h.b16 %v69
  %v337 = vunpack.c.l.b16 %v70
  %v338 = vunpack.c.h.b16 %v70
  %v339 = vunpack.c.l.b16 %v71
  %v340 = vunpack.c.h.b16 %v71
  %v341 = vunpack.c.l.b16 %v72
  %v342 = vunpack.c.h.b16 %v72
  %v343 = vunpack.c.l.b16 %v73
  %v344 = vunpack.c.h.b16 %v73
  %v345 = vunpack.c.l.b16 %v74
  %v346 = vunpack.c.h.b16 %v74
  %v347 = vunpack.c.l.b16 %v75
  %v348 = vunpack.c.h.b16 %v75
  %v349 = vunpack.c.l.b16 %v76
  %v350 = vunpack.c.h.b16 %v76
  %v351 = vunpack.c.l.b16 %v77
  %v352 = vunpack.c.h.b16 %v77
  %v353 = vunpack.c.l.b16 %v78
  %v354 = vunpack.c.h.b16 %v78
  %v355 = vunpack.c.l.b16 %v79
  %v356 = vunpack.c.h.b16 %v79
  %v357 = vunpack.c.l.b16 %v80
  %v358 = vunpack.c.h.b16 %v80
  %v359 = vunpack.c.l.b16 %v81
  %v360 = vunpack.c.h.b16 %v81
  %v361 = vunpack.c.l.b16 %v82
  %v362 = vunpack.c.h.b16 %v82
  %v363 = vunpack.c.l.b16 %v83
  %v364 = vunpack.c.h.b16 %v83
  %v365 = vunpack.c.l.b16 %v84
  %v366 = vunpack.c.h.b16 %v84
  %v367 = vunpack.c.l.b16 %v85
  %v368 = vunpack.c.h.b16 %v85
  %v369 = vunpack.c.l.b16 %v86
  %v370 = vunpack.c.h.b16 %v86
  %v371 = vunpack.c.l.b16 %v87
  %v372 = vunpack.c.h.b16 %v87
  %v373 = vunpack.c.l.b16 %v88
  %v374 = vunpack.c.h.b16 %v88
  %v375 = vunpack.c.l.b16 %v89
  %v376 = vunpack.c.h.b16 %v89
  %v377 = vunpack.c.l.b16 %v90
  %v378 = vunpack.c.h.b16 %v90
  %v379 = vunpack.c.l.b16 %v91
  %v380 = vunpack.c.h.b16 %v91
  %v381 = vunpack.c.l.b16 %v92
  %v382 = vunpack.c.h.b16 %v92
  %v383 = vunpack.c.l.b16 %v93
  %v384 = vunpack.c.h.b16 %v93
  %v385 = vunpack.c.l.b16 %v94
  %v386 = vunpack.c.h.b16 %v94
  %v387 = vunpack.c.l.b16 %v95
  %v388 = vunpack.c.h.b16 %v95
  %v389 = vunpack.c.l.b16 %v96
  %v390 = vunpack.c.h.b16 %v96
  %v391 = vpack.c.b16 %v267, %v263
  %v392 = vpack.c.b16 %v268, %v264
  %v393 = vpack.c.b16 %v269, %v265
  %v394 = vpack.c.b16 %v270, %v266
  %v395 = vpack.c.b16 %v275, %v271
  %v396 = vpack.c.b16 %v276, %v272
  %v397 = vpack.c.b16 %v277, %v273
  %v398 = vpack.c.b16 %v278, %v274
  %v399 = vpack.c.b16 %v283, %v279
  %v400 = vpack.c.b16 %v284, %v280
  %v401 = vpack.c.b16 %v285, %v281
  %v402 = vpack.c.b16 %v286, %v282
  %v403 = vpack.c.b16 %v291, %v287
  %v404 = vpack.c.b16 %v292, %v288
  %v405 = vpack.c.b16 %v293, %v289
  %v406 = vpack.c.b16 %v294, %v290
  %v407 = vpack.c.b16 %v299, %v295
  %v408 = vpack.c.b16 %v300, %v296
  %v409 = vpack.c.b16 %v301, %v297
  %v410 = vpack.c.b16 %v302, %v298
  %v411 = vpack.c.b16 %v307, %v303
  %v412 = vpack.c.b16 %v308, %v304
  %v413 = vpack.c.b16 %v309, %v305
  %v414 = vpack.c.b16 %v310, %v306
  %v415 = vpack.c.b16 %v315, %v311
  %v416 = vpack.c.b16 %v316, %v312
  %v417 = vpack.c.b16 %v317, %v313
  %v418 = vpack.c.b16 %v318, %v314
  %v419 = vpack.c.b16 %v323, %v319
  %v420 = vpack.c.b16 %v324, %v320
  %v421 = vpack.c.b16 %v325, %v321
  %v422 = vpack.c.b16 %v326, %v322
  %v423 = vpack.c.b16 %v331, %v327
  %v424 = vpack.c.b16 %v332, %v328
  %v425 = vpack.c.b16 %v333, %v329
  %v426 = vpack.c.b16 %v334, %v330
  %v427 = vpack.c.b16 %v339, %v335
  %v428 = vpack.c.b16 %v340, %v336
  %v429 = vpack.c.b16 %v341, %v337
  %v430 = vpack.c.b16 %v342, %v338
  %v431 = vpack.c.b16 %v347, %v343
  %v432 = vpack.c.b16 %v348, %v344
  %v433 = vpack.c.b16 %v349, %v345
  %v434 = vpack.c.b16 %v350, %v346
  %v435 = vpack.c.b16 %v355, %v351
  %v436 = vpack.c.b16 %v356, %v352
  %v437 = vpack.c.b16 %v357, %v353
  %v438 = vpack.c.b16 %v358, %v354
  %v439 = vpack.c.b16 %v363, %v359
  %v440 = vpack.c.b16 %v364, %v360
  %v441 = vpack.c.b16 %v365, %v361
  %v442 = vpack.c.b16 %v366, %v362
  %v443 = vpack.c.b16 %v371, %v367
  %v444 = vpack.c.b16 %v372, %v368
  %v445 = vpack.c.b16 %v373, %v369
  %v446 = vpack.c.b16 %v374, %v370
  %v447 = vpack.c.b16 %v379, %v375
  %v448 = vpack.c.b16 %v380, %v376
  %v449 = vpack.c.b16 %v381, %v377
  %v450 = vpack.c.b16 %v382, %v378
  %v451 = vpack.c.b16 %v387, %v383
  %v452 = vpack.c.b16 %v388, %v384
  %v453 = vpack.c.b16 %v389, %v385
  %v454 = vpack.c.b16 %v390, %v386
  %519 = vmatprep.subr.bf16.mxu0 %v392
  %520 = vmatpush1.bf16.msra.mxu0 %v391
  %521 = vmatprep.subr.bf16.mxu0 %v396
  %522 = vmatpush1.bf16.msra.mxu0 %v395
  %523 = vmatprep.subr.bf16.mxu0 %v400
  %524 = vmatpush1.bf16.msra.mxu0 %v399
  %525 = vmatprep.subr.bf16.mxu0 %v404
  %526 = vmatpush1.bf16.msra.mxu0 %v403
  %527 = vmatprep.subr.bf16.mxu0 %v408
  %528 = vmatpush1.bf16.msra.mxu0 %v407
  %529 = vmatprep.subr.bf16.mxu0 %v412
  %530 = vmatpush1.bf16.msra.mxu0 %v411
  %531 = vmatprep.subr.bf16.mxu0 %v416
  %532 = vmatpush1.bf16.msra.mxu0 %v415
  %533 = vmatprep.subr.bf16.mxu0 %v420
  %534 = vmatpush1.bf16.msra.mxu0 %v419
  %535 = vmatprep.subr.bf16.mxu0 %v424
  %536 = vmatpush1.bf16.msra.mxu0 %v423
  %537 = vmatprep.subr.bf16.mxu0 %v428
  %538 = vmatpush1.bf16.msra.mxu0 %v427
  %539 = vmatprep.subr.bf16.mxu0 %v432
  %540 = vmatpush1.bf16.msra.mxu0 %v431
  %541 = vmatprep.subr.bf16.mxu0 %v436
  %542 = vmatpush1.bf16.msra.mxu0 %v435
  %543 = vmatprep.subr.bf16.mxu0 %v440
  %544 = vmatpush1.bf16.msra.mxu0 %v439
  %545 = vmatprep.subr.bf16.mxu0 %v444
  %546 = vmatpush1.bf16.msra.mxu0 %v443
  %547 = vmatprep.subr.bf16.mxu0 %v448
  %548 = vmatpush1.bf16.msra.mxu0 %v447
  %549 = vmatprep.subr.bf16.mxu0 %v452
  %550 = vmatpush1.bf16.msra.mxu0 %v451
  %551 = vmatprep.mubr.bf16.mxu0 %v168
  %552 = vmatmul.mubr.bf16.gmra.mrb[0].mxu0 %v167
  %v553 = vpop.f32.mrb[0].mxu0
  %v554 = vadd.f32 %v102, %v553
  %v555 = vpop.f32.mrb[0].mxu0
  %v556 = vadd.f32 %v106, %v555
  %v557 = vpop.f32.mrb[0].mxu0
  %v558 = vadd.f32 %v102, %v557
  %v559 = vpop.f32.mrb[0].mxu0
  %v560 = vadd.f32 %v106, %v559
  %561 = vmatprep.mubr.bf16.mxu0 %v170
  %562 = vmatmul.mubr.bf16.gmra.mrb[0].mxu0 %v169
  %v563 = vpop.f32.mrb[0].mxu0
  %v564 = vadd.f32 %v102, %v563
  %v565 = vpop.f32.mrb[0].mxu0
  %v566 = vadd.f32 %v106, %v565
  %v567 = vpop.f32.mrb[0].mxu0
  %v568 = vadd.f32 %v102, %v567
  %v569 = vpop.f32.mrb[0].mxu0
  %v570 = vadd.f32 %v106, %v569
  %571 = vmatprep.mubr.bf16.mxu0 %v172
  %572 = vmatmul.mubr.bf16.gmra.mrb[0].mxu0 %v171
  %v573 = vpop.f32.mrb[0].mxu0
  %v574 = vadd.f32 %v102, %v573
  %v575 = vpop.f32.mrb[0].mxu0
  %v576 = vadd.f32 %v106, %v575
  %v577 = vpop.f32.mrb[0].mxu0
  %v578 = vadd.f32 %v102, %v577
  %v579 = vpop.f32.mrb[0].mxu0
  %v580 = vadd.f32 %v106, %v579
  %581 = vmatprep.mubr.bf16.mxu0 %v174
  %582 = vmatmul.mubr.bf16.gmra.mrb[0].mxu0 %v173
  %v583 = vpop.f32.mrb[0].mxu0
  %v584 = vadd.f32 %v102, %v583
  %v585 = vpop.f32.mrb[0].mxu0
  %v586 = vadd.f32 %v106, %v585
  %v587 = vpop.f32.mrb[0].mxu0
  %v588 = vadd.f32 %v102, %v587
  %v589 = vpop.f32.mrb[0].mxu0
  %v590 = vadd.f32 %v106, %v589
  %591 = vmatprep.mubr.bf16.mxu0 %v176
  %592 = vmatmul.mubr.bf16.gmra.mrb[0].mxu0 %v175
  %v593 = vpop.f32.mrb[0].mxu0
  %v594 = vadd.f32 %v102, %v593
  %v595 = vpop.f32.mrb[0].mxu0
  %v596 = vadd.f32 %v106, %v595
  %v597 = vpop.f32.mrb[0].mxu0
  %v598 = vadd.f32 %v102, %v597
  %v599 = vpop.f32.mrb[0].mxu0
  %v600 = vadd.f32 %v106, %v599
  %601 = vmatprep.mubr.bf16.mxu0 %v178
  %602 = vmatmul.mubr.bf16.gmra.mrb[0].mxu0 %v177
  %v603 = vpop.f32.mrb[0].mxu0
  %v604 = vadd.f32 %v102, %v603
  %v605 = vpop.f32.mrb[0].mxu0
  %v606 = vadd.f32 %v106, %v605
  %v607 = vpop.f32.mrb[0].mxu0
  %v608 = vadd.f32 %v102, %v607
  %v609 = vpop.f32.mrb[0].mxu0
  %v610 = vadd.f32 %v106, %v609
  %611 = vmatprep.mubr.bf16.mxu0 %v180
  %612 = vmatmul.mubr.bf16.gmra.mrb[0].mxu0 %v179
  %v613 = vpop.f32.mrb[0].mxu0
  %v614 = vadd.f32 %v102, %v613
  %v615 = vpop.f32.mrb[0].mxu0
  %v616 = vadd.f32 %v106, %v615
  %v617 = vpop.f32.mrb[0].mxu0
  %v618 = vadd.f32 %v102, %v617
  %v619 = vpop.f32.mrb[0].mxu0
  %v620 = vadd.f32 %v106, %v619
  %621 = vmatprep.mubr.bf16.mxu0 %v182
  %622 = vmatmul.mubr.bf16.gmra.mrb[0].mxu0 %v181
  %v623 = vpop.f32.mrb[0].mxu0
  %v624 = vadd.f32 %v102, %v623
  %v625 = vpop.f32.mrb[0].mxu0
  %v626 = vadd.f32 %v106, %v625
  %v627 = vpop.f32.mrb[0].mxu0
  %v628 = vadd.f32 %v102, %v627
  %v629 = vpop.f32.mrb[0].mxu0
  %v630 = vadd.f32 %v106, %v629
  %631 = vdwg.mxu0
  %632 = vmatprep.subr.bf16.mxu0 %v394
  %633 = vmatpush1.bf16.msra.mxu0 %v393
  %634 = vmatprep.subr.bf16.mxu0 %v398
  %635 = vmatpush1.bf16.msra.mxu0 %v397
  %636 = vmatprep.subr.bf16.mxu0 %v402
  %637 = vmatpush1.bf16.msra.mxu0 %v401
  %638 = vmatprep.subr.bf16.mxu0 %v406
  %639 = vmatpush1.bf16.msra.mxu0 %v405
  %640 = vmatprep.subr.bf16.mxu0 %v410
  %641 = vmatpush1.bf16.msra.mxu0 %v409
  %642 = vmatprep.subr.bf16.mxu0 %v414
  %643 = vmatpush1.bf16.msra.mxu0 %v413
  %644 = vmatprep.subr.bf16.mxu0 %v418
  %645 = vmatpush1.bf16.msra.mxu0 %v417
  %646 = vmatprep.subr.bf16.mxu0 %v422
  %647 = vmatpush1.bf16.msra.mxu0 %v421
  %648 = vmatprep.subr.bf16.mxu0 %v426
  %649 = vmatpush1.bf16.msra.mxu0 %v425
  %650 = vmatprep.subr.bf16.mxu0 %v430
  %651 = vmatpush1.bf16.msra.mxu0 %v429
  %652 = vmatprep.subr.bf16.mxu0 %v434
  %653 = vmatpush1.bf16.msra.mxu0 %v433
  %654 = vmatprep.subr.bf16.mxu0 %v438
  %655 = vmatpush1.bf16.msra.mxu0 %v437
  %656 = vmatprep.subr.bf16.mxu0 %v442
  %657 = vmatpush1.bf16.msra.mxu0 %v441
  %658 = vmatprep.subr.bf16.mxu0 %v446
  %659 = vmatpush1.bf16.msra.mxu0 %v445
  %660 = vmatprep.subr.bf16.mxu0 %v450
  %661 = vmatpush1.bf16.msra.mxu0 %v449
  %662 = vmatprep.subr.bf16.mxu0 %v454
  %663 = vmatpush1.bf16.msra.mxu0 %v453
  %664 = vmatprep.mubr.bf16.mxu0 %v168
  %665 = vmatmul.mubr.bf16.gmra.mrb[0].mxu0 %v167
  %v666 = vpop.f32.mrb[0].mxu0
  %v667 = vadd.f32 %v110, %v666
  %v668 = vpop.f32.mrb[0].mxu0
  %v669 = vadd.f32 %v114, %v668
  %v670 = vpop.f32.mrb[0].mxu0
  %v671 = vadd.f32 %v110, %v670
  %v672 = vpop.f32.mrb[0].mxu0
  %v673 = vadd.f32 %v114, %v672
  %674 = vmatprep.mubr.bf16.mxu0 %v170
  %675 = vmatmul.mubr.bf16.gmra.mrb[0].mxu0 %v169
  %v676 = vpop.f32.mrb[0].mxu0
  %v677 = vadd.f32 %v110, %v676
  %v678 = vpop.f32.mrb[0].mxu0
  %v679 = vadd.f32 %v114, %v678
  %v680 = vpop.f32.mrb[0].mxu0
  %v681 = vadd.f32 %v110, %v680
  %v682 = vpop.f32.mrb[0].mxu0
  %v683 = vadd.f32 %v114, %v682
  %684 = vmatprep.mubr.bf16.mxu0 %v172
  %685 = vmatmul.mubr.bf16.gmra.mrb[0].mxu0 %v171
  %v686 = vpop.f32.mrb[0].mxu0
  %v687 = vadd.f32 %v110, %v686
  %v688 = vpop.f32.mrb[0].mxu0
  %v689 = vadd.f32 %v114, %v688
  %v690 = vpop.f32.mrb[0].mxu0
  %v691 = vadd.f32 %v110, %v690
  %v692 = vpop.f32.mrb[0].mxu0
  %v693 = vadd.f32 %v114, %v692
  %694 = vmatprep.mubr.bf16.mxu0 %v174
  %695 = vmatmul.mubr.bf16.gmra.mrb[0].mxu0 %v173
  %v696 = vpop.f32.mrb[0].mxu0
  %v697 = vadd.f32 %v110, %v696
  %v698 = vpop.f32.mrb[0].mxu0
  %v699 = vadd.f32 %v114, %v698
  %v700 = vpop.f32.mrb[0].mxu0
  %v701 = vadd.f32 %v110, %v700
  %v702 = vpop.f32.mrb[0].mxu0
  %v703 = vadd.f32 %v114, %v702
  %704 = vmatprep.mubr.bf16.mxu0 %v176
  %705 = vmatmul.mubr.bf16.gmra.mrb[0].mxu0 %v175
  %v706 = vpop.f32.mrb[0].mxu0
  %v707 = vadd.f32 %v110, %v706
  %v708 = vpop.f32.mrb[0].mxu0
  %v709 = vadd.f32 %v114, %v708
  %v710 = vpop.f32.mrb[0].mxu0
  %v711 = vadd.f32 %v110, %v710
  %v712 = vpop.f32.mrb[0].mxu0
  %v713 = vadd.f32 %v114, %v712
  %714 = vmatprep.mubr.bf16.mxu0 %v178
  %715 = vmatmul.mubr.bf16.gmra.mrb[0].mxu0 %v177
  %v716 = vpop.f32.mrb[0].mxu0
  %v717 = vadd.f32 %v110, %v716
  %v718 = vpop.f32.mrb[0].mxu0
  %v719 = vadd.f32 %v114, %v718
  %v720 = vpop.f32.mrb[0].mxu0
  %v721 = vadd.f32 %v110, %v720
  %v722 = vpop.f32.mrb[0].mxu0
  %v723 = vadd.f32 %v114, %v722
  %724 = vmatprep.mubr.bf16.mxu0 %v180
  %725 = vmatmul.mubr.bf16.gmra.mrb[0].mxu0 %v179
  %v726 = vpop.f32.mrb[0].mxu0
  %v727 = vadd.f32 %v110, %v726
  %v728 = vpop.f32.mrb[0].mxu0
  %v729 = vadd.f32 %v114, %v728
  %v730 = vpop.f32.mrb[0].mxu0
  %v731 = vadd.f32 %v110, %v730
  %v732 = vpop.f32.mrb[0].mxu0
  %v733 = vadd.f32 %v114, %v732
  %734 = vmatprep.mubr.bf16.mxu0 %v182
  %735 = vmatmul.mubr.bf16.gmra.mrb[0].mxu0 %v181
  %v736 = vpop.f32.mrb[0].mxu0
  %v737 = vadd.f32 %v110, %v736
  %v738 = vpop.f32.mrb[0].mxu0
  %v739 = vadd.f32 %v114, %v738
  %v740 = vpop.f32.mrb[0].mxu0
  %v741 = vadd.f32 %v110, %v740
  %v742 = vpop.f32.mrb[0].mxu0
  %v743 = vadd.f32 %v114, %v742
  %744 = vdwg.mxu0
  %v745 = vmax.f32 %v554, 0.0
  %v746 = vmax.f32 %v556, 0.0
  %v747 = vmax.f32 %v667, 0.0
  %v748 = vmax.f32 %v669, 0.0
  %v749 = vmax.f32 %v558, 0.0
  %v750 = vmax.f32 %v560, 0.0
  %v751 = vmax.f32 %v671, 0.0
  %v752 = vmax.f32 %v673, 0.0
  %v753 = vmax.f32 %v564, 0.0
  %v754 = vmax.f32 %v566, 0.0
  %v755 = vmax.f32 %v677, 0.0
  %v756 = vmax.f32 %v679, 0.0
  %v757 = vmax.f32 %v568, 0.0
  %v758 = vmax.f32 %v570, 0.0
  %v759 = vmax.f32 %v681, 0.0
  %v760 = vmax.f32 %v683, 0.0
  %v761 = vmax.f32 %v574, 0.0
  %v762 = vmax.f32 %v576, 0.0
  %v763 = vmax.f32 %v687, 0.0
  %v764 = vmax.f32 %v689, 0.0
  %v765 = vmax.f32 %v578, 0.0
  %v766 = vmax.f32 %v580, 0.0
  %v767 = vmax.f32 %v691, 0.0
  %v768 = vmax.f32 %v693, 0.0
  %v769 = vmax.f32 %v584, 0.0
  %v770 = vmax.f32 %v586, 0.0
  %v771 = vmax.f32 %v697, 0.0
  %v772 = vmax.f32 %v699, 0.0
  %v773 = vmax.f32 %v588, 0.0
  %v774 = vmax.f32 %v590, 0.0
  %v775 = vmax.f32 %v701, 0.0
  %v776 = vmax.f32 %v703, 0.0
  %v777 = vmax.f32 %v594, 0.0
  %v778 = vmax.f32 %v596, 0.0
  %v779 = vmax.f32 %v707, 0.0
  %v780 = vmax.f32 %v709, 0.0
  %v781 = vmax.f32 %v598, 0.0
  %v782 = vmax.f32 %v600, 0.0
  %v783 = vmax.f32 %v711, 0.0
  %v784 = vmax.f32 %v713, 0.0
  %v785 = vmax.f32 %v604, 0.0
  %v786 = vmax.f32 %v606, 0.0
  %v787 = vmax.f32 %v717, 0.0
  %v788 = vmax.f32 %v719, 0.0
  %v789 = vmax.f32 %v608, 0.0
  %v790 = vmax.f32 %v610, 0.0
  %v791 = vmax.f32 %v721, 0.0
  %v792 = vmax.f32 %v723, 0.0
  %v793 = vmax.f32 %v614, 0.0
  %v794 = vmax.f32 %v616, 0.0
  %v795 = vmax.f32 %v727, 0.0
  %v796 = vmax.f32 %v729, 0.0
  %v797 = vmax.f32 %v618, 0.0
  %v798 = vmax.f32 %v620, 0.0
  %v799 = vmax.f32 %v731, 0.0
  %v800 = vmax.f32 %v733, 0.0
  %v801 = vmax.f32 %v624, 0.0
  %v802 = vmax.f32 %v626, 0.0
  %v803 = vmax.f32 %v737, 0.0
  %v804 = vmax.f32 %v739, 0.0
  %v805 = vmax.f32 %v628, 0.0
  %v806 = vmax.f32 %v630, 0.0
  %v807 = vmax.f32 %v741, 0.0
  %v808 = vmax.f32 %v743, 0.0
  %v809 = vpack.c.bf16 %v749, %v745
  %v810 = vpack.c.bf16 %v750, %v746
  %v811 = vpack.c.bf16 %v751, %v747
  %v812 = vpack.c.bf16 %v752, %v748
  %v813 = vpack.c.bf16 %v757, %v753
  %v814 = vpack.c.bf16 %v758, %v754
  %v815 = vpack.c.bf16 %v759, %v755
  %v816 = vpack.c.bf16 %v760, %v756
  %v817 = vpack.c.bf16 %v765, %v761
  %v818 = vpack.c.bf16 %v766, %v762
  %v819 = vpack.c.bf16 %v767, %v763
  %v820 = vpack.c.bf16 %v768, %v764
  %v821 = vpack.c.bf16 %v773, %v769
  %v822 = vpack.c.bf16 %v774, %v770
  %v823 = vpack.c.bf16 %v775, %v771
  %v824 = vpack.c.bf16 %v776, %v772
  %v825 = vpack.c.bf16 %v781, %v777
  %v826 = vpack.c.bf16 %v782, %v778
  %v827 = vpack.c.bf16 %v783, %v779
  %v828 = vpack.c.bf16 %v784, %v780
  %v829 = vpack.c.bf16 %v789, %v785
  %v830 = vpack.c.bf16 %v790, %v786
  %v831 = vpack.c.bf16 %v791, %v787
  %v832 = vpack.c.bf16 %v792, %v788
  %v833 = vpack.c.bf16 %v797, %v793
  %v834 = vpack.c.bf16 %v798, %v794
  %v835 = vpack.c.bf16 %v799, %v795
  %v836 = vpack.c.bf16 %v800, %v796
  %v837 = vpack.c.bf16 %v805, %v801
  %v838 = vpack.c.bf16 %v806, %v802
  %v839 = vpack.c.bf16 %v807, %v803
  %v840 = vpack.c.bf16 %v808, %v804
  %v841 = vld [vmem:[%s3] sm:$0xff]
  %v842 = vld [vmem:[%s3 + $0x8] sm:$0xff]
  %v843 = vld [vmem:[%s3 + $0x10] sm:$0xff]
  %v844 = vld [vmem:[%s3 + $0x18] sm:$0xff]
  %v845 = vld [vmem:[%s3 + $0x20] sm:$0xff]
  %v846 = vld [vmem:[%s3 + $0x28] sm:$0xff]
  %v847 = vld [vmem:[%s3 + $0x30] sm:$0xff]
  %v848 = vld [vmem:[%s3 + $0x38] sm:$0xff]
  %v849 = vld [vmem:[%s3 + $0x40] sm:$0xff]
  %v850 = vld [vmem:[%s3 + $0x48] sm:$0xff]
  %v851 = vld [vmem:[%s3 + $0x50] sm:$0xff]
  %v852 = vld [vmem:[%s3 + $0x58] sm:$0xff]
  %v853 = vld [vmem:[%s3 + $0x60] sm:$0xff]
  %v854 = vld [vmem:[%s3 + $0x68] sm:$0xff]
  %v855 = vld [vmem:[%s3 + $0x70] sm:$0xff]
  %v856 = vld [vmem:[%s3 + $0x78] sm:$0xff]
  %v857 = vld [vmem:[%s3 + $0x80] sm:$0xff]
  %v858 = vld [vmem:[%s3 + $0x88] sm:$0xff]
  %v859 = vld [vmem:[%s3 + $0x90] sm:$0xff]
  %v860 = vld [vmem:[%s3 + $0x98] sm:$0xff]
  %v861 = vld [vmem:[%s3 + $0xa0] sm:$0xff]
  %v862 = vld [vmem:[%s3 + $0xa8] sm:$0xff]
  %v863 = vld [vmem:[%s3 + $0xb0] sm:$0xff]
  %v864 = vld [vmem:[%s3 + $0xb8] sm:$0xff]
  %v865 = vld [vmem:[%s3 + $0xc0] sm:$0xff]
  %v866 = vld [vmem:[%s3 + $0xc8] sm:$0xff]
  %v867 = vld [vmem:[%s3 + $0xd0] sm:$0xff]
  %v868 = vld [vmem:[%s3 + $0xd8] sm:$0xff]
  %v869 = vld [vmem:[%s3 + $0xe0] sm:$0xff]
  %v870 = vld [vmem:[%s3 + $0xe8] sm:$0xff]
  %v871 = vld [vmem:[%s3 + $0xf0] sm:$0xff]
  %v872 = vld [vmem:[%s3 + $0xf8] sm:$0xff]
  %v873 = vld [vmem:[%s3 + $0x100] sm:$0xff]
  %v874 = vld [vmem:[%s3 + $0x108] sm:$0xff]
  %v875 = vld [vmem:[%s3 + $0x110] sm:$0xff]
  %v876 = vld [vmem:[%s3 + $0x118] sm:$0xff]
  %v877 = vld [vmem:[%s3 + $0x120] sm:$0xff]
  %v878 = vld [vmem:[%s3 + $0x128] sm:$0xff]
  %v879 = vld [vmem:[%s3 + $0x130] sm:$0xff]
  %v880 = vld [vmem:[%s3 + $0x138] sm:$0xff]
  %v881 = vld [vmem:[%s3 + $0x140] sm:$0xff]
  %v882 = vld [vmem:[%s3 + $0x148] sm:$0xff]
  %v883 = vld [vmem:[%s3 + $0x150] sm:$0xff]
  %v884 = vld [vmem:[%s3 + $0x158] sm:$0xff]
  %v885 = vld [vmem:[%s3 + $0x160] sm:$0xff]
  %v886 = vld [vmem:[%s3 + $0x168] sm:$0xff]
  %v887 = vld [vmem:[%s3 + $0x170] sm:$0xff]
  %v888 = vld [vmem:[%s3 + $0x178] sm:$0xff]
  %v889 = vld [vmem:[%s3 + $0x180] sm:$0xff]
  %v890 = vld [vmem:[%s3 + $0x188] sm:$0xff]
  %v891 = vld [vmem:[%s3 + $0x190] sm:$0xff]
  %v892 = vld [vmem:[%s3 + $0x198] sm:$0xff]
  %v893 = vld [vmem:[%s3 + $0x1a0] sm:$0xff]
  %v894 = vld [vmem:[%s3 + $0x1a8] sm:$0xff]
  %v895 = vld [vmem:[%s3 + $0x1b0] sm:$0xff]
  %v896 = vld [vmem:[%s3 + $0x1b8] sm:$0xff]
  %v897 = vld [vmem:[%s3 + $0x1c0] sm:$0xff]
  %v898 = vld [vmem:[%s3 + $0x1c8] sm:$0xff]
  %v899 = vld [vmem:[%s3 + $0x1d0] sm:$0xff]
  %v900 = vld [vmem:[%s3 + $0x1d8] sm:$0xff]
  %v901 = vld [vmem:[%s3 + $0x1e0] sm:$0xff]
  %v902 = vld [vmem:[%s3 + $0x1e8] sm:$0xff]
  %v903 = vld [vmem:[%s3 + $0x1f0] sm:$0xff]
  %v904 = vld [vmem:[%s3 + $0x1f8] sm:$0xff]
  %v905 = vld [vmem:[%s3 + $0x200] sm:$0xff]
  %v906 = vld [vmem:[%s3 + $0x208] sm:$0xff]
  %v907 = vld [vmem:[%s3 + $0x210] sm:$0xff]
  %v908 = vld [vmem:[%s3 + $0x218] sm:$0xff]
  %v909 = vld [vmem:[%s3 + $0x220] sm:$0xff]
  %v910 = vld [vmem:[%s3 + $0x228] sm:$0xff]
  %v911 = vld [vmem:[%s3 + $0x230] sm:$0xff]
  %v912 = vld [vmem:[%s3 + $0x238] sm:$0xff]
  %v913 = vld [vmem:[%s3 + $0x240] sm:$0xff]
  %v914 = vld [vmem:[%s3 + $0x248] sm:$0xff]
  %v915 = vld [vmem:[%s3 + $0x250] sm:$0xff]
  %v916 = vld [vmem:[%s3 + $0x258] sm:$0xff]
  %v917 = vld [vmem:[%s3 + $0x260] sm:$0xff]
  %v918 = vld [vmem:[%s3 + $0x268] sm:$0xff]
  %v919 = vld [vmem:[%s3 + $0x270] sm:$0xff]
  %v920 = vld [vmem:[%s3 + $0x278] sm:$0xff]
  %v921 = vld [vmem:[%s3 + $0x280] sm:$0xff]
  %v922 = vld [vmem:[%s3 + $0x288] sm:$0xff]
  %v923 = vld [vmem:[%s3 + $0x290] sm:$0xff]
  %v924 = vld [vmem:[%s3 + $0x298] sm:$0xff]
  %v925 = vld [vmem:[%s3 + $0x2a0] sm:$0xff]
  %v926 = vld [vmem:[%s3 + $0x2a8] sm:$0xff]
  %v927 = vld [vmem:[%s3 + $0x2b0] sm:$0xff]
  %v928 = vld [vmem:[%s3 + $0x2b8] sm:$0xff]
  %v929 = vld [vmem:[%s3 + $0x2c0] sm:$0xff]
  %v930 = vld [vmem:[%s3 + $0x2c8] sm:$0xff]
  %v931 = vld [vmem:[%s3 + $0x2d0] sm:$0xff]
  %v932 = vld [vmem:[%s3 + $0x2d8] sm:$0xff]
  %v933 = vld [vmem:[%s3 + $0x2e0] sm:$0xff]
  %v934 = vld [vmem:[%s3 + $0x2e8] sm:$0xff]
  %v935 = vld [vmem:[%s3 + $0x2f0] sm:$0xff]
  %v936 = vld [vmem:[%s3 + $0x2f8] sm:$0xff]
  %v937 = vld [vmem:[%s3 + $0x300] sm:$0xff]
  %v938 = vld [vmem:[%s3 + $0x308] sm:$0xff]
  %v939 = vld [vmem:[%s3 + $0x310] sm:$0xff]
  %v940 = vld [vmem:[%s3 + $0x318] sm:$0xff]
  %v941 = vld [vmem:[%s3 + $0x320] sm:$0xff]
  %v942 = vld [vmem:[%s3 + $0x328] sm:$0xff]
  %v943 = vld [vmem:[%s3 + $0x330] sm:$0xff]
  %v944 = vld [vmem:[%s3 + $0x338] sm:$0xff]
  %v945 = vld [vmem:[%s3 + $0x340] sm:$0xff]
  %v946 = vld [vmem:[%s3 + $0x348] sm:$0xff]
  %v947 = vld [vmem:[%s3 + $0x350] sm:$0xff]
  %v948 = vld [vmem:[%s3 + $0x358] sm:$0xff]
  %v949 = vld [vmem:[%s3 + $0x360] sm:$0xff]
  %v950 = vld [vmem:[%s3 + $0x368] sm:$0xff]
  %v951 = vld [vmem:[%s3 + $0x370] sm:$0xff]
  %v952 = vld [vmem:[%s3 + $0x378] sm:$0xff]
  %v953 = vld [vmem:[%s3 + $0x380] sm:$0xff]
  %v954 = vld [vmem:[%s3 + $0x388] sm:$0xff]
  %v955 = vld [vmem:[%s3 + $0x390] sm:$0xff]
  %v956 = vld [vmem:[%s3 + $0x398] sm:$0xff]
  %v957 = vld [vmem:[%s3 + $0x3a0] sm:$0xff]
  %v958 = vld [vmem:[%s3 + $0x3a8] sm:$0xff]
  %v959 = vld [vmem:[%s3 + $0x3b0] sm:$0xff]
  %v960 = vld [vmem:[%s3 + $0x3b8] sm:$0xff]
  %v961 = vld [vmem:[%s3 + $0x3c0] sm:$0xff]
  %v962 = vld [vmem:[%s3 + $0x3c8] sm:$0xff]
  %v963 = vld [vmem:[%s3 + $0x3d0] sm:$0xff]
  %v964 = vld [vmem:[%s3 + $0x3d8] sm:$0xff]
  %v965 = vld [vmem:[%s3 + $0x3e0] sm:$0xff]
  %v966 = vld [vmem:[%s3 + $0x3e8] sm:$0xff]
  %v967 = vld [vmem:[%s3 + $0x3f0] sm:$0xff]
  %v968 = vld [vmem:[%s3 + $0x3f8] sm:$0xff]
  %v969 = vld [vmem:[%s3 + $0x400] sm:$0xff]
  %v970 = vld [vmem:[%s3 + $0x408] sm:$0xff]
  %v971 = vld [vmem:[%s3 + $0x410] sm:$0xff]
  %v972 = vld [vmem:[%s3 + $0x418] sm:$0xff]
  %v973 = vld [vmem:[%s3 + $0x420] sm:$0xff]
  %v974 = vld [vmem:[%s3 + $0x428] sm:$0xff]
  %v975 = vld [vmem:[%s3 + $0x430] sm:$0xff]
  %v976 = vld [vmem:[%s3 + $0x438] sm:$0xff]
  %v977 = vld [vmem:[%s3 + $0x440] sm:$0xff]
  %v978 = vld [vmem:[%s3 + $0x448] sm:$0xff]
  %v979 = vld [vmem:[%s3 + $0x450] sm:$0xff]
  %v980 = vld [vmem:[%s3 + $0x458] sm:$0xff]
  %v981 = vld [vmem:[%s3 + $0x460] sm:$0xff]
  %v982 = vld [vmem:[%s3 + $0x468] sm:$0xff]
  %v983 = vld [vmem:[%s3 + $0x470] sm:$0xff]
  %v984 = vld [vmem:[%s3 + $0x478] sm:$0xff]
  %v985 = vld [vmem:[%s3 + $0x480] sm:$0xff]
  %v986 = vld [vmem:[%s3 + $0x488] sm:$0xff]
  %v987 = vld [vmem:[%s3 + $0x490] sm:$0xff]
  %v988 = vld [vmem:[%s3 + $0x498] sm:$0xff]
  %v989 = vld [vmem:[%s3 + $0x4a0] sm:$0xff]
  %v990 = vld [vmem:[%s3 + $0x4a8] sm:$0xff]
  %v991 = vld [vmem:[%s3 + $0x4b0] sm:$0xff]
  %v992 = vld [vmem:[%s3 + $0x4b8] sm:$0xff]
  %v993 = vld [vmem:[%s3 + $0x4c0] sm:$0xff]
  %v994 = vld [vmem:[%s3 + $0x4c8] sm:$0xff]
  %v995 = vld [vmem:[%s3 + $0x4d0] sm:$0xff]
  %v996 = vld [vmem:[%s3 + $0x4d8] sm:$0xff]
  %v997 = vld [vmem:[%s3 + $0x4e0] sm:$0xff]
  %v998 = vld [vmem:[%s3 + $0x4e8] sm:$0xff]
  %v999 = vld [vmem:[%s3 + $0x4f0] sm:$0xff]
  %v1000 = vld [vmem:[%s3 + $0x4f8] sm:$0xff]
  %v1001 = vld [vmem:[%s3 + $0x500] sm:$0xff]
  %v1002 = vld [vmem:[%s3 + $0x508] sm:$0xff]
  %v1003 = vld [vmem:[%s3 + $0x510] sm:$0xff]
  %v1004 = vld [vmem:[%s3 + $0x518] sm:$0xff]
  %v1005 = vld [vmem:[%s3 + $0x520] sm:$0xff]
  %v1006 = vld [vmem:[%s3 + $0x528] sm:$0xff]
  %v1007 = vld [vmem:[%s3 + $0x530] sm:$0xff]
  %v1008 = vld [vmem:[%s3 + $0x538] sm:$0xff]
  %v1009 = vld [vmem:[%s3 + $0x540] sm:$0xff]
  %v1010 = vld [vmem:[%s3 + $0x548] sm:$0xff]
  %v1011 = vld [vmem:[%s3 + $0x550] sm:$0xff]
  %v1012 = vld [vmem:[%s3 + $0x558] sm:$0xff]
  %v1013 = vld [vmem:[%s3 + $0x560] sm:$0xff]
  %v1014 = vld [vmem:[%s3 + $0x568] sm:$0xff]
  %v1015 = vld [vmem:[%s3 + $0x570] sm:$0xff]
  %v1016 = vld [vmem:[%s3 + $0x578] sm:$0xff]
  %v1017 = vld [vmem:[%s3 + $0x580] sm:$0xff]
  %v1018 = vld [vmem:[%s3 + $0x588] sm:$0xff]
  %v1019 = vld [vmem:[%s3 + $0x590] sm:$0xff]
  %v1020 = vld [vmem:[%s3 + $0x598] sm:$0xff]
  %v1021 = vld [vmem:[%s3 + $0x5a0] sm:$0xff]
  %v1022 = vld [vmem:[%s3 + $0x5a8] sm:$0xff]
  %v1023 = vld [vmem:[%s3 + $0x5b0] sm:$0xff]
  %v1024 = vld [vmem:[%s3 + $0x5b8] sm:$0xff]
  %v1025 = vld [vmem:[%s3 + $0x5c0] sm:$0xff]
  %v1026 = vld [vmem:[%s3 + $0x5c8] sm:$0xff]
  %v1027 = vld [vmem:[%s3 + $0x5d0] sm:$0xff]
  %v1028 = vld [vmem:[%s3 + $0x5d8] sm:$0xff]
  %v1029 = vld [vmem:[%s3 + $0x5e0] sm:$0xff]
  %v1030 = vld [vmem:[%s3 + $0x5e8] sm:$0xff]
  %v1031 = vld [vmem:[%s3 + $0x5f0] sm:$0xff]
  %v1032 = vld [vmem:[%s3 + $0x5f8] sm:$0xff]
  %v1033 = vld [vmem:[%s3 + $0x600] sm:$0xff]
  %v1034 = vld [vmem:[%s3 + $0x608] sm:$0xff]
  %v1035 = vld [vmem:[%s3 + $0x610] sm:$0xff]
  %v1036 = vld [vmem:[%s3 + $0x618] sm:$0xff]
  %v1037 = vld [vmem:[%s3 + $0x620] sm:$0xff]
  %v1038 = vld [vmem:[%s3 + $0x628] sm:$0xff]
  %v1039 = vld [vmem:[%s3 + $0x630] sm:$0xff]
  %v1040 = vld [vmem:[%s3 + $0x638] sm:$0xff]
  %v1041 = vld [vmem:[%s3 + $0x640] sm:$0xff]
  %v1042 = vld [vmem:[%s3 + $0x648] sm:$0xff]
  %v1043 = vld [vmem:[%s3 + $0x650] sm:$0xff]
  %v1044 = vld [vmem:[%s3 + $0x658] sm:$0xff]
  %v1045 = vld [vmem:[%s3 + $0x660] sm:$0xff]
  %v1046 = vld [vmem:[%s3 + $0x668] sm:$0xff]
  %v1047 = vld [vmem:[%s3 + $0x670] sm:$0xff]
  %v1048 = vld [vmem:[%s3 + $0x678] sm:$0xff]
  %v1049 = vld [vmem:[%s3 + $0x680] sm:$0xff]
  %v1050 = vld [vmem:[%s3 + $0x688] sm:$0xff]
  %v1051 = vld [vmem:[%s3 + $0x690] sm:$0xff]
  %v1052 = vld [vmem:[%s3 + $0x698] sm:$0xff]
  %v1053 = vld [vmem:[%s3 + $0x6a0] sm:$0xff]
  %v1054 = vld [vmem:[%s3 + $0x6a8] sm:$0xff]
  %v1055 = vld [vmem:[%s3 + $0x6b0] sm:$0xff]
  %v1056 = vld [vmem:[%s3 + $0x6b8] sm:$0xff]
  %v1057 = vld [vmem:[%s3 + $0x6c0] sm:$0xff]
  %v1058 = vld [vmem:[%s3 + $0x6c8] sm:$0xff]
  %v1059 = vld [vmem:[%s3 + $0x6d0] sm:$0xff]
  %v1060 = vld [vmem:[%s3 + $0x6d8] sm:$0xff]
  %v1061 = vld [vmem:[%s3 + $0x6e0] sm:$0xff]
  %v1062 = vld [vmem:[%s3 + $0x6e8] sm:$0xff]
  %v1063 = vld [vmem:[%s3 + $0x6f0] sm:$0xff]
  %v1064 = vld [vmem:[%s3 + $0x6f8] sm:$0xff]
  %v1065 = vld [vmem:[%s3 + $0x700] sm:$0xff]
  %v1066 = vld [vmem:[%s3 + $0x708] sm:$0xff]
  %v1067 = vld [vmem:[%s3 + $0x710] sm:$0xff]
  %v1068 = vld [vmem:[%s3 + $0x718] sm:$0xff]
  %v1069 = vld [vmem:[%s3 + $0x720] sm:$0xff]
  %v1070 = vld [vmem:[%s3 + $0x728] sm:$0xff]
  %v1071 = vld [vmem:[%s3 + $0x730] sm:$0xff]
  %v1072 = vld [vmem:[%s3 + $0x738] sm:$0xff]
  %v1073 = vld [vmem:[%s3 + $0x740] sm:$0xff]
  %v1074 = vld [vmem:[%s3 + $0x748] sm:$0xff]
  %v1075 = vld [vmem:[%s3 + $0x750] sm:$0xff]
  %v1076 = vld [vmem:[%s3 + $0x758] sm:$0xff]
  %v1077 = vld [vmem:[%s3 + $0x760] sm:$0xff]
  %v1078 = vld [vmem:[%s3 + $0x768] sm:$0xff]
  %v1079 = vld [vmem:[%s3 + $0x770] sm:$0xff]
  %v1080 = vld [vmem:[%s3 + $0x778] sm:$0xff]
  %v1081 = vld [vmem:[%s3 + $0x780] sm:$0xff]
  %v1082 = vld [vmem:[%s3 + $0x788] sm:$0xff]
  %v1083 = vld [vmem:[%s3 + $0x790] sm:$0xff]
  %v1084 = vld [vmem:[%s3 + $0x798] sm:$0xff]
  %v1085 = vld [vmem:[%s3 + $0x7a0] sm:$0xff]
  %v1086 = vld [vmem:[%s3 + $0x7a8] sm:$0xff]
  %v1087 = vld [vmem:[%s3 + $0x7b0] sm:$0xff]
  %v1088 = vld [vmem:[%s3 + $0x7b8] sm:$0xff]
  %v1089 = vld [vmem:[%s3 + $0x7c0] sm:$0xff]
  %v1090 = vld [vmem:[%s3 + $0x7c8] sm:$0xff]
  %v1091 = vld [vmem:[%s3 + $0x7d0] sm:$0xff]
  %v1092 = vld [vmem:[%s3 + $0x7d8] sm:$0xff]
  %v1093 = vld [vmem:[%s3 + $0x7e0] sm:$0xff]
  %v1094 = vld [vmem:[%s3 + $0x7e8] sm:$0xff]
  %v1095 = vld [vmem:[%s3 + $0x7f0] sm:$0xff]
  %v1096 = vld [vmem:[%s3 + $0x7f8] sm:$0xff]
  %v1353 = vunpack.c.l.b16 %v841
  %v1354 = vunpack.c.h.b16 %v841
  %v1355 = vunpack.c.l.b16 %v842
  %v1356 = vunpack.c.h.b16 %v842
  %v1357 = vunpack.c.l.b16 %v843
  %v1358 = vunpack.c.h.b16 %v843
  %v1359 = vunpack.c.l.b16 %v844
  %v1360 = vunpack.c.h.b16 %v844
  %v1361 = vunpack.c.l.b16 %v845
  %v1362 = vunpack.c.h.b16 %v845
  %v1363 = vunpack.c.l.b16 %v846
  %v1364 = vunpack.c.h.b16 %v846
  %v1365 = vunpack.c.l.b16 %v847
  %v1366 = vunpack.c.h.b16 %v847
  %v1367 = vunpack.c.l.b16 %v848
  %v1368 = vunpack.c.h.b16 %v848
  %v1369 = vunpack.c.l.b16 %v849
  %v1370 = vunpack.c.h.b16 %v849
  %v1371 = vunpack.c.l.b16 %v850
  %v1372 = vunpack.c.h.b16 %v850
  %v1373 = vunpack.c.l.b16 %v851
  %v1374 = vunpack.c.h.b16 %v851
  %v1375 = vunpack.c.l.b16 %v852
  %v1376 = vunpack.c.h.b16 %v852
  %v1377 = vunpack.c.l.b16 %v853
  %v1378 = vunpack.c.h.b16 %v853
  %v1379 = vunpack.c.l.b16 %v854
  %v1380 = vunpack.c.h.b16 %v854
  %v1381 = vunpack.c.l.b16 %v855
  %v1382 = vunpack.c.h.b16 %v855
  %v1383 = vunpack.c.l.b16 %v856
  %v1384 = vunpack.c.h.b16 %v856
  %v1385 = vunpack.c.l.b16 %v857
  %v1386 = vunpack.c.h.b16 %v857
  %v1387 = vunpack.c.l.b16 %v858
  %v1388 = vunpack.c.h.b16 %v858
  %v1389 = vunpack.c.l.b16 %v859
  %v1390 = vunpack.c.h.b16 %v859
  %v1391 = vunpack.c.l.b16 %v860
  %v1392 = vunpack.c.h.b16 %v860
  %v1393 = vunpack.c.l.b16 %v861
  %v1394 = vunpack.c.h.b16 %v861
  %v1395 = vunpack.c.l.b16 %v862
  %v1396 = vunpack.c.h.b16 %v862
  %v1397 = vunpack.c.l.b16 %v863
  %v1398 = vunpack.c.h.b16 %v863
  %v1399 = vunpack.c.l.b16 %v864
  %v1400 = vunpack.c.h.b16 %v864
  %v1401 = vunpack.c.l.b16 %v865
  %v1402 = vunpack.c.h.b16 %v865
  %v1403 = vunpack.c.l.b16 %v866
  %v1404 = vunpack.c.h.b16 %v866
  %v1405 = vunpack.c.l.b16 %v867
  %v1406 = vunpack.c.h.b16 %v867
  %v1407 = vunpack.c.l.b16 %v868
  %v1408 = vunpack.c.h.b16 %v868
  %v1409 = vunpack.c.l.b16 %v869
  %v1410 = vunpack.c.h.b16 %v869
  %v1411 = vunpack.c.l.b16 %v870
  %v1412 = vunpack.c.h.b16 %v870
  %v1413 = vunpack.c.l.b16 %v871
  %v1414 = vunpack.c.h.b16 %v871
  %v1415 = vunpack.c.l.b16 %v872
  %v1416 = vunpack.c.h.b16 %v872
  %v1417 = vunpack.c.l.b16 %v873
  %v1418 = vunpack.c.h.b16 %v873
  %v1419 = vunpack.c.l.b16 %v874
  %v1420 = vunpack.c.h.b16 %v874
  %v1421 = vunpack.c.l.b16 %v875
  %v1422 = vunpack.c.h.b16 %v875
  %v1423 = vunpack.c.l.b16 %v876
  %v1424 = vunpack.c.h.b16 %v876
  %v1425 = vunpack.c.l.b16 %v877
  %v1426 = vunpack.c.h.b16 %v877
  %v1427 = vunpack.c.l.b16 %v878
  %v1428 = vunpack.c.h.b16 %v878
  %v1429 = vunpack.c.l.b16 %v879
  %v1430 = vunpack.c.h.b16 %v879
  %v1431 = vunpack.c.l.b16 %v880
  %v1432 = vunpack.c.h.b16 %v880
  %v1433 = vunpack.c.l.b16 %v881
  %v1434 = vunpack.c.h.b16 %v881
  %v1435 = vunpack.c.l.b16 %v882
  %v1436 = vunpack.c.h.b16 %v882
  %v1437 = vunpack.c.l.b16 %v883
  %v1438 = vunpack.c.h.b16 %v883
  %v1439 = vunpack.c.l.b16 %v884
  %v1440 = vunpack.c.h.b16 %v884
  %v1441 = vunpack.c.l.b16 %v885
  %v1442 = vunpack.c.h.b16 %v885
  %v1443 = vunpack.c.l.b16 %v886
  %v1444 = vunpack.c.h.b16 %v886
  %v1445 = vunpack.c.l.b16 %v887
  %v1446 = vunpack.c.h.b16 %v887
  %v1447 = vunpack.c.l.b16 %v888
  %v1448 = vunpack.c.h.b16 %v888
  %v1449 = vunpack.c.l.b16 %v889
  %v1450 = vunpack.c.h.b16 %v889
  %v1451 = vunpack.c.l.b16 %v890
  %v1452 = vunpack.c.h.b16 %v890
  %v1453 = vunpack.c.l.b16 %v891
  %v1454 = vunpack.c.h.b16 %v891
  %v1455 = vunpack.c.l.b16 %v892
  %v1456 = vunpack.c.h.b16 %v892
  %v1457 = vunpack.c.l.b16 %v893
  %v1458 = vunpack.c.h.b16 %v893
  %v1459 = vunpack.c.l.b16 %v894
  %v1460 = vunpack.c.h.b16 %v894
  %v1461 = vunpack.c.l.b16 %v895
  %v1462 = vunpack.c.h.b16 %v895
  %v1463 = vunpack.c.l.b16 %v896
  %v1464 = vunpack.c.h.b16 %v896
  %v1465 = vunpack.c.l.b16 %v897
  %v1466 = vunpack.c.h.b16 %v897
  %v1467 = vunpack.c.l.b16 %v898
  %v1468 = vunpack.c.h.b16 %v898
  %v1469 = vunpack.c.l.b16 %v899
  %v1470 = vunpack.c.h.b16 %v899
  %v1471 = vunpack.c.l.b16 %v900
  %v1472 = vunpack.c.h.b16 %v900
  %v1473 = vunpack.c.l.b16 %v901
  %v1474 = vunpack.c.h.b16 %v901
  %v1475 = vunpack.c.l.b16 %v902
  %v1476 = vunpack.c.h.b16 %v902
  %v1477 = vunpack.c.l.b16 %v903
  %v1478 = vunpack.c.h.b16 %v903
  %v1479 = vunpack.c.l.b16 %v904
  %v1480 = vunpack.c.h.b16 %v904
  %v1481 = vunpack.c.l.b16 %v905
  %v1482 = vunpack.c.h.b16 %v905
  %v1483 = vunpack.c.l.b16 %v906
  %v1484 = vunpack.c.h.b16 %v906
  %v1485 = vunpack.c.l.b16 %v907
  %v1486 = vunpack.c.h.b16 %v907
  %v1487 = vunpack.c.l.b16 %v908
  %v1488 = vunpack.c.h.b16 %v908
  %v1489 = vunpack.c.l.b16 %v909
  %v1490 = vunpack.c.h.b16 %v909
  %v1491 = vunpack.c.l.b16 %v910
  %v1492 = vunpack.c.h.b16 %v910
  %v1493 = vunpack.c.l.b16 %v911
  %v1494 = vunpack.c.h.b16 %v911
  %v1495 = vunpack.c.l.b16 %v912
  %v1496 = vunpack.c.h.b16 %v912
  %v1497 = vunpack.c.l.b16 %v913
  %v1498 = vunpack.c.h.b16 %v913
  %v1499 = vunpack.c.l.b16 %v914
  %v1500 = vunpack.c.h.b16 %v914
  %v1501 = vunpack.c.l.b16 %v915
  %v1502 = vunpack.c.h.b16 %v915
  %v1503 = vunpack.c.l.b16 %v916
  %v1504 = vunpack.c.h.b16 %v916
  %v1505 = vunpack.c.l.b16 %v917
  %v1506 = vunpack.c.h.b16 %v917
  %v1507 = vunpack.c.l.b16 %v918
  %v1508 = vunpack.c.h.b16 %v918
  %v1509 = vunpack.c.l.b16 %v919
  %v1510 = vunpack.c.h.b16 %v919
  %v1511 = vunpack.c.l.b16 %v920
  %v1512 = vunpack.c.h.b16 %v920
  %v1513 = vunpack.c.l.b16 %v921
  %v1514 = vunpack.c.h.b16 %v921
  %v1515 = vunpack.c.l.b16 %v922
  %v1516 = vunpack.c.h.b16 %v922
  %v1517 = vunpack.c.l.b16 %v923
  %v1518 = vunpack.c.h.b16 %v923
  %v1519 = vunpack.c.l.b16 %v924
  %v1520 = vunpack.c.h.b16 %v924
  %v1521 = vunpack.c.l.b16 %v925
  %v1522 = vunpack.c.h.b16 %v925
  %v1523 = vunpack.c.l.b16 %v926
  %v1524 = vunpack.c.h.b16 %v926
  %v1525 = vunpack.c.l.b16 %v927
  %v1526 = vunpack.c.h.b16 %v927
  %v1527 = vunpack.c.l.b16 %v928
  %v1528 = vunpack.c.h.b16 %v928
  %v1529 = vunpack.c.l.b16 %v929
  %v1530 = vunpack.c.h.b16 %v929
  %v1531 = vunpack.c.l.b16 %v930
  %v1532 = vunpack.c.h.b16 %v930
  %v1533 = vunpack.c.l.b16 %v931
  %v1534 = vunpack.c.h.b16 %v931
  %v1535 = vunpack.c.l.b16 %v932
  %v1536 = vunpack.c.h.b16 %v932
  %v1537 = vunpack.c.l.b16 %v933
  %v1538 = vunpack.c.h.b16 %v933
  %v1539 = vunpack.c.l.b16 %v934
  %v1540 = vunpack.c.h.b16 %v934
  %v1541 = vunpack.c.l.b16 %v935
  %v1542 = vunpack.c.h.b16 %v935
  %v1543 = vunpack.c.l.b16 %v936
  %v1544 = vunpack.c.h.b16 %v936
  %v1545 = vunpack.c.l.b16 %v937
  %v1546 = vunpack.c.h.b16 %v937
  %v1547 = vunpack.c.l.b16 %v938
  %v1548 = vunpack.c.h.b16 %v938
  %v1549 = vunpack.c.l.b16 %v939
  %v1550 = vunpack.c.h.b16 %v939
  %v1551 = vunpack.c.l.b16 %v940
  %v1552 = vunpack.c.h.b16 %v940
  %v1553 = vunpack.c.l.b16 %v941
  %v1554 = vunpack.c.h.b16 %v941
  %v1555 = vunpack.c.l.b16 %v942
  %v1556 = vunpack.c.h.b16 %v942
  %v1557 = vunpack.c.l.b16 %v943
  %v1558 = vunpack.c.h.b16 %v943
  %v1559 = vunpack.c.l.b16 %v944
  %v1560 = vunpack.c.h.b16 %v944
  %v1561 = vunpack.c.l.b16 %v945
  %v1562 = vunpack.c.h.b16 %v945
  %v1563 = vunpack.c.l.b16 %v946
  %v1564 = vunpack.c.h.b16 %v946
  %v1565 = vunpack.c.l.b16 %v947
  %v1566 = vunpack.c.h.b16 %v947
  %v1567 = vunpack.c.l.b16 %v948
  %v1568 = vunpack.c.h.b16 %v948
  %v1569 = vunpack.c.l.b16 %v949
  %v1570 = vunpack.c.h.b16 %v949
  %v1571 = vunpack.c.l.b16 %v950
  %v1572 = vunpack.c.h.b16 %v950
  %v1573 = vunpack.c.l.b16 %v951
  %v1574 = vunpack.c.h.b16 %v951
  %v1575 = vunpack.c.l.b16 %v952
  %v1576 = vunpack.c.h.b16 %v952
  %v1577 = vunpack.c.l.b16 %v953
  %v1578 = vunpack.c.h.b16 %v953
  %v1579 = vunpack.c.l.b16 %v954
  %v1580 = vunpack.c.h.b16 %v954
  %v1581 = vunpack.c.l.b16 %v955
  %v1582 = vunpack.c.h.b16 %v955
  %v1583 = vunpack.c.l.b16 %v956
  %v1584 = vunpack.c.h.b16 %v956
  %v1585 = vunpack.c.l.b16 %v957
  %v1586 = vunpack.c.h.b16 %v957
  %v1587 = vunpack.c.l.b16 %v958
  %v1588 = vunpack.c.h.b16 %v958
  %v1589 = vunpack.c.l.b16 %v959
  %v1590 = vunpack.c.h.b16 %v959
  %v1591 = vunpack.c.l.b16 %v960
  %v1592 = vunpack.c.h.b16 %v960
  %v1593 = vunpack.c.l.b16 %v961
  %v1594 = vunpack.c.h.b16 %v961
  %v1595 = vunpack.c.l.b16 %v962
  %v1596 = vunpack.c.h.b16 %v962
  %v1597 = vunpack.c.l.b16 %v963
  %v1598 = vunpack.c.h.b16 %v963
  %v1599 = vunpack.c.l.b16 %v964
  %v1600 = vunpack.c.h.b16 %v964
  %v1601 = vunpack.c.l.b16 %v965
  %v1602 = vunpack.c.h.b16 %v965
  %v1603 = vunpack.c.l.b16 %v966
  %v1604 = vunpack.c.h.b16 %v966
  %v1605 = vunpack.c.l.b16 %v967
  %v1606 = vunpack.c.h.b16 %v967
  %v1607 = vunpack.c.l.b16 %v968
  %v1608 = vunpack.c.h.b16 %v968
  %v1609 = vunpack.c.l.b16 %v969
  %v1610 = vunpack.c.h.b16 %v969
  %v1611 = vunpack.c.l.b16 %v970
  %v1612 = vunpack.c.h.b16 %v970
  %v1613 = vunpack.c.l.b16 %v971
  %v1614 = vunpack.c.h.b16 %v971
  %v1615 = vunpack.c.l.b16 %v972
  %v1616 = vunpack.c.h.b16 %v972
  %v1617 = vunpack.c.l.b16 %v973
  %v1618 = vunpack.c.h.b16 %v973
  %v1619 = vunpack.c.l.b16 %v974
  %v1620 = vunpack.c.h.b16 %v974
  %v1621 = vunpack.c.l.b16 %v975
  %v1622 = vunpack.c.h.b16 %v975
  %v1623 = vunpack.c.l.b16 %v976
  %v1624 = vunpack.c.h.b16 %v976
  %v1625 = vunpack.c.l.b16 %v977
  %v1626 = vunpack.c.h.b16 %v977
  %v1627 = vunpack.c.l.b16 %v978
  %v1628 = vunpack.c.h.b16 %v978
  %v1629 = vunpack.c.l.b16 %v979
  %v1630 = vunpack.c.h.b16 %v979
  %v1631 = vunpack.c.l.b16 %v980
  %v1632 = vunpack.c.h.b16 %v980
  %v1633 = vunpack.c.l.b16 %v981
  %v1634 = vunpack.c.h.b16 %v981
  %v1635 = vunpack.c.l.b16 %v982
  %v1636 = vunpack.c.h.b16 %v982
  %v1637 = vunpack.c.l.b16 %v983
  %v1638 = vunpack.c.h.b16 %v983
  %v1639 = vunpack.c.l.b16 %v984
  %v1640 = vunpack.c.h.b16 %v984
  %v1641 = vunpack.c.l.b16 %v985
  %v1642 = vunpack.c.h.b16 %v985
  %v1643 = vunpack.c.l.b16 %v986
  %v1644 = vunpack.c.h.b16 %v986
  %v1645 = vunpack.c.l.b16 %v987
  %v1646 = vunpack.c.h.b16 %v987
  %v1647 = vunpack.c.l.b16 %v988
  %v1648 = vunpack.c.h.b16 %v988
  %v1649 = vunpack.c.l.b16 %v989
  %v1650 = vunpack.c.h.b16 %v989
  %v1651 = vunpack.c.l.b16 %v990
  %v1652 = vunpack.c.h.b16 %v990
  %v1653 = vunpack.c.l.b16 %v991
  %v1654 = vunpack.c.h.b16 %v991
  %v1655 = vunpack.c.l.b16 %v992
  %v1656 = vunpack.c.h.b16 %v992
  %v1657 = vunpack.c.l.b16 %v993
  %v1658 = vunpack.c.h.b16 %v993
  %v1659 = vunpack.c.l.b16 %v994
  %v1660 = vunpack.c.h.b16 %v994
  %v1661 = vunpack.c.l.b16 %v995
  %v1662 = vunpack.c.h.b16 %v995
  %v1663 = vunpack.c.l.b16 %v996
  %v1664 = vunpack.c.h.b16 %v996
  %v1665 = vunpack.c.l.b16 %v997
  %v1666 = vunpack.c.h.b16 %v997
  %v1667 = vunpack.c.l.b16 %v998
  %v1668 = vunpack.c.h.b16 %v998
  %v1669 = vunpack.c.l.b16 %v999
  %v1670 = vunpack.c.h.b16 %v999
  %v1671 = vunpack.c.l.b16 %v1000
  %v1672 = vunpack.c.h.b16 %v1000
  %v1673 = vunpack.c.l.b16 %v1001
  %v1674 = vunpack.c.h.b16 %v1001
  %v1675 = vunpack.c.l.b16 %v1002
  %v1676 = vunpack.c.h.b16 %v1002
  %v1677 = vunpack.c.l.b16 %v1003
  %v1678 = vunpack.c.h.b16 %v1003
  %v1679 = vunpack.c.l.b16 %v1004
  %v1680 = vunpack.c.h.b16 %v1004
  %v1681 = vunpack.c.l.b16 %v1005
  %v1682 = vunpack.c.h.b16 %v1005
  %v1683 = vunpack.c.l.b16 %v1006
  %v1684 = vunpack.c.h.b16 %v1006
  %v1685 = vunpack.c.l.b16 %v1007
  %v1686 = vunpack.c.h.b16 %v1007
  %v1687 = vunpack.c.l.b16 %v1008
  %v1688 = vunpack.c.h.b16 %v1008
  %v1689 = vunpack.c.l.b16 %v1009
  %v1690 = vunpack.c.h.b16 %v1009
  %v1691 = vunpack.c.l.b16 %v1010
  %v1692 = vunpack.c.h.b16 %v1010
  %v1693 = vunpack.c.l.b16 %v1011
  %v1694 = vunpack.c.h.b16 %v1011
  %v1695 = vunpack.c.l.b16 %v1012
  %v1696 = vunpack.c.h.b16 %v1012
  %v1697 = vunpack.c.l.b16 %v1013
  %v1698 = vunpack.c.h.b16 %v1013
  %v1699 = vunpack.c.l.b16 %v1014
  %v1700 = vunpack.c.h.b16 %v1014
  %v1701 = vunpack.c.l.b16 %v1015
  %v1702 = vunpack.c.h.b16 %v1015
  %v1703 = vunpack.c.l.b16 %v1016
  %v1704 = vunpack.c.h.b16 %v1016
  %v1705 = vunpack.c.l.b16 %v1017
  %v1706 = vunpack.c.h.b16 %v1017
  %v1707 = vunpack.c.l.b16 %v1018
  %v1708 = vunpack.c.h.b16 %v1018
  %v1709 = vunpack.c.l.b16 %v1019
  %v1710 = vunpack.c.h.b16 %v1019
  %v1711 = vunpack.c.l.b16 %v1020
  %v1712 = vunpack.c.h.b16 %v1020
  %v1713 = vunpack.c.l.b16 %v1021
  %v1714 = vunpack.c.h.b16 %v1021
  %v1715 = vunpack.c.l.b16 %v1022
  %v1716 = vunpack.c.h.b16 %v1022
  %v1717 = vunpack.c.l.b16 %v1023
  %v1718 = vunpack.c.h.b16 %v1023
  %v1719 = vunpack.c.l.b16 %v1024
  %v1720 = vunpack.c.h.b16 %v1024
  %v1721 = vunpack.c.l.b16 %v1025
  %v1722 = vunpack.c.h.b16 %v1025
  %v1723 = vunpack.c.l.b16 %v1026
  %v1724 = vunpack.c.h.b16 %v1026
  %v1725 = vunpack.c.l.b16 %v1027
  %v1726 = vunpack.c.h.b16 %v1027
  %v1727 = vunpack.c.l.b16 %v1028
  %v1728 = vunpack.c.h.b16 %v1028
  %v1729 = vunpack.c.l.b16 %v1029
  %v1730 = vunpack.c.h.b16 %v1029
  %v1731 = vunpack.c.l.b16 %v1030
  %v1732 = vunpack.c.h.b16 %v1030
  %v1733 = vunpack.c.l.b16 %v1031
  %v1734 = vunpack.c.h.b16 %v1031
  %v1735 = vunpack.c.l.b16 %v1032
  %v1736 = vunpack.c.h.b16 %v1032
  %v1737 = vunpack.c.l.b16 %v1033
  %v1738 = vunpack.c.h.b16 %v1033
  %v1739 = vunpack.c.l.b16 %v1034
  %v1740 = vunpack.c.h.b16 %v1034
  %v1741 = vunpack.c.l.b16 %v1035
  %v1742 = vunpack.c.h.b16 %v1035
  %v1743 = vunpack.c.l.b16 %v1036
  %v1744 = vunpack.c.h.b16 %v1036
  %v1745 = vunpack.c.l.b16 %v1037
  %v1746 = vunpack.c.h.b16 %v1037
  %v1747 = vunpack.c.l.b16 %v1038
  %v1748 = vunpack.c.h.b16 %v1038
  %v1749 = vunpack.c.l.b16 %v1039
  %v1750 = vunpack.c.h.b16 %v1039
  %v1751 = vunpack.c.l.b16 %v1040
  %v1752 = vunpack.c.h.b16 %v1040
  %v1753 = vunpack.c.l.b16 %v1041
  %v1754 = vunpack.c.h.b16 %v1041
  %v1755 = vunpack.c.l.b16 %v1042
  %v1756 = vunpack.c.h.b16 %v1042
  %v1757 = vunpack.c.l.b16 %v1043
  %v1758 = vunpack.c.h.b16 %v1043
  %v1759 = vunpack.c.l.b16 %v1044
  %v1760 = vunpack.c.h.b16 %v1044
  %v1761 = vunpack.c.l.b16 %v1045
  %v1762 = vunpack.c.h.b16 %v1045
  %v1763 = vunpack.c.l.b16 %v1046
  %v1764 = vunpack.c.h.b16 %v1046
  %v1765 = vunpack.c.l.b16 %v1047
  %v1766 = vunpack.c.h.b16 %v1047
  %v1767 = vunpack.c.l.b16 %v1048
  %v1768 = vunpack.c.h.b16 %v1048
  %v1769 = vunpack.c.l.b16 %v1049
  %v1770 = vunpack.c.h.b16 %v1049
  %v1771 = vunpack.c.l.b16 %v1050
  %v1772 = vunpack.c.h.b16 %v1050
  %v1773 = vunpack.c.l.b16 %v1051
  %v1774 = vunpack.c.h.b16 %v1051
  %v1775 = vunpack.c.l.b16 %v1052
  %v1776 = vunpack.c.h.b16 %v1052
  %v1777 = vunpack.c.l.b16 %v1053
  %v1778 = vunpack.c.h.b16 %v1053
  %v1779 = vunpack.c.l.b16 %v1054
  %v1780 = vunpack.c.h.b16 %v1054
  %v1781 = vunpack.c.l.b16 %v1055
  %v1782 = vunpack.c.h.b16 %v1055
  %v1783 = vunpack.c.l.b16 %v1056
  %v1784 = vunpack.c.h.b16 %v1056
  %v1785 = vunpack.c.l.b16 %v1057
  %v1786 = vunpack.c.h.b16 %v1057
  %v1787 = vunpack.c.l.b16 %v1058
  %v1788 = vunpack.c.h.b16 %v1058
  %v1789 = vunpack.c.l.b16 %v1059
  %v1790 = vunpack.c.h.b16 %v1059
  %v1791 = vunpack.c.l.b16 %v1060
  %v1792 = vunpack.c.h.b16 %v1060
  %v1793 = vunpack.c.l.b16 %v1061
  %v1794 = vunpack.c.h.b16 %v1061
  %v1795 = vunpack.c.l.b16 %v1062
  %v1796 = vunpack.c.h.b16 %v1062
  %v1797 = vunpack.c.l.b16 %v1063
  %v1798 = vunpack.c.h.b16 %v1063
  %v1799 = vunpack.c.l.b16 %v1064
  %v1800 = vunpack.c.h.b16 %v1064
  %v1801 = vunpack.c.l.b16 %v1065
  %v1802 = vunpack.c.h.b16 %v1065
  %v1803 = vunpack.c.l.b16 %v1066
  %v1804 = vunpack.c.h.b16 %v1066
  %v1805 = vunpack.c.l.b16 %v1067
  %v1806 = vunpack.c.h.b16 %v1067
  %v1807 = vunpack.c.l.b16 %v1068
  %v1808 = vunpack.c.h.b16 %v1068
  %v1809 = vunpack.c.l.b16 %v1069
  %v1810 = vunpack.c.h.b16 %v1069
  %v1811 = vunpack.c.l.b16 %v1070
  %v1812 = vunpack.c.h.b16 %v1070
  %v1813 = vunpack.c.l.b16 %v1071
  %v1814 = vunpack.c.h.b16 %v1071
  %v1815 = vunpack.c.l.b16 %v1072
  %v1816 = vunpack.c.h.b16 %v1072
  %v1817 = vunpack.c.l.b16 %v1073
  %v1818 = vunpack.c.h.b16 %v1073
  %v1819 = vunpack.c.l.b16 %v1074
  %v1820 = vunpack.c.h.b16 %v1074
  %v1821 = vunpack.c.l.b16 %v1075
  %v1822 = vunpack.c.h.b16 %v1075
  %v1823 = vunpack.c.l.b16 %v1076
  %v1824 = vunpack.c.h.b16 %v1076
  %v1825 = vunpack.c.l.b16 %v1077
  %v1826 = vunpack.c.h.b16 %v1077
  %v1827 = vunpack.c.l.b16 %v1078
  %v1828 = vunpack.c.h.b16 %v1078
  %v1829 = vunpack.c.l.b16 %v1079
  %v1830 = vunpack.c.h.b16 %v1079
  %v1831 = vunpack.c.l.b16 %v1080
  %v1832 = vunpack.c.h.b16 %v1080
  %v1833 = vunpack.c.l.b16 %v1081
  %v1834 = vunpack.c.h.b16 %v1081
  %v1835 = vunpack.c.l.b16 %v1082
  %v1836 = vunpack.c.h.b16 %v1082
  %v1837 = vunpack.c.l.b16 %v1083
  %v1838 = vunpack.c.h.b16 %v1083
  %v1839 = vunpack.c.l.b16 %v1084
  %v1840 = vunpack.c.h.b16 %v1084
  %v1841 = vunpack.c.l.b16 %v1085
  %v1842 = vunpack.c.h.b16 %v1085
  %v1843 = vunpack.c.l.b16 %v1086
  %v1844 = vunpack.c.h.b16 %v1086
  %v1845 = vunpack.c.l.b16 %v1087
  %v1846 = vunpack.c.h.b16 %v1087
  %v1847 = vunpack.c.l.b16 %v1088
  %v1848 = vunpack.c.h.b16 %v1088
  %v1849 = vunpack.c.l.b16 %v1089
  %v1850 = vunpack.c.h.b16 %v1089
  %v1851 = vunpack.c.l.b16 %v1090
  %v1852 = vunpack.c.h.b16 %v1090
  %v1853 = vunpack.c.l.b16 %v1091
  %v1854 = vunpack.c.h.b16 %v1091
  %v1855 = vunpack.c.l.b16 %v1092
  %v1856 = vunpack.c.h.b16 %v1092
  %v1857 = vunpack.c.l.b16 %v1093
  %v1858 = vunpack.c.h.b16 %v1093
  %v1859 = vunpack.c.l.b16 %v1094
  %v1860 = vunpack.c.h.b16 %v1094
  %v1861 = vunpack.c.l.b16 %v1095
  %v1862 = vunpack.c.h.b16 %v1095
  %v1863 = vunpack.c.l.b16 %v1096
  %v1864 = vunpack.c.h.b16 %v1096
  %v1865 = vpack.c.b16 %v1361, %v1353
  %v1866 = vpack.c.b16 %v1362, %v1354
  %v1867 = vpack.c.b16 %v1363, %v1355
  %v1868 = vpack.c.b16 %v1364, %v1356
  %v1869 = vpack.c.b16 %v1365, %v1357
  %v1870 = vpack.c.b16 %v1366, %v1358
  %v1871 = vpack.c.b16 %v1367, %v1359
  %v1872 = vpack.c.b16 %v1368, %v1360
  %v1873 = vpack.c.b16 %v1377, %v1369
  %v1874 = vpack.c.b16 %v1378, %v1370
  %v1875 = vpack.c.b16 %v1379, %v1371
  %v1876 = vpack.c.b16 %v1380, %v1372
  %v1877 = vpack.c.b16 %v1381, %v1373
  %v1878 = vpack.c.b16 %v1382, %v1374
  %v1879 = vpack.c.b16 %v1383, %v1375
  %v1880 = vpack.c.b16 %v1384, %v1376
  %v1881 = vpack.c.b16 %v1393, %v1385
  %v1882 = vpack.c.b16 %v1394, %v1386
  %v1883 = vpack.c.b16 %v1395, %v1387
  %v1884 = vpack.c.b16 %v1396, %v1388
  %v1885 = vpack.c.b16 %v1397, %v1389
  %v1886 = vpack.c.b16 %v1398, %v1390
  %v1887 = vpack.c.b16 %v1399, %v1391
  %v1888 = vpack.c.b16 %v1400, %v1392
  %v1889 = vpack.c.b16 %v1409, %v1401
  %v1890 = vpack.c.b16 %v1410, %v1402
  %v1891 = vpack.c.b16 %v1411, %v1403
  %v1892 = vpack.c.b16 %v1412, %v1404
  %v1893 = vpack.c.b16 %v1413, %v1405
  %v1894 = vpack.c.b16 %v1414, %v1406
  %v1895 = vpack.c.b16 %v1415, %v1407
  %v1896 = vpack.c.b16 %v1416, %v1408
  %v1897 = vpack.c.b16 %v1425, %v1417
  %v1898 = vpack.c.b16 %v1426, %v1418
  %v1899 = vpack.c.b16 %v1427, %v1419
  %v1900 = vpack.c.b16 %v1428, %v1420
  %v1901 = vpack.c.b16 %v1429, %v1421
  %v1902 = vpack.c.b16 %v1430, %v1422
  %v1903 = vpack.c.b16 %v1431, %v1423
  %v1904 = vpack.c.b16 %v1432, %v1424
  %v1905 = vpack.c.b16 %v1441, %v1433
  %v1906 = vpack.c.b16 %v1442, %v1434
  %v1907 = vpack.c.b16 %v1443, %v1435
  %v1908 = vpack.c.b16 %v1444, %v1436
  %v1909 = vpack.c.b16 %v1445, %v1437
  %v1910 = vpack.c.b16 %v1446, %v1438
  %v1911 = vpack.c.b16 %v1447, %v1439
  %v1912 = vpack.c.b16 %v1448, %v1440
  %v1913 = vpack.c.b16 %v1457, %v1449
  %v1914 = vpack.c.b16 %v1458, %v1450
  %v1915 = vpack.c.b16 %v1459, %v1451
  %v1916 = vpack.c.b16 %v1460, %v1452
  %v1917 = vpack.c.b16 %v1461, %v1453
  %v1918 = vpack.c.b16 %v1462, %v1454
  %v1919 = vpack.c.b16 %v1463, %v1455
  %v1920 = vpack.c.b16 %v1464, %v1456
  %v1921 = vpack.c.b16 %v1473, %v1465
  %v1922 = vpack.c.b16 %v1474, %v1466
  %v1923 = vpack.c.b16 %v1475, %v1467
  %v1924 = vpack.c.b16 %v1476, %v1468
  %v1925 = vpack.c.b16 %v1477, %v1469
  %v1926 = vpack.c.b16 %v1478, %v1470
  %v1927 = vpack.c.b16 %v1479, %v1471
  %v1928 = vpack.c.b16 %v1480, %v1472
  %v1929 = vpack.c.b16 %v1489, %v1481
  %v1930 = vpack.c.b16 %v1490, %v1482
  %v1931 = vpack.c.b16 %v1491, %v1483
  %v1932 = vpack.c.b16 %v1492, %v1484
  %v1933 = vpack.c.b16 %v1493, %v1485
  %v1934 = vpack.c.b16 %v1494, %v1486
  %v1935 = vpack.c.b16 %v1495, %v1487
  %v1936 = vpack.c.b16 %v1496, %v1488
  %v1937 = vpack.c.b16 %v1505, %v1497
  %v1938 = vpack.c.b16 %v1506, %v1498
  %v1939 = vpack.c.b16 %v1507, %v1499
  %v1940 = vpack.c.b16 %v1508, %v1500
  %v1941 = vpack.c.b16 %v1509, %v1501
  %v1942 = vpack.c.b16 %v1510, %v1502
  %v1943 = vpack.c.b16 %v1511, %v1503
  %v1944 = vpack.c.b16 %v1512, %v1504
  %v1945 = vpack.c.b16 %v1521, %v1513
  %v1946 = vpack.c.b16 %v1522, %v1514
  %v1947 = vpack.c.b16 %v1523, %v1515
  %v1948 = vpack.c.b16 %v1524, %v1516
  %v1949 = vpack.c.b16 %v1525, %v1517
  %v1950 = vpack.c.b16 %v1526, %v1518
  %v1951 = vpack.c.b16 %v1527, %v1519
  %v1952 = vpack.c.b16 %v1528, %v1520
  %v1953 = vpack.c.b16 %v1537, %v1529
  %v1954 = vpack.c.b16 %v1538, %v1530
  %v1955 = vpack.c.b16 %v1539, %v1531
  %v1956 = vpack.c.b16 %v1540, %v1532
  %v1957 = vpack.c.b16 %v1541, %v1533
  %v1958 = vpack.c.b16 %v1542, %v1534
  %v1959 = vpack.c.b16 %v1543, %v1535
  %v1960 = vpack.c.b16 %v1544, %v1536
  %v1961 = vpack.c.b16 %v1553, %v1545
  %v1962 = vpack.c.b16 %v1554, %v1546
  %v1963 = vpack.c.b16 %v1555, %v1547
  %v1964 = vpack.c.b16 %v1556, %v1548
  %v1965 = vpack.c.b16 %v1557, %v1549
  %v1966 = vpack.c.b16 %v1558, %v1550
  %v1967 = vpack.c.b16 %v1559, %v1551
  %v1968 = vpack.c.b16 %v1560, %v1552
  %v1969 = vpack.c.b16 %v1569, %v1561
  %v1970 = vpack.c.b16 %v1570, %v1562
  %v1971 = vpack.c.b16 %v1571, %v1563
  %v1972 = vpack.c.b16 %v1572, %v1564
  %v1973 = vpack.c.b16 %v1573, %v1565
  %v1974 = vpack.c.b16 %v1574, %v1566
  %v1975 = vpack.c.b16 %v1575, %v1567
  %v1976 = vpack.c.b16 %v1576, %v1568
  %v1977 = vpack.c.b16 %v1585, %v1577
  %v1978 = vpack.c.b16 %v1586, %v1578
  %v1979 = vpack.c.b16 %v1587, %v1579
  %v1980 = vpack.c.b16 %v1588, %v1580
  %v1981 = vpack.c.b16 %v1589, %v1581
  %v1982 = vpack.c.b16 %v1590, %v1582
  %v1983 = vpack.c.b16 %v1591, %v1583
  %v1984 = vpack.c.b16 %v1592, %v1584
  %v1985 = vpack.c.b16 %v1601, %v1593
  %v1986 = vpack.c.b16 %v1602, %v1594
  %v1987 = vpack.c.b16 %v1603, %v1595
  %v1988 = vpack.c.b16 %v1604, %v1596
  %v1989 = vpack.c.b16 %v1605, %v1597
  %v1990 = vpack.c.b16 %v1606, %v1598
  %v1991 = vpack.c.b16 %v1607, %v1599
  %v1992 = vpack.c.b16 %v1608, %v1600
  %v1993 = vpack.c.b16 %v1617, %v1609
  %v1994 = vpack.c.b16 %v1618, %v1610
  %v1995 = vpack.c.b16 %v1619, %v1611
  %v1996 = vpack.c.b16 %v1620, %v1612
  %v1997 = vpack.c.b16 %v1621, %v1613
  %v1998 = vpack.c.b16 %v1622, %v1614
  %v1999 = vpack.c.b16 %v1623, %v1615
  %v2000 = vpack.c.b16 %v1624, %v1616
  %v2001 = vpack.c.b16 %v1633, %v1625
  %v2002 = vpack.c.b16 %v1634, %v1626
  %v2003 = vpack.c.b16 %v1635, %v1627
  %v2004 = vpack.c.b16 %v1636, %v1628
  %v2005 = vpack.c.b16 %v1637, %v1629
  %v2006 = vpack.c.b16 %v1638, %v1630
  %v2007 = vpack.c.b16 %v1639, %v1631
  %v2008 = vpack.c.b16 %v1640, %v1632
  %v2009 = vpack.c.b16 %v1649, %v1641
  %v2010 = vpack.c.b16 %v1650, %v1642
  %v2011 = vpack.c.b16 %v1651, %v1643
  %v2012 = vpack.c.b16 %v1652, %v1644
  %v2013 = vpack.c.b16 %v1653, %v1645
  %v2014 = vpack.c.b16 %v1654, %v1646
  %v2015 = vpack.c.b16 %v1655, %v1647
  %v2016 = vpack.c.b16 %v1656, %v1648
  %v2017 = vpack.c.b16 %v1665, %v1657
  %v2018 = vpack.c.b16 %v1666, %v1658
  %v2019 = vpack.c.b16 %v1667, %v1659
  %v2020 = vpack.c.b16 %v1668, %v1660
  %v2021 = vpack.c.b16 %v1669, %v1661
  %v2022 = vpack.c.b16 %v1670, %v1662
  %v2023 = vpack.c.b16 %v1671, %v1663
  %v2024 = vpack.c.b16 %v1672, %v1664
  %v2025 = vpack.c.b16 %v1681, %v1673
  %v2026 = vpack.c.b16 %v1682, %v1674
  %v2027 = vpack.c.b16 %v1683, %v1675
  %v2028 = vpack.c.b16 %v1684, %v1676
  %v2029 = vpack.c.b16 %v1685, %v1677
  %v2030 = vpack.c.b16 %v1686, %v1678
  %v2031 = vpack.c.b16 %v1687, %v1679
  %v2032 = vpack.c.b16 %v1688, %v1680
  %v2033 = vpack.c.b16 %v1697, %v1689
  %v2034 = vpack.c.b16 %v1698, %v1690
  %v2035 = vpack.c.b16 %v1699, %v1691
  %v2036 = vpack.c.b16 %v1700, %v1692
  %v2037 = vpack.c.b16 %v1701, %v1693
  %v2038 = vpack.c.b16 %v1702, %v1694
  %v2039 = vpack.c.b16 %v1703, %v1695
  %v2040 = vpack.c.b16 %v1704, %v1696
  %v2041 = vpack.c.b16 %v1713, %v1705
  %v2042 = vpack.c.b16 %v1714, %v1706
  %v2043 = vpack.c.b16 %v1715, %v1707
  %v2044 = vpack.c.b16 %v1716, %v1708
  %v2045 = vpack.c.b16 %v1717, %v1709
  %v2046 = vpack.c.b16 %v1718, %v1710
  %v2047 = vpack.c.b16 %v1719, %v1711
  %v2048 = vpack.c.b16 %v1720, %v1712
  %v2049 = vpack.c.b16 %v1729, %v1721
  %v2050 = vpack.c.b16 %v1730, %v1722
  %v2051 = vpack.c.b16 %v1731, %v1723
  %v2052 = vpack.c.b16 %v1732, %v1724
  %v2053 = vpack.c.b16 %v1733, %v1725
  %v2054 = vpack.c.b16 %v1734, %v1726
  %v2055 = vpack.c.b16 %v1735, %v1727
  %v2056 = vpack.c.b16 %v1736, %v1728
  %v2057 = vpack.c.b16 %v1745, %v1737
  %v2058 = vpack.c.b16 %v1746, %v1738
  %v2059 = vpack.c.b16 %v1747, %v1739
  %v2060 = vpack.c.b16 %v1748, %v1740
  %v2061 = vpack.c.b16 %v1749, %v1741
  %v2062 = vpack.c.b16 %v1750, %v1742
  %v2063 = vpack.c.b16 %v1751, %v1743
  %v2064 = vpack.c.b16 %v1752, %v1744
  %v2065 = vpack.c.b16 %v1761, %v1753
  %v2066 = vpack.c.b16 %v1762, %v1754
  %v2067 = vpack.c.b16 %v1763, %v1755
  %v2068 = vpack.c.b16 %v1764, %v1756
  %v2069 = vpack.c.b16 %v1765, %v1757
  %v2070 = vpack.c.b16 %v1766, %v1758
  %v2071 = vpack.c.b16 %v1767, %v1759
  %v2072 = vpack.c.b16 %v1768, %v1760
  %v2073 = vpack.c.b16 %v1777, %v1769
  %v2074 = vpack.c.b16 %v1778, %v1770
  %v2075 = vpack.c.b16 %v1779, %v1771
  %v2076 = vpack.c.b16 %v1780, %v1772
  %v2077 = vpack.c.b16 %v1781, %v1773
  %v2078 = vpack.c.b16 %v1782, %v1774
  %v2079 = vpack.c.b16 %v1783, %v1775
  %v2080 = vpack.c.b16 %v1784, %v1776
  %v2081 = vpack.c.b16 %v1793, %v1785
  %v2082 = vpack.c.b16 %v1794, %v1786
  %v2083 = vpack.c.b16 %v1795, %v1787
  %v2084 = vpack.c.b16 %v1796, %v1788
  %v2085 = vpack.c.b16 %v1797, %v1789
  %v2086 = vpack.c.b16 %v1798, %v1790
  %v2087 = vpack.c.b16 %v1799, %v1791
  %v2088 = vpack.c.b16 %v1800, %v1792
  %v2089 = vpack.c.b16 %v1809, %v1801
  %v2090 = vpack.c.b16 %v1810, %v1802
  %v2091 = vpack.c.b16 %v1811, %v1803
  %v2092 = vpack.c.b16 %v1812, %v1804
  %v2093 = vpack.c.b16 %v1813, %v1805
  %v2094 = vpack.c.b16 %v1814, %v1806
  %v2095 = vpack.c.b16 %v1815, %v1807
  %v2096 = vpack.c.b16 %v1816, %v1808
  %v2097 = vpack.c.b16 %v1825, %v1817
  %v2098 = vpack.c.b16 %v1826, %v1818
  %v2099 = vpack.c.b16 %v1827, %v1819
  %v2100 = vpack.c.b16 %v1828, %v1820
  %v2101 = vpack.c.b16 %v1829, %v1821
  %v2102 = vpack.c.b16 %v1830, %v1822
  %v2103 = vpack.c.b16 %v1831, %v1823
  %v2104 = vpack.c.b16 %v1832, %v1824
  %v2105 = vpack.c.b16 %v1841, %v1833
  %v2106 = vpack.c.b16 %v1842, %v1834
  %v2107 = vpack.c.b16 %v1843, %v1835
  %v2108 = vpack.c.b16 %v1844, %v1836
  %v2109 = vpack.c.b16 %v1845, %v1837
  %v2110 = vpack.c.b16 %v1846, %v1838
  %v2111 = vpack.c.b16 %v1847, %v1839
  %v2112 = vpack.c.b16 %v1848, %v1840
  %v2113 = vpack.c.b16 %v1857, %v1849
  %v2114 = vpack.c.b16 %v1858, %v1850
  %v2115 = vpack.c.b16 %v1859, %v1851
  %v2116 = vpack.c.b16 %v1860, %v1852
  %v2117 = vpack.c.b16 %v1861, %v1853
  %v2118 = vpack.c.b16 %v1862, %v1854
  %v2119 = vpack.c.b16 %v1863, %v1855
  %v2120 = vpack.c.b16 %v1864, %v1856
  %2377 = vmatprep.subr.bf16.mxu0 %v1866
  %2378 = vmatpush1.bf16.msra.mxu0 %v1865
  %2379 = vmatprep.subr.bf16.mxu0 %v1874
  %2380 = vmatpush1.bf16.msra.mxu0 %v1873
  %2381 = vmatprep.subr.bf16.mxu0 %v1882
  %2382 = vmatpush1.bf16.msra.mxu0 %v1881
  %2383 = vmatprep.subr.bf16.mxu0 %v1890
  %2384 = vmatpush1.bf16.msra.mxu0 %v1889
  %2385 = vmatprep.subr.bf16.mxu0 %v1898
  %2386 = vmatpush1.bf16.msra.mxu0 %v1897
  %2387 = vmatprep.subr.bf16.mxu0 %v1906
  %2388 = vmatpush1.bf16.msra.mxu0 %v1905
  %2389 = vmatprep.subr.bf16.mxu0 %v1914
  %2390 = vmatpush1.bf16.msra.mxu0 %v1913
  %2391 = vmatprep.subr.bf16.mxu0 %v1922
  %2392 = vmatpush1.bf16.msra.mxu0 %v1921
  %2393 = vmatprep.subr.bf16.mxu0 %v1930
  %2394 = vmatpush1.bf16.msra.mxu0 %v1929
  %2395 = vmatprep.subr.bf16.mxu0 %v1938
  %2396 = vmatpush1.bf16.msra.mxu0 %v1937
  %2397 = vmatprep.subr.bf16.mxu0 %v1946
  %2398 = vmatpush1.bf16.msra.mxu0 %v1945
  %2399 = vmatprep.subr.bf16.mxu0 %v1954
  %2400 = vmatpush1.bf16.msra.mxu0 %v1953
  %2401 = vmatprep.subr.bf16.mxu0 %v1962
  %2402 = vmatpush1.bf16.msra.mxu0 %v1961
  %2403 = vmatprep.subr.bf16.mxu0 %v1970
  %2404 = vmatpush1.bf16.msra.mxu0 %v1969
  %2405 = vmatprep.subr.bf16.mxu0 %v1978
  %2406 = vmatpush1.bf16.msra.mxu0 %v1977
  %2407 = vmatprep.subr.bf16.mxu0 %v1986
  %2408 = vmatpush1.bf16.msra.mxu0 %v1985
  %2409 = vmatprep.mubr.bf16.mxu0 %v810
  %2410 = vmatmul.mubr.bf16.gmra.mrb[0].mxu0 %v809
  %v2411 = vpop.f32.mrb[0].mxu0
  %v2412 = vadd.f32 0.0, %v2411
  %v2413 = vpop.f32.mrb[0].mxu0
  %v2414 = vadd.f32 0.0, %v2413
  %v2415 = vpop.f32.mrb[0].mxu0
  %v2416 = vadd.f32 0.0, %v2415
  %v2417 = vpop.f32.mrb[0].mxu0
  %v2418 = vadd.f32 0.0, %v2417
  %2419 = vmatprep.mubr.bf16.mxu0 %v814
  %2420 = vmatmul.mubr.bf16.gmra.mrb[0].mxu0 %v813
  %v2421 = vpop.f32.mrb[0].mxu0
  %v2422 = vadd.f32 0.0, %v2421
  %v2423 = vpop.f32.mrb[0].mxu0
  %v2424 = vadd.f32 0.0, %v2423
  %v2425 = vpop.f32.mrb[0].mxu0
  %v2426 = vadd.f32 0.0, %v2425
  %v2427 = vpop.f32.mrb[0].mxu0
  %v2428 = vadd.f32 0.0, %v2427
  %2429 = vmatprep.mubr.bf16.mxu0 %v818
  %2430 = vmatmul.mubr.bf16.gmra.mrb[0].mxu0 %v817
  %v2431 = vpop.f32.mrb[0].mxu0
  %v2432 = vadd.f32 0.0, %v2431
  %v2433 = vpop.f32.mrb[0].mxu0
  %v2434 = vadd.f32 0.0, %v2433
  %v2435 = vpop.f32.mrb[0].mxu0
  %v2436 = vadd.f32 0.0, %v2435
  %v2437 = vpop.f32.mrb[0].mxu0
  %v2438 = vadd.f32 0.0, %v2437
  %2439 = vmatprep.mubr.bf16.mxu0 %v822
  %2440 = vmatmul.mubr.bf16.gmra.mrb[0].mxu0 %v821
  %v2441 = vpop.f32.mrb[0].mxu0
  %v2442 = vadd.f32 0.0, %v2441
  %v2443 = vpop.f32.mrb[0].mxu0
  %v2444 = vadd.f32 0.0, %v2443
  %v2445 = vpop.f32.mrb[0].mxu0
  %v2446 = vadd.f32 0.0, %v2445
  %v2447 = vpop.f32.mrb[0].mxu0
  %v2448 = vadd.f32 0.0, %v2447
  %2449 = vmatprep.mubr.bf16.mxu0 %v826
  %2450 = vmatmul.mubr.bf16.gmra.mrb[0].mxu0 %v825
  %v2451 = vpop.f32.mrb[0].mxu0
  %v2452 = vadd.f32 0.0, %v2451
  %v2453 = vpop.f32.mrb[0].mxu0
  %v2454 = vadd.f32 0.0, %v2453
  %v2455 = vpop.f32.mrb[0].mxu0
  %v2456 = vadd.f32 0.0, %v2455
  %v2457 = vpop.f32.mrb[0].mxu0
  %v2458 = vadd.f32 0.0, %v2457
  %2459 = vmatprep.mubr.bf16.mxu0 %v830
  %2460 = vmatmul.mubr.bf16.gmra.mrb[0].mxu0 %v829
  %v2461 = vpop.f32.mrb[0].mxu0
  %v2462 = vadd.f32 0.0, %v2461
  %v2463 = vpop.f32.mrb[0].mxu0
  %v2464 = vadd.f32 0.0, %v2463
  %v2465 = vpop.f32.mrb[0].mxu0
  %v2466 = vadd.f32 0.0, %v2465
  %v2467 = vpop.f32.mrb[0].mxu0
  %v2468 = vadd.f32 0.0, %v2467
  %2469 = vmatprep.mubr.bf16.mxu0 %v834
  %2470 = vmatmul.mubr.bf16.gmra.mrb[0].mxu0 %v833
  %v2471 = vpop.f32.mrb[0].mxu0
  %v2472 = vadd.f32 0.0, %v2471
  %v2473 = vpop.f32.mrb[0].mxu0
  %v2474 = vadd.f32 0.0, %v2473
  %v2475 = vpop.f32.mrb[0].mxu0
  %v2476 = vadd.f32 0.0, %v2475
  %v2477 = vpop.f32.mrb[0].mxu0
  %v2478 = vadd.f32 0.0, %v2477
  %2479 = vmatprep.mubr.bf16.mxu0 %v838
  %2480 = vmatmul.mubr.bf16.gmra.mrb[0].mxu0 %v837
  %v2481 = vpop.f32.mrb[0].mxu0
  %v2482 = vadd.f32 0.0, %v2481
  %v2483 = vpop.f32.mrb[0].mxu0
  %v2484 = vadd.f32 0.0, %v2483
  %v2485 = vpop.f32.mrb[0].mxu0
  %v2486 = vadd.f32 0.0, %v2485
  %v2487 = vpop.f32.mrb[0].mxu0
  %v2488 = vadd.f32 0.0, %v2487
  %2489 = vdwg.mxu0
  %2490 = vmatprep.subr.bf16.mxu0 %v1994
  %2491 = vmatpush1.bf16.msra.mxu0 %v1993
  %2492 = vmatprep.subr.bf16.mxu0 %v2002
  %2493 = vmatpush1.bf16.msra.mxu0 %v2001
  %2494 = vmatprep.subr.bf16.mxu0 %v2010
  %2495 = vmatpush1.bf16.msra.mxu0 %v2009
  %2496 = vmatprep.subr.bf16.mxu0 %v2018
  %2497 = vmatpush1.bf16.msra.mxu0 %v2017
  %2498 = vmatprep.subr.bf16.mxu0 %v2026
  %2499 = vmatpush1.bf16.msra.mxu0 %v2025
  %2500 = vmatprep.subr.bf16.mxu0 %v2034
  %2501 = vmatpush1.bf16.msra.mxu0 %v2033
  %2502 = vmatprep.subr.bf16.mxu0 %v2042
  %2503 = vmatpush1.bf16.msra.mxu0 %v2041
  %2504 = vmatprep.subr.bf16.mxu0 %v2050
  %2505 = vmatpush1.bf16.msra.mxu0 %v2049
  %2506 = vmatprep.subr.bf16.mxu0 %v2058
  %2507 = vmatpush1.bf16.msra.mxu0 %v2057
  %2508 = vmatprep.subr.bf16.mxu0 %v2066
  %2509 = vmatpush1.bf16.msra.mxu0 %v2065
  %2510 = vmatprep.subr.bf16.mxu0 %v2074
  %2511 = vmatpush1.bf16.msra.mxu0 %v2073
  %2512 = vmatprep.subr.bf16.mxu0 %v2082
  %2513 = vmatpush1.bf16.msra.mxu0 %v2081
  %2514 = vmatprep.subr.bf16.mxu0 %v2090
  %2515 = vmatpush1.bf16.msra.mxu0 %v2089
  %2516 = vmatprep.subr.bf16.mxu0 %v2098
  %2517 = vmatpush1.bf16.msra.mxu0 %v2097
  %2518 = vmatprep.subr.bf16.mxu0 %v2106
  %2519 = vmatpush1.bf16.msra.mxu0 %v2105
  %2520 = vmatprep.subr.bf16.mxu0 %v2114
  %2521 = vmatpush1.bf16.msra.mxu0 %v2113
  %2522 = vmatprep.mubr.bf16.mxu0 %v812
  %2523 = vmatmul.mubr.bf16.gmra.mrb[0].mxu0 %v811
  %v2524 = vpop.f32.mrb[0].mxu0
  %v2525 = vadd.f32 %v2412, %v2524
  %v2526 = vpop.f32.mrb[0].mxu0
  %v2527 = vadd.f32 %v2414, %v2526
  %v2528 = vpop.f32.mrb[0].mxu0
  %v2529 = vadd.f32 %v2416, %v2528
  %v2530 = vpop.f32.mrb[0].mxu0
  %v2531 = vadd.f32 %v2418, %v2530
  %2532 = vmatprep.mubr.bf16.mxu0 %v816
  %2533 = vmatmul.mubr.bf16.gmra.mrb[0].mxu0 %v815
  %v2534 = vpop.f32.mrb[0].mxu0
  %v2535 = vadd.f32 %v2422, %v2534
  %v2536 = vpop.f32.mrb[0].mxu0
  %v2537 = vadd.f32 %v2424, %v2536
  %v2538 = vpop.f32.mrb[0].mxu0
  %v2539 = vadd.f32 %v2426, %v2538
  %v2540 = vpop.f32.mrb[0].mxu0
  %v2541 = vadd.f32 %v2428, %v2540
  %2542 = vmatprep.mubr.bf16.mxu0 %v820
  %2543 = vmatmul.mubr.bf16.gmra.mrb[0].mxu0 %v819
  %v2544 = vpop.f32.mrb[0].mxu0
  %v2545 = vadd.f32 %v2432, %v2544
  %v2546 = vpop.f32.mrb[0].mxu0
  %v2547 = vadd.f32 %v2434, %v2546
  %v2548 = vpop.f32.mrb[0].mxu0
  %v2549 = vadd.f32 %v2436, %v2548
  %v2550 = vpop.f32.mrb[0].mxu0
  %v2551 = vadd.f32 %v2438, %v2550
  %2552 = vmatprep.mubr.bf16.mxu0 %v824
  %2553 = vmatmul.mubr.bf16.gmra.mrb[0].mxu0 %v823
  %v2554 = vpop.f32.mrb[0].mxu0
  %v2555 = vadd.f32 %v2442, %v2554
  %v2556 = vpop.f32.mrb[0].mxu0
  %v2557 = vadd.f32 %v2444, %v2556
  %v2558 = vpop.f32.mrb[0].mxu0
  %v2559 = vadd.f32 %v2446, %v2558
  %v2560 = vpop.f32.mrb[0].mxu0
  %v2561 = vadd.f32 %v2448, %v2560
  %2562 = vmatprep.mubr.bf16.mxu0 %v828
  %2563 = vmatmul.mubr.bf16.gmra.mrb[0].mxu0 %v827
  %v2564 = vpop.f32.mrb[0].mxu0
  %v2565 = vadd.f32 %v2452, %v2564
  %v2566 = vpop.f32.mrb[0].mxu0
  %v2567 = vadd.f32 %v2454, %v2566
  %v2568 = vpop.f32.mrb[0].mxu0
  %v2569 = vadd.f32 %v2456, %v2568
  %v2570 = vpop.f32.mrb[0].mxu0
  %v2571 = vadd.f32 %v2458, %v2570
  %2572 = vmatprep.mubr.bf16.mxu0 %v832
  %2573 = vmatmul.mubr.bf16.gmra.mrb[0].mxu0 %v831
  %v2574 = vpop.f32.mrb[0].mxu0
  %v2575 = vadd.f32 %v2462, %v2574
  %v2576 = vpop.f32.mrb[0].mxu0
  %v2577 = vadd.f32 %v2464, %v2576
  %v2578 = vpop.f32.mrb[0].mxu0
  %v2579 = vadd.f32 %v2466, %v2578
  %v2580 = vpop.f32.mrb[0].mxu0
  %v2581 = vadd.f32 %v2468, %v2580
  %2582 = vmatprep.mubr.bf16.mxu0 %v836
  %2583 = vmatmul.mubr.bf16.gmra.mrb[0].mxu0 %v835
  %v2584 = vpop.f32.mrb[0].mxu0
  %v2585 = vadd.f32 %v2472, %v2584
  %v2586 = vpop.f32.mrb[0].mxu0
  %v2587 = vadd.f32 %v2474, %v2586
  %v2588 = vpop.f32.mrb[0].mxu0
  %v2589 = vadd.f32 %v2476, %v2588
  %v2590 = vpop.f32.mrb[0].mxu0
  %v2591 = vadd.f32 %v2478, %v2590
  %2592 = vmatprep.mubr.bf16.mxu0 %v840
  %2593 = vmatmul.mubr.bf16.gmra.mrb[0].mxu0 %v839
  %v2594 = vpop.f32.mrb[0].mxu0
  %v2595 = vadd.f32 %v2482, %v2594
  %v2596 = vpop.f32.mrb[0].mxu0
  %v2597 = vadd.f32 %v2484, %v2596
  %v2598 = vpop.f32.mrb[0].mxu0
  %v2599 = vadd.f32 %v2486, %v2598
  %v2600 = vpop.f32.mrb[0].mxu0
  %v2601 = vadd.f32 %v2488, %v2600
  %2602 = vdwg.mxu0
  %2603 = vmatprep.subr.bf16.mxu0 %v1868
  %2604 = vmatpush1.bf16.msra.mxu0 %v1867
  %2605 = vmatprep.subr.bf16.mxu0 %v1876
  %2606 = vmatpush1.bf16.msra.mxu0 %v1875
  %2607 = vmatprep.subr.bf16.mxu0 %v1884
  %2608 = vmatpush1.bf16.msra.mxu0 %v1883
  %2609 = vmatprep.subr.bf16.mxu0 %v1892
  %2610 = vmatpush1.bf16.msra.mxu0 %v1891
  %2611 = vmatprep.subr.bf16.mxu0 %v1900
  %2612 = vmatpush1.bf16.msra.mxu0 %v1899
  %2613 = vmatprep.subr.bf16.mxu0 %v1908
  %2614 = vmatpush1.bf16.msra.mxu0 %v1907
  %2615 = vmatprep.subr.bf16.mxu0 %v1916
  %2616 = vmatpush1.bf16.msra.mxu0 %v1915
  %2617 = vmatprep.subr.bf16.mxu0 %v1924
  %2618 = vmatpush1.bf16.msra.mxu0 %v1923
  %2619 = vmatprep.subr.bf16.mxu0 %v1932
  %2620 = vmatpush1.bf16.msra.mxu0 %v1931
  %2621 = vmatprep.subr.bf16.mxu0 %v1940
  %2622 = vmatpush1.bf16.msra.mxu0 %v1939
  %2623 = vmatprep.subr.bf16.mxu0 %v1948
  %2624 = vmatpush1.bf16.msra.mxu0 %v1947
  %2625 = vmatprep.subr.bf16.mxu0 %v1956
  %2626 = vmatpush1.bf16.msra.mxu0 %v1955
  %2627 = vmatprep.subr.bf16.mxu0 %v1964
  %2628 = vmatpush1.bf16.msra.mxu0 %v1963
  %2629 = vmatprep.subr.bf16.mxu0 %v1972
  %2630 = vmatpush1.bf16.msra.mxu0 %v1971
  %2631 = vmatprep.subr.bf16.mxu0 %v1980
  %2632 = vmatpush1.bf16.msra.mxu0 %v1979
  %2633 = vmatprep.subr.bf16.mxu0 %v1988
  %2634 = vmatpush1.bf16.msra.mxu0 %v1987
  %2635 = vmatprep.mubr.bf16.mxu0 %v810
  %2636 = vmatmul.mubr.bf16.gmra.mrb[0].mxu0 %v809
  %v2637 = vpop.f32.mrb[0].mxu0
  %v2638 = vadd.f32 0.0, %v2637
  %v2639 = vpop.f32.mrb[0].mxu0
  %v2640 = vadd.f32 0.0, %v2639
  %v2641 = vpop.f32.mrb[0].mxu0
  %v2642 = vadd.f32 0.0, %v2641
  %v2643 = vpop.f32.mrb[0].mxu0
  %v2644 = vadd.f32 0.0, %v2643
  %2645 = vmatprep.mubr.bf16.mxu0 %v814
  %2646 = vmatmul.mubr.bf16.gmra.mrb[0].mxu0 %v813
  %v2647 = vpop.f32.mrb[0].mxu0
  %v2648 = vadd.f32 0.0, %v2647
  %v2649 = vpop.f32.mrb[0].mxu0
  %v2650 = vadd.f32 0.0, %v2649
  %v2651 = vpop.f32.mrb[0].mxu0
  %v2652 = vadd.f32 0.0, %v2651
  %v2653 = vpop.f32.mrb[0].mxu0
  %v2654 = vadd.f32 0.0, %v2653
  %2655 = vmatprep.mubr.bf16.mxu0 %v818
  %2656 = vmatmul.mubr.bf16.gmra.mrb[0].mxu0 %v817
  %v2657 = vpop.f32.mrb[0].mxu0
  %v2658 = vadd.f32 0.0, %v2657
  %v2659 = vpop.f32.mrb[0].mxu0
  %v2660 = vadd.f32 0.0, %v2659
  %v2661 = vpop.f32.mrb[0].mxu0
  %v2662 = vadd.f32 0.0, %v2661
  %v2663 = vpop.f32.mrb[0].mxu0
  %v2664 = vadd.f32 0.0, %v2663
  %2665 = vmatprep.mubr.bf16.mxu0 %v822
  %2666 = vmatmul.mubr.bf16.gmra.mrb[0].mxu0 %v821
  %v2667 = vpop.f32.mrb[0].mxu0
  %v2668 = vadd.f32 0.0, %v2667
  %v2669 = vpop.f32.mrb[0].mxu0
  %v2670 = vadd.f32 0.0, %v2669
  %v2671 = vpop.f32.mrb[0].mxu0
  %v2672 = vadd.f32 0.0, %v2671
  %v2673 = vpop.f32.mrb[0].mxu0
  %v2674 = vadd.f32 0.0, %v2673
  %2675 = vmatprep.mubr.bf16.mxu0 %v826
  %2676 = vmatmul.mubr.bf16.gmra.mrb[0].mxu0 %v825
  %v2677 = vpop.f32.mrb[0].mxu0
  %v2678 = vadd.f32 0.0, %v2677
  %v2679 = vpop.f32.mrb[0].mxu0
  %v2680 = vadd.f32 0.0, %v2679
  %v2681 = vpop.f32.mrb[0].mxu0
  %v2682 = vadd.f32 0.0, %v2681
  %v2683 = vpop.f32.mrb[0].mxu0
  %v2684 = vadd.f32 0.0, %v2683
  %2685 = vmatprep.mubr.bf16.mxu0 %v830
  %2686 = vmatmul.mubr.bf16.gmra.mrb[0].mxu0 %v829
  %v2687 = vpop.f32.mrb[0].mxu0
  %v2688 = vadd.f32 0.0, %v2687
  %v2689 = vpop.f32.mrb[0].mxu0
  %v2690 = vadd.f32 0.0, %v2689
  %v2691 = vpop.f32.mrb[0].mxu0
  %v2692 = vadd.f32 0.0, %v2691
  %v2693 = vpop.f32.mrb[0].mxu0
  %v2694 = vadd.f32 0.0, %v2693
  %2695 = vmatprep.mubr.bf16.mxu0 %v834
  %2696 = vmatmul.mubr.bf16.gmra.mrb[0].mxu0 %v833
  %v2697 = vpop.f32.mrb[0].mxu0
  %v2698 = vadd.f32 0.0, %v2697
  %v2699 = vpop.f32.mrb[0].mxu0
  %v2700 = vadd.f32 0.0, %v2699
  %v2701 = vpop.f32.mrb[0].mxu0
  %v2702 = vadd.f32 0.0, %v2701
  %v2703 = vpop.f32.mrb[0].mxu0
  %v2704 = vadd.f32 0.0, %v2703
  %2705 = vmatprep.mubr.bf16.mxu0 %v838
  %2706 = vmatmul.mubr.bf16.gmra.mrb[0].mxu0 %v837
  %v2707 = vpop.f32.mrb[0].mxu0
  %v2708 = vadd.f32 0.0, %v2707
  %v2709 = vpop.f32.mrb[0].mxu0
  %v2710 = vadd.f32 0.0, %v2709
  %v2711 = vpop.f32.mrb[0].mxu0
  %v2712 = vadd.f32 0.0, %v2711
  %v2713 = vpop.f32.mrb[0].mxu0
  %v2714 = vadd.f32 0.0, %v2713
  %2715 = vdwg.mxu0
  %2716 = vmatprep.subr.bf16.mxu0 %v1996
  %2717 = vmatpush1.bf16.msra.mxu0 %v1995
  %2718 = vmatprep.subr.bf16.mxu0 %v2004
  %2719 = vmatpush1.bf16.msra.mxu0 %v2003
  %2720 = vmatprep.subr.bf16.mxu0 %v2012
  %2721 = vmatpush1.bf16.msra.mxu0 %v2011
  %2722 = vmatprep.subr.bf16.mxu0 %v2020
  %2723 = vmatpush1.bf16.msra.mxu0 %v2019
  %2724 = vmatprep.subr.bf16.mxu0 %v2028
  %2725 = vmatpush1.bf16.msra.mxu0 %v2027
  %2726 = vmatprep.subr.bf16.mxu0 %v2036
  %2727 = vmatpush1.bf16.msra.mxu0 %v2035
  %2728 = vmatprep.subr.bf16.mxu0 %v2044
  %2729 = vmatpush1.bf16.msra.mxu0 %v2043
  %2730 = vmatprep.subr.bf16.mxu0 %v2052
  %2731 = vmatpush1.bf16.msra.mxu0 %v2051
  %2732 = vmatprep.subr.bf16.mxu0 %v2060
  %2733 = vmatpush1.bf16.msra.mxu0 %v2059
  %2734 = vmatprep.subr.bf16.mxu0 %v2068
  %2735 = vmatpush1.bf16.msra.mxu0 %v2067
  %2736 = vmatprep.subr.bf16.mxu0 %v2076
  %2737 = vmatpush1.bf16.msra.mxu0 %v2075
  %2738 = vmatprep.subr.bf16.mxu0 %v2084
  %2739 = vmatpush1.bf16.msra.mxu0 %v2083
  %2740 = vmatprep.subr.bf16.mxu0 %v2092
  %2741 = vmatpush1.bf16.msra.mxu0 %v2091
  %2742 = vmatprep.subr.bf16.mxu0 %v2100
  %2743 = vmatpush1.bf16.msra.mxu0 %v2099
  %2744 = vmatprep.subr.bf16.mxu0 %v2108
  %2745 = vmatpush1.bf16.msra.mxu0 %v2107
  %2746 = vmatprep.subr.bf16.mxu0 %v2116
  %2747 = vmatpush1.bf16.msra.mxu0 %v2115
  %2748 = vmatprep.mubr.bf16.mxu0 %v812
  %2749 = vmatmul.mubr.bf16.gmra.mrb[0].mxu0 %v811
  %v2750 = vpop.f32.mrb[0].mxu0
  %v2751 = vadd.f32 %v2638, %v2750
  %v2752 = vpop.f32.mrb[0].mxu0
  %v2753 = vadd.f32 %v2640, %v2752
  %v2754 = vpop.f32.mrb[0].mxu0
  %v2755 = vadd.f32 %v2642, %v2754
  %v2756 = vpop.f32.mrb[0].mxu0
  %v2757 = vadd.f32 %v2644, %v2756
  %2758 = vmatprep.mubr.bf16.mxu0 %v816
  %2759 = vmatmul.mubr.bf16.gmra.mrb[0].mxu0 %v815
  %v2760 = vpop.f32.mrb[0].mxu0
  %v2761 = vadd.f32 %v2648, %v2760
  %v2762 = vpop.f32.mrb[0].mxu0
  %v2763 = vadd.f32 %v2650, %v2762
  %v2764 = vpop.f32.mrb[0].mxu0
  %v2765 = vadd.f32 %v2652, %v2764
  %v2766 = vpop.f32.mrb[0].mxu0
  %v2767 = vadd.f32 %v2654, %v2766
  %2768 = vmatprep.mubr.bf16.mxu0 %v820
  %2769 = vmatmul.mubr.bf16.gmra.mrb[0].mxu0 %v819
  %v2770 = vpop.f32.mrb[0].mxu0
  %v2771 = vadd.f32 %v2658, %v2770
  %v2772 = vpop.f32.mrb[0].mxu0
  %v2773 = vadd.f32 %v2660, %v2772
  %v2774 = vpop.f32.mrb[0].mxu0
  %v2775 = vadd.f32 %v2662, %v2774
  %v2776 = vpop.f32.mrb[0].mxu0
  %v2777 = vadd.f32 %v2664, %v2776
  %2778 = vmatprep.mubr.bf16.mxu0 %v824
  %2779 = vmatmul.mubr.bf16.gmra.mrb[0].mxu0 %v823
  %v2780 = vpop.f32.mrb[0].mxu0
  %v2781 = vadd.f32 %v2668, %v2780
  %v2782 = vpop.f32.mrb[0].mxu0
  %v2783 = vadd.f32 %v2670, %v2782
  %v2784 = vpop.f32.mrb[0].mxu0
  %v2785 = vadd.f32 %v2672, %v2784
  %v2786 = vpop.f32.mrb[0].mxu0
  %v2787 = vadd.f32 %v2674, %v2786
  %2788 = vmatprep.mubr.bf16.mxu0 %v828
  %2789 = vmatmul.mubr.bf16.gmra.mrb[0].mxu0 %v827
  %v2790 = vpop.f32.mrb[0].mxu0
  %v2791 = vadd.f32 %v2678, %v2790
  %v2792 = vpop.f32.mrb[0].mxu0
  %v2793 = vadd.f32 %v2680, %v2792
  %v2794 = vpop.f32.mrb[0].mxu0
  %v2795 = vadd.f32 %v2682, %v2794
  %v2796 = vpop.f32.mrb[0].mxu0
  %v2797 = vadd.f32 %v2684, %v2796
  %2798 = vmatprep.mubr.bf16.mxu0 %v832
  %2799 = vmatmul.mubr.bf16.gmra.mrb[0].mxu0 %v831
  %v2800 = vpop.f32.mrb[0].mxu0
  %v2801 = vadd.f32 %v2688, %v2800
  %v2802 = vpop.f32.mrb[0].mxu0
  %v2803 = vadd.f32 %v2690, %v2802
  %v2804 = vpop.f32.mrb[0].mxu0
  %v2805 = vadd.f32 %v2692, %v2804
  %v2806 = vpop.f32.mrb[0].mxu0
  %v2807 = vadd.f32 %v2694, %v2806
  %2808 = vmatprep.mubr.bf16.mxu0 %v836
  %2809 = vmatmul.mubr.bf16.gmra.mrb[0].mxu0 %v835
  %v2810 = vpop.f32.mrb[0].mxu0
  %v2811 = vadd.f32 %v2698, %v2810
  %v2812 = vpop.f32.mrb[0].mxu0
  %v2813 = vadd.f32 %v2700, %v2812
  %v2814 = vpop.f32.mrb[0].mxu0
  %v2815 = vadd.f32 %v2702, %v2814
  %v2816 = vpop.f32.mrb[0].mxu0
  %v2817 = vadd.f32 %v2704, %v2816
  %2818 = vmatprep.mubr.bf16.mxu0 %v840
  %2819 = vmatmul.mubr.bf16.gmra.mrb[0].mxu0 %v839
  %v2820 = vpop.f32.mrb[0].mxu0
  %v2821 = vadd.f32 %v2708, %v2820
  %v2822 = vpop.f32.mrb[0].mxu0
  %v2823 = vadd.f32 %v2710, %v2822
  %v2824 = vpop.f32.mrb[0].mxu0
  %v2825 = vadd.f32 %v2712, %v2824
  %v2826 = vpop.f32.mrb[0].mxu0
  %v2827 = vadd.f32 %v2714, %v2826
  %2828 = vdwg.mxu0
  %2829 = vmatprep.subr.bf16.mxu0 %v1870
  %2830 = vmatpush1.bf16.msra.mxu0 %v1869
  %2831 = vmatprep.subr.bf16.mxu0 %v1878
  %2832 = vmatpush1.bf16.msra.mxu0 %v1877
  %2833 = vmatprep.subr.bf16.mxu0 %v1886
  %2834 = vmatpush1.bf16.msra.mxu0 %v1885
  %2835 = vmatprep.subr.bf16.mxu0 %v1894
  %2836 = vmatpush1.bf16.msra.mxu0 %v1893
  %2837 = vmatprep.subr.bf16.mxu0 %v1902
  %2838 = vmatpush1.bf16.msra.mxu0 %v1901
  %2839 = vmatprep.subr.bf16.mxu0 %v1910
  %2840 = vmatpush1.bf16.msra.mxu0 %v1909
  %2841 = vmatprep.subr.bf16.mxu0 %v1918
  %2842 = vmatpush1.bf16.msra.mxu0 %v1917
  %2843 = vmatprep.subr.bf16.mxu0 %v1926
  %2844 = vmatpush1.bf16.msra.mxu0 %v1925
  %2845 = vmatprep.subr.bf16.mxu0 %v1934
  %2846 = vmatpush1.bf16.msra.mxu0 %v1933
  %2847 = vmatprep.subr.bf16.mxu0 %v1942
  %2848 = vmatpush1.bf16.msra.mxu0 %v1941
  %2849 = vmatprep.subr.bf16.mxu0 %v1950
  %2850 = vmatpush1.bf16.msra.mxu0 %v1949
  %2851 = vmatprep.subr.bf16.mxu0 %v1958
  %2852 = vmatpush1.bf16.msra.mxu0 %v1957
  %2853 = vmatprep.subr.bf16.mxu0 %v1966
  %2854 = vmatpush1.bf16.msra.mxu0 %v1965
  %2855 = vmatprep.subr.bf16.mxu0 %v1974
  %2856 = vmatpush1.bf16.msra.mxu0 %v1973
  %2857 = vmatprep.subr.bf16.mxu0 %v1982
  %2858 = vmatpush1.bf16.msra.mxu0 %v1981
  %2859 = vmatprep.subr.bf16.mxu0 %v1990
  %2860 = vmatpush1.bf16.msra.mxu0 %v1989
  %2861 = vmatprep.mubr.bf16.mxu0 %v810
  %2862 = vmatmul.mubr.bf16.gmra.mrb[0].mxu0 %v809
  %v2863 = vpop.f32.mrb[0].mxu0
  %v2864 = vadd.f32 0.0, %v2863
  %v2865 = vpop.f32.mrb[0].mxu0
  %v2866 = vadd.f32 0.0, %v2865
  %v2867 = vpop.f32.mrb[0].mxu0
  %v2868 = vadd.f32 0.0, %v2867
  %v2869 = vpop.f32.mrb[0].mxu0
  %v2870 = vadd.f32 0.0, %v2869
  %2871 = vmatprep.mubr.bf16.mxu0 %v814
  %2872 = vmatmul.mubr.bf16.gmra.mrb[0].mxu0 %v813
  %v2873 = vpop.f32.mrb[0].mxu0
  %v2874 = vadd.f32 0.0, %v2873
  %v2875 = vpop.f32.mrb[0].mxu0
  %v2876 = vadd.f32 0.0, %v2875
  %v2877 = vpop.f32.mrb[0].mxu0
  %v2878 = vadd.f32 0.0, %v2877
  %v2879 = vpop.f32.mrb[0].mxu0
  %v2880 = vadd.f32 0.0, %v2879
  %2881 = vmatprep.mubr.bf16.mxu0 %v818
  %2882 = vmatmul.mubr.bf16.gmra.mrb[0].mxu0 %v817
  %v2883 = vpop.f32.mrb[0].mxu0
  %v2884 = vadd.f32 0.0, %v2883
  %v2885 = vpop.f32.mrb[0].mxu0
  %v2886 = vadd.f32 0.0, %v2885
  %v2887 = vpop.f32.mrb[0].mxu0
  %v2888 = vadd.f32 0.0, %v2887
  %v2889 = vpop.f32.mrb[0].mxu0
  %v2890 = vadd.f32 0.0, %v2889
  %2891 = vmatprep.mubr.bf16.mxu0 %v822
  %2892 = vmatmul.mubr.bf16.gmra.mrb[0].mxu0 %v821
  %v2893 = vpop.f32.mrb[0].mxu0
  %v2894 = vadd.f32 0.0, %v2893
  %v2895 = vpop.f32.mrb[0].mxu0
  %v2896 = vadd.f32 0.0, %v2895
  %v2897 = vpop.f32.mrb[0].mxu0
  %v2898 = vadd.f32 0.0, %v2897
  %v2899 = vpop.f32.mrb[0].mxu0
  %v2900 = vadd.f32 0.0, %v2899
  %2901 = vmatprep.mubr.bf16.mxu0 %v826
  %2902 = vmatmul.mubr.bf16.gmra.mrb[0].mxu0 %v825
  %v2903 = vpop.f32.mrb[0].mxu0
  %v2904 = vadd.f32 0.0, %v2903
  %v2905 = vpop.f32.mrb[0].mxu0
  %v2906 = vadd.f32 0.0, %v2905
  %v2907 = vpop.f32.mrb[0].mxu0
  %v2908 = vadd.f32 0.0, %v2907
  %v2909 = vpop.f32.mrb[0].mxu0
  %v2910 = vadd.f32 0.0, %v2909
  %2911 = vmatprep.mubr.bf16.mxu0 %v830
  %2912 = vmatmul.mubr.bf16.gmra.mrb[0].mxu0 %v829
  %v2913 = vpop.f32.mrb[0].mxu0
  %v2914 = vadd.f32 0.0, %v2913
  %v2915 = vpop.f32.mrb[0].mxu0
  %v2916 = vadd.f32 0.0, %v2915
  %v2917 = vpop.f32.mrb[0].mxu0
  %v2918 = vadd.f32 0.0, %v2917
  %v2919 = vpop.f32.mrb[0].mxu0
  %v2920 = vadd.f32 0.0, %v2919
  %2921 = vmatprep.mubr.bf16.mxu0 %v834
  %2922 = vmatmul.mubr.bf16.gmra.mrb[0].mxu0 %v833
  %v2923 = vpop.f32.mrb[0].mxu0
  %v2924 = vadd.f32 0.0, %v2923
  %v2925 = vpop.f32.mrb[0].mxu0
  %v2926 = vadd.f32 0.0, %v2925
  %v2927 = vpop.f32.mrb[0].mxu0
  %v2928 = vadd.f32 0.0, %v2927
  %v2929 = vpop.f32.mrb[0].mxu0
  %v2930 = vadd.f32 0.0, %v2929
  %2931 = vmatprep.mubr.bf16.mxu0 %v838
  %2932 = vmatmul.mubr.bf16.gmra.mrb[0].mxu0 %v837
  %v2933 = vpop.f32.mrb[0].mxu0
  %v2934 = vadd.f32 0.0, %v2933
  %v2935 = vpop.f32.mrb[0].mxu0
  %v2936 = vadd.f32 0.0, %v2935
  %v2937 = vpop.f32.mrb[0].mxu0
  %v2938 = vadd.f32 0.0, %v2937
  %v2939 = vpop.f32.mrb[0].mxu0
  %v2940 = vadd.f32 0.0, %v2939
  %2941 = vdwg.mxu0
  %2942 = vmatprep.subr.bf16.mxu0 %v1998
  %2943 = vmatpush1.bf16.msra.mxu0 %v1997
  %2944 = vmatprep.subr.bf16.mxu0 %v2006
  %2945 = vmatpush1.bf16.msra.mxu0 %v2005
  %2946 = vmatprep.subr.bf16.mxu0 %v2014
  %2947 = vmatpush1.bf16.msra.mxu0 %v2013
  %2948 = vmatprep.subr.bf16.mxu0 %v2022
  %2949 = vmatpush1.bf16.msra.mxu0 %v2021
  %2950 = vmatprep.subr.bf16.mxu0 %v2030
  %2951 = vmatpush1.bf16.msra.mxu0 %v2029
  %2952 = vmatprep.subr.bf16.mxu0 %v2038
  %2953 = vmatpush1.bf16.msra.mxu0 %v2037
  %2954 = vmatprep.subr.bf16.mxu0 %v2046
  %2955 = vmatpush1.bf16.msra.mxu0 %v2045
  %2956 = vmatprep.subr.bf16.mxu0 %v2054
  %2957 = vmatpush1.bf16.msra.mxu0 %v2053
  %2958 = vmatprep.subr.bf16.mxu0 %v2062
  %2959 = vmatpush1.bf16.msra.mxu0 %v2061
  %2960 = vmatprep.subr.bf16.mxu0 %v2070
  %2961 = vmatpush1.bf16.msra.mxu0 %v2069
  %2962 = vmatprep.subr.bf16.mxu0 %v2078
  %2963 = vmatpush1.bf16.msra.mxu0 %v2077
  %2964 = vmatprep.subr.bf16.mxu0 %v2086
  %2965 = vmatpush1.bf16.msra.mxu0 %v2085
  %2966 = vmatprep.subr.bf16.mxu0 %v2094
  %2967 = vmatpush1.bf16.msra.mxu0 %v2093
  %2968 = vmatprep.subr.bf16.mxu0 %v2102
  %2969 = vmatpush1.bf16.msra.mxu0 %v2101
  %2970 = vmatprep.subr.bf16.mxu0 %v2110
  %2971 = vmatpush1.bf16.msra.mxu0 %v2109
  %2972 = vmatprep.subr.bf16.mxu0 %v2118
  %2973 = vmatpush1.bf16.msra.mxu0 %v2117
  %2974 = vmatprep.mubr.bf16.mxu0 %v812
  %2975 = vmatmul.mubr.bf16.gmra.mrb[0].mxu0 %v811
  %v2976 = vpop.f32.mrb[0].mxu0
  %v2977 = vadd.f32 %v2864, %v2976
  %v2978 = vpop.f32.mrb[0].mxu0
  %v2979 = vadd.f32 %v2866, %v2978
  %v2980 = vpop.f32.mrb[0].mxu0
  %v2981 = vadd.f32 %v2868, %v2980
  %v2982 = vpop.f32.mrb[0].mxu0
  %v2983 = vadd.f32 %v2870, %v2982
  %2984 = vmatprep.mubr.bf16.mxu0 %v816
  %2985 = vmatmul.mubr.bf16.gmra.mrb[0].mxu0 %v815
  %v2986 = vpop.f32.mrb[0].mxu0
  %v2987 = vadd.f32 %v2874, %v2986
  %v2988 = vpop.f32.mrb[0].mxu0
  %v2989 = vadd.f32 %v2876, %v2988
  %v2990 = vpop.f32.mrb[0].mxu0
  %v2991 = vadd.f32 %v2878, %v2990
  %v2992 = vpop.f32.mrb[0].mxu0
  %v2993 = vadd.f32 %v2880, %v2992
  %2994 = vmatprep.mubr.bf16.mxu0 %v820
  %2995 = vmatmul.mubr.bf16.gmra.mrb[0].mxu0 %v819
  %v2996 = vpop.f32.mrb[0].mxu0
  %v2997 = vadd.f32 %v2884, %v2996
  %v2998 = vpop.f32.mrb[0].mxu0
  %v2999 = vadd.f32 %v2886, %v2998
  %v3000 = vpop.f32.mrb[0].mxu0
  %v3001 = vadd.f32 %v2888, %v3000
  %v3002 = vpop.f32.mrb[0].mxu0
  %v3003 = vadd.f32 %v2890, %v3002
  %3004 = vmatprep.mubr.bf16.mxu0 %v824
  %3005 = vmatmul.mubr.bf16.gmra.mrb[0].mxu0 %v823
  %v3006 = vpop.f32.mrb[0].mxu0
  %v3007 = vadd.f32 %v2894, %v3006
  %v3008 = vpop.f32.mrb[0].mxu0
  %v3009 = vadd.f32 %v2896, %v3008
  %v3010 = vpop.f32.mrb[0].mxu0
  %v3011 = vadd.f32 %v2898, %v3010
  %v3012 = vpop.f32.mrb[0].mxu0
  %v3013 = vadd.f32 %v2900, %v3012
  %3014 = vmatprep.mubr.bf16.mxu0 %v828
  %3015 = vmatmul.mubr.bf16.gmra.mrb[0].mxu0 %v827
  %v3016 = vpop.f32.mrb[0].mxu0
  %v3017 = vadd.f32 %v2904, %v3016
  %v3018 = vpop.f32.mrb[0].mxu0
  %v3019 = vadd.f32 %v2906, %v3018
  %v3020 = vpop.f32.mrb[0].mxu0
  %v3021 = vadd.f32 %v2908, %v3020
  %v3022 = vpop.f32.mrb[0].mxu0
  %v3023 = vadd.f32 %v2910, %v3022
  %3024 = vmatprep.mubr.bf16.mxu0 %v832
  %3025 = vmatmul.mubr.bf16.gmra.mrb[0].mxu0 %v831
  %v3026 = vpop.f32.mrb[0].mxu0
  %v3027 = vadd.f32 %v2914, %v3026
  %v3028 = vpop.f32.mrb[0].mxu0
  %v3029 = vadd.f32 %v2916, %v3028
  %v3030 = vpop.f32.mrb[0].mxu0
  %v3031 = vadd.f32 %v2918, %v3030
  %v3032 = vpop.f32.mrb[0].mxu0
  %v3033 = vadd.f32 %v2920, %v3032
  %3034 = vmatprep.mubr.bf16.mxu0 %v836
  %3035 = vmatmul.mubr.bf16.gmra.mrb[0].mxu0 %v835
  %v3036 = vpop.f32.mrb[0].mxu0
  %v3037 = vadd.f32 %v2924, %v3036
  %v3038 = vpop.f32.mrb[0].mxu0
  %v3039 = vadd.f32 %v2926, %v3038
  %v3040 = vpop.f32.mrb[0].mxu0
  %v3041 = vadd.f32 %v2928, %v3040
  %v3042 = vpop.f32.mrb[0].mxu0
  %v3043 = vadd.f32 %v2930, %v3042
  %3044 = vmatprep.mubr.bf16.mxu0 %v840
  %3045 = vmatmul.mubr.bf16.gmra.mrb[0].mxu0 %v839
  %v3046 = vpop.f32.mrb[0].mxu0
  %v3047 = vadd.f32 %v2934, %v3046
  %v3048 = vpop.f32.mrb[0].mxu0
  %v3049 = vadd.f32 %v2936, %v3048
  %v3050 = vpop.f32.mrb[0].mxu0
  %v3051 = vadd.f32 %v2938, %v3050
  %v3052 = vpop.f32.mrb[0].mxu0
  %v3053 = vadd.f32 %v2940, %v3052
  %3054 = vdwg.mxu0
  %3055 = vmatprep.subr.bf16.mxu0 %v1872
  %3056 = vmatpush1.bf16.msra.mxu0 %v1871
  %3057 = vmatprep.subr.bf16.mxu0 %v1880
  %3058 = vmatpush1.bf16.msra.mxu0 %v1879
  %3059 = vmatprep.subr.bf16.mxu0 %v1888
  %3060 = vmatpush1.bf16.msra.mxu0 %v1887
  %3061 = vmatprep.subr.bf16.mxu0 %v1896
  %3062 = vmatpush1.bf16.msra.mxu0 %v1895
  %3063 = vmatprep.subr.bf16.mxu0 %v1904
  %3064 = vmatpush1.bf16.msra.mxu0 %v1903
  %3065 = vmatprep.subr.bf16.mxu0 %v1912
  %3066 = vmatpush1.bf16.msra.mxu0 %v1911
  %3067 = vmatprep.subr.bf16.mxu0 %v1920
  %3068 = vmatpush1.bf16.msra.mxu0 %v1919
  %3069 = vmatprep.subr.bf16.mxu0 %v1928
  %3070 = vmatpush1.bf16.msra.mxu0 %v1927
  %3071 = vmatprep.subr.bf16.mxu0 %v1936
  %3072 = vmatpush1.bf16.msra.mxu0 %v1935
  %3073 = vmatprep.subr.bf16.mxu0 %v1944
  %3074 = vmatpush1.bf16.msra.mxu0 %v1943
  %3075 = vmatprep.subr.bf16.mxu0 %v1952
  %3076 = vmatpush1.bf16.msra.mxu0 %v1951
  %3077 = vmatprep.subr.bf16.mxu0 %v1960
  %3078 = vmatpush1.bf16.msra.mxu0 %v1959
  %3079 = vmatprep.subr.bf16.mxu0 %v1968
  %3080 = vmatpush1.bf16.msra.mxu0 %v1967
  %3081 = vmatprep.subr.bf16.mxu0 %v1976
  %3082 = vmatpush1.bf16.msra.mxu0 %v1975
  %3083 = vmatprep.subr.bf16.mxu0 %v1984
  %3084 = vmatpush1.bf16.msra.mxu0 %v1983
  %3085 = vmatprep.subr.bf16.mxu0 %v1992
  %3086 = vmatpush1.bf16.msra.mxu0 %v1991
  %3087 = vmatprep.mubr.bf16.mxu0 %v810
  %3088 = vmatmul.mubr.bf16.gmra.mrb[0].mxu0 %v809
  %v3089 = vpop.f32.mrb[0].mxu0
  %v3090 = vadd.f32 0.0, %v3089
  %v3091 = vpop.f32.mrb[0].mxu0
  %v3092 = vadd.f32 0.0, %v3091
  %v3093 = vpop.f32.mrb[0].mxu0
  %v3094 = vadd.f32 0.0, %v3093
  %v3095 = vpop.f32.mrb[0].mxu0
  %v3096 = vadd.f32 0.0, %v3095
  %3097 = vmatprep.mubr.bf16.mxu0 %v814
  %3098 = vmatmul.mubr.bf16.gmra.mrb[0].mxu0 %v813
  %v3099 = vpop.f32.mrb[0].mxu0
  %v3100 = vadd.f32 0.0, %v3099
  %v3101 = vpop.f32.mrb[0].mxu0
  %v3102 = vadd.f32 0.0, %v3101
  %v3103 = vpop.f32.mrb[0].mxu0
  %v3104 = vadd.f32 0.0, %v3103
  %v3105 = vpop.f32.mrb[0].mxu0
  %v3106 = vadd.f32 0.0, %v3105
  %3107 = vmatprep.mubr.bf16.mxu0 %v818
  %3108 = vmatmul.mubr.bf16.gmra.mrb[0].mxu0 %v817
  %v3109 = vpop.f32.mrb[0].mxu0
  %v3110 = vadd.f32 0.0, %v3109
  %v3111 = vpop.f32.mrb[0].mxu0
  %v3112 = vadd.f32 0.0, %v3111
  %v3113 = vpop.f32.mrb[0].mxu0
  %v3114 = vadd.f32 0.0, %v3113
  %v3115 = vpop.f32.mrb[0].mxu0
  %v3116 = vadd.f32 0.0, %v3115
  %3117 = vmatprep.mubr.bf16.mxu0 %v822
  %3118 = vmatmul.mubr.bf16.gmra.mrb[0].mxu0 %v821
  %v3119 = vpop.f32.mrb[0].mxu0
  %v3120 = vadd.f32 0.0, %v3119
  %v3121 = vpop.f32.mrb[0].mxu0
  %v3122 = vadd.f32 0.0, %v3121
  %v3123 = vpop.f32.mrb[0].mxu0
  %v3124 = vadd.f32 0.0, %v3123
  %v3125 = vpop.f32.mrb[0].mxu0
  %v3126 = vadd.f32 0.0, %v3125
  %3127 = vmatprep.mubr.bf16.mxu0 %v826
  %3128 = vmatmul.mubr.bf16.gmra.mrb[0].mxu0 %v825
  %v3129 = vpop.f32.mrb[0].mxu0
  %v3130 = vadd.f32 0.0, %v3129
  %v3131 = vpop.f32.mrb[0].mxu0
  %v3132 = vadd.f32 0.0, %v3131
  %v3133 = vpop.f32.mrb[0].mxu0
  %v3134 = vadd.f32 0.0, %v3133
  %v3135 = vpop.f32.mrb[0].mxu0
  %v3136 = vadd.f32 0.0, %v3135
  %3137 = vmatprep.mubr.bf16.mxu0 %v830
  %3138 = vmatmul.mubr.bf16.gmra.mrb[0].mxu0 %v829
  %v3139 = vpop.f32.mrb[0].mxu0
  %v3140 = vadd.f32 0.0, %v3139
  %v3141 = vpop.f32.mrb[0].mxu0
  %v3142 = vadd.f32 0.0, %v3141
  %v3143 = vpop.f32.mrb[0].mxu0
  %v3144 = vadd.f32 0.0, %v3143
  %v3145 = vpop.f32.mrb[0].mxu0
  %v3146 = vadd.f32 0.0, %v3145
  %3147 = vmatprep.mubr.bf16.mxu0 %v834
  %3148 = vmatmul.mubr.bf16.gmra.mrb[0].mxu0 %v833
  %v3149 = vpop.f32.mrb[0].mxu0
  %v3150 = vadd.f32 0.0, %v3149
  %v3151 = vpop.f32.mrb[0].mxu0
  %v3152 = vadd.f32 0.0, %v3151
  %v3153 = vpop.f32.mrb[0].mxu0
  %v3154 = vadd.f32 0.0, %v3153
  %v3155 = vpop.f32.mrb[0].mxu0
  %v3156 = vadd.f32 0.0, %v3155
  %3157 = vmatprep.mubr.bf16.mxu0 %v838
  %3158 = vmatmul.mubr.bf16.gmra.mrb[0].mxu0 %v837
  %v3159 = vpop.f32.mrb[0].mxu0
  %v3160 = vadd.f32 0.0, %v3159
  %v3161 = vpop.f32.mrb[0].mxu0
  %v3162 = vadd.f32 0.0, %v3161
  %v3163 = vpop.f32.mrb[0].mxu0
  %v3164 = vadd.f32 0.0, %v3163
  %v3165 = vpop.f32.mrb[0].mxu0
  %v3166 = vadd.f32 0.0, %v3165
  %3167 = vdwg.mxu0
  %3168 = vmatprep.subr.bf16.mxu0 %v2000
  %3169 = vmatpush1.bf16.msra.mxu0 %v1999
  %3170 = vmatprep.subr.bf16.mxu0 %v2008
  %3171 = vmatpush1.bf16.msra.mxu0 %v2007
  %3172 = vmatprep.subr.bf16.mxu0 %v2016
  %3173 = vmatpush1.bf16.msra.mxu0 %v2015
  %3174 = vmatprep.subr.bf16.mxu0 %v2024
  %3175 = vmatpush1.bf16.msra.mxu0 %v2023
  %3176 = vmatprep.subr.bf16.mxu0 %v2032
  %3177 = vmatpush1.bf16.msra.mxu0 %v2031
  %3178 = vmatprep.subr.bf16.mxu0 %v2040
  %3179 = vmatpush1.bf16.msra.mxu0 %v2039
  %3180 = vmatprep.subr.bf16.mxu0 %v2048
  %3181 = vmatpush1.bf16.msra.mxu0 %v2047
  %3182 = vmatprep.subr.bf16.mxu0 %v2056
  %3183 = vmatpush1.bf16.msra.mxu0 %v2055
  %3184 = vmatprep.subr.bf16.mxu0 %v2064
  %3185 = vmatpush1.bf16.msra.mxu0 %v2063
  %3186 = vmatprep.subr.bf16.mxu0 %v2072
  %3187 = vmatpush1.bf16.msra.mxu0 %v2071
  %3188 = vmatprep.subr.bf16.mxu0 %v2080
  %3189 = vmatpush1.bf16.msra.mxu0 %v2079
  %3190 = vmatprep.subr.bf16.mxu0 %v2088
  %3191 = vmatpush1.bf16.msra.mxu0 %v2087
  %3192 = vmatprep.subr.bf16.mxu0 %v2096
  %3193 = vmatpush1.bf16.msra.mxu0 %v2095
  %3194 = vmatprep.subr.bf16.mxu0 %v2104
  %3195 = vmatpush1.bf16.msra.mxu0 %v2103
  %3196 = vmatprep.subr.bf16.mxu0 %v2112
  %3197 = vmatpush1.bf16.msra.mxu0 %v2111
  %3198 = vmatprep.subr.bf16.mxu0 %v2120
  %3199 = vmatpush1.bf16.msra.mxu0 %v2119
  %3200 = vmatprep.mubr.bf16.mxu0 %v812
  %3201 = vmatmul.mubr.bf16.gmra.mrb[0].mxu0 %v811
  %v3202 = vpop.f32.mrb[0].mxu0
  %v3203 = vadd.f32 %v3090, %v3202
  %v3204 = vpop.f32.mrb[0].mxu0
  %v3205 = vadd.f32 %v3092, %v3204
  %v3206 = vpop.f32.mrb[0].mxu0
  %v3207 = vadd.f32 %v3094, %v3206
  %v3208 = vpop.f32.mrb[0].mxu0
  %v3209 = vadd.f32 %v3096, %v3208
  %3210 = vmatprep.mubr.bf16.mxu0 %v816
  %3211 = vmatmul.mubr.bf16.gmra.mrb[0].mxu0 %v815
  %v3212 = vpop.f32.mrb[0].mxu0
  %v3213 = vadd.f32 %v3100, %v3212
  %v3214 = vpop.f32.mrb[0].mxu0
  %v3215 = vadd.f32 %v3102, %v3214
  %v3216 = vpop.f32.mrb[0].mxu0
  %v3217 = vadd.f32 %v3104, %v3216
  %v3218 = vpop.f32.mrb[0].mxu0
  %v3219 = vadd.f32 %v3106, %v3218
  %3220 = vmatprep.mubr.bf16.mxu0 %v820
  %3221 = vmatmul.mubr.bf16.gmra.mrb[0].mxu0 %v819
  %v3222 = vpop.f32.mrb[0].mxu0
  %v3223 = vadd.f32 %v3110, %v3222
  %v3224 = vpop.f32.mrb[0].mxu0
  %v3225 = vadd.f32 %v3112, %v3224
  %v3226 = vpop.f32.mrb[0].mxu0
  %v3227 = vadd.f32 %v3114, %v3226
  %v3228 = vpop.f32.mrb[0].mxu0
  %v3229 = vadd.f32 %v3116, %v3228
  %3230 = vmatprep.mubr.bf16.mxu0 %v824
  %3231 = vmatmul.mubr.bf16.gmra.mrb[0].mxu0 %v823
  %v3232 = vpop.f32.mrb[0].mxu0
  %v3233 = vadd.f32 %v3120, %v3232
  %v3234 = vpop.f32.mrb[0].mxu0
  %v3235 = vadd.f32 %v3122, %v3234
  %v3236 = vpop.f32.mrb[0].mxu0
  %v3237 = vadd.f32 %v3124, %v3236
  %v3238 = vpop.f32.mrb[0].mxu0
  %v3239 = vadd.f32 %v3126, %v3238
  %3240 = vmatprep.mubr.bf16.mxu0 %v828
  %3241 = vmatmul.mubr.bf16.gmra.mrb[0].mxu0 %v827
  %v3242 = vpop.f32.mrb[0].mxu0
  %v3243 = vadd.f32 %v3130, %v3242
  %v3244 = vpop.f32.mrb[0].mxu0
  %v3245 = vadd.f32 %v3132, %v3244
  %v3246 = vpop.f32.mrb[0].mxu0
  %v3247 = vadd.f32 %v3134, %v3246
  %v3248 = vpop.f32.mrb[0].mxu0
  %v3249 = vadd.f32 %v3136, %v3248
  %3250 = vmatprep.mubr.bf16.mxu0 %v832
  %3251 = vmatmul.mubr.bf16.gmra.mrb[0].mxu0 %v831
  %v3252 = vpop.f32.mrb[0].mxu0
  %v3253 = vadd.f32 %v3140, %v3252
  %v3254 = vpop.f32.mrb[0].mxu0
  %v3255 = vadd.f32 %v3142, %v3254
  %v3256 = vpop.f32.mrb[0].mxu0
  %v3257 = vadd.f32 %v3144, %v3256
  %v3258 = vpop.f32.mrb[0].mxu0
  %v3259 = vadd.f32 %v3146, %v3258
  %3260 = vmatprep.mubr.bf16.mxu0 %v836
  %3261 = vmatmul.mubr.bf16.gmra.mrb[0].mxu0 %v835
  %v3262 = vpop.f32.mrb[0].mxu0
  %v3263 = vadd.f32 %v3150, %v3262
  %v3264 = vpop.f32.mrb[0].mxu0
  %v3265 = vadd.f32 %v3152, %v3264
  %v3266 = vpop.f32.mrb[0].mxu0
  %v3267 = vadd.f32 %v3154, %v3266
  %v3268 = vpop.f32.mrb[0].mxu0
  %v3269 = vadd.f32 %v3156, %v3268
  %3270 = vmatprep.mubr.bf16.mxu0 %v840
  %3271 = vmatmul.mubr.bf16.gmra.mrb[0].mxu0 %v839
  %v3272 = vpop.f32.mrb[0].mxu0
  %v3273 = vadd.f32 %v3160, %v3272
  %v3274 = vpop.f32.mrb[0].mxu0
  %v3275 = vadd.f32 %v3162, %v3274
  %v3276 = vpop.f32.mrb[0].mxu0
  %v3277 = vadd.f32 %v3164, %v3276
  %v3278 = vpop.f32.mrb[0].mxu0
  %v3279 = vadd.f32 %v3166, %v3278
  %3280 = vdwg.mxu0
  %v3281 = vpack.c.bf16 %v2529, %v2525
  %v3282 = vpack.c.bf16 %v2531, %v2527
  %v3283 = vpack.c.bf16 %v2755, %v2751
  %v3284 = vpack.c.bf16 %v2757, %v2753
  %v3285 = vpack.c.bf16 %v2981, %v2977
  %v3286 = vpack.c.bf16 %v2983, %v2979
  %v3287 = vpack.c.bf16 %v3207, %v3203
  %v3288 = vpack.c.bf16 %v3209, %v3205
  %v3289 = vpack.c.bf16 %v2539, %v2535
  %v3290 = vpack.c.bf16 %v2541, %v2537
  %v3291 = vpack.c.bf16 %v2765, %v2761
  %v3292 = vpack.c.bf16 %v2767, %v2763
  %v3293 = vpack.c.bf16 %v2991, %v2987
  %v3294 = vpack.c.bf16 %v2993, %v2989
  %v3295 = vpack.c.bf16 %v3217, %v3213
  %v3296 = vpack.c.bf16 %v3219, %v3215
  %v3297 = vpack.c.bf16 %v2549, %v2545
  %v3298 = vpack.c.bf16 %v2551, %v2547
  %v3299 = vpack.c.bf16 %v2775, %v2771
  %v3300 = vpack.c.bf16 %v2777, %v2773
  %v3301 = vpack.c.bf16 %v3001, %v2997
  %v3302 = vpack.c.bf16 %v3003, %v2999
  %v3303 = vpack.c.bf16 %v3227, %v3223
  %v3304 = vpack.c.bf16 %v3229, %v3225
  %v3305 = vpack.c.bf16 %v2559, %v2555
  %v3306 = vpack.c.bf16 %v2561, %v2557
  %v3307 = vpack.c.bf16 %v2785, %v2781
  %v3308 = vpack.c.bf16 %v2787, %v2783
  %v3309 = vpack.c.bf16 %v3011, %v3007
  %v3310 = vpack.c.bf16 %v3013, %v3009
  %v3311 = vpack.c.bf16 %v3237, %v3233
  %v3312 = vpack.c.bf16 %v3239, %v3235
  %v3313 = vpack.c.bf16 %v2569, %v2565
  %v3314 = vpack.c.bf16 %v2571, %v2567
  %v3315 = vpack.c.bf16 %v2795, %v2791
  %v3316 = vpack.c.bf16 %v2797, %v2793
  %v3317 = vpack.c.bf16 %v3021, %v3017
  %v3318 = vpack.c.bf16 %v3023, %v3019
  %v3319 = vpack.c.bf16 %v3247, %v3243
  %v3320 = vpack.c.bf16 %v3249, %v3245
  %v3321 = vpack.c.bf16 %v2579, %v2575
  %v3322 = vpack.c.bf16 %v2581, %v2577
  %v3323 = vpack.c.bf16 %v2805, %v2801
  %v3324 = vpack.c.bf16 %v2807, %v2803
  %v3325 = vpack.c.bf16 %v3031, %v3027
  %v3326 = vpack.c.bf16 %v3033, %v3029
  %v3327 = vpack.c.bf16 %v3257, %v3253
  %v3328 = vpack.c.bf16 %v3259, %v3255
  %v3329 = vpack.c.bf16 %v2589, %v2585
  %v3330 = vpack.c.bf16 %v2591, %v2587
  %v3331 = vpack.c.bf16 %v2815, %v2811
  %v3332 = vpack.c.bf16 %v2817, %v2813
  %v3333 = vpack.c.bf16 %v3041, %v3037
  %v3334 = vpack.c.bf16 %v3043, %v3039
  %v3335 = vpack.c.bf16 %v3267, %v3263
  %v3336 = vpack.c.bf16 %v3269, %v3265
  %v3337 = vpack.c.bf16 %v2599, %v2595
  %v3338 = vpack.c.bf16 %v2601, %v2597
  %v3339 = vpack.c.bf16 %v2825, %v2821
  %v3340 = vpack.c.bf16 %v2827, %v2823
  %v3341 = vpack.c.bf16 %v3051, %v3047
  %v3342 = vpack.c.bf16 %v3053, %v3049
  %v3343 = vpack.c.bf16 %v3277, %v3273
  %v3344 = vpack.c.bf16 %v3279, %v3275
  %v3409 = vunpack.c.l.b16 %v3281
  %v3410 = vunpack.c.l.b16 %v3282
  %v3411 = vunpack.c.l.b16 %v3283
  %v3412 = vunpack.c.l.b16 %v3284
  %v3413 = vunpack.c.l.b16 %v3285
  %v3414 = vunpack.c.l.b16 %v3286
  %v3415 = vunpack.c.l.b16 %v3287
  %v3416 = vunpack.c.l.b16 %v3288
  %v3417 = vunpack.c.h.b16 %v3281
  %v3418 = vunpack.c.h.b16 %v3282
  %v3419 = vunpack.c.h.b16 %v3283
  %v3420 = vunpack.c.h.b16 %v3284
  %v3421 = vunpack.c.h.b16 %v3285
  %v3422 = vunpack.c.h.b16 %v3286
  %v3423 = vunpack.c.h.b16 %v3287
  %v3424 = vunpack.c.h.b16 %v3288
  %v3425 = vunpack.c.l.b16 %v3289
  %v3426 = vunpack.c.l.b16 %v3290
  %v3427 = vunpack.c.l.b16 %v3291
  %v3428 = vunpack.c.l.b16 %v3292
  %v3429 = vunpack.c.l.b16 %v3293
  %v3430 = vunpack.c.l.b16 %v3294
  %v3431 = vunpack.c.l.b16 %v3295
  %v3432 = vunpack.c.l.b16 %v3296
  %v3433 = vunpack.c.h.b16 %v3289
  %v3434 = vunpack.c.h.b16 %v3290
  %v3435 = vunpack.c.h.b16 %v3291
  %v3436 = vunpack.c.h.b16 %v3292
  %v3437 = vunpack.c.h.b16 %v3293
  %v3438 = vunpack.c.h.b16 %v3294
  %v3439 = vunpack.c.h.b16 %v3295
  %v3440 = vunpack.c.h.b16 %v3296
  %v3441 = vunpack.c.l.b16 %v3297
  %v3442 = vunpack.c.l.b16 %v3298
  %v3443 = vunpack.c.l.b16 %v3299
  %v3444 = vunpack.c.l.b16 %v3300
  %v3445 = vunpack.c.l.b16 %v3301
  %v3446 = vunpack.c.l.b16 %v3302
  %v3447 = vunpack.c.l.b16 %v3303
  %v3448 = vunpack.c.l.b16 %v3304
  %v3449 = vunpack.c.h.b16 %v3297
  %v3450 = vunpack.c.h.b16 %v3298
  %v3451 = vunpack.c.h.b16 %v3299
  %v3452 = vunpack.c.h.b16 %v3300
  %v3453 = vunpack.c.h.b16 %v3301
  %v3454 = vunpack.c.h.b16 %v3302
  %v3455 = vunpack.c.h.b16 %v3303
  %v3456 = vunpack.c.h.b16 %v3304
  %v3457 = vunpack.c.l.b16 %v3305
  %v3458 = vunpack.c.l.b16 %v3306
  %v3459 = vunpack.c.l.b16 %v3307
  %v3460 = vunpack.c.l.b16 %v3308
  %v3461 = vunpack.c.l.b16 %v3309
  %v3462 = vunpack.c.l.b16 %v3310
  %v3463 = vunpack.c.l.b16 %v3311
  %v3464 = vunpack.c.l.b16 %v3312
  %v3465 = vunpack.c.h.b16 %v3305
  %v3466 = vunpack.c.h.b16 %v3306
  %v3467 = vunpack.c.h.b16 %v3307
  %v3468 = vunpack.c.h.b16 %v3308
  %v3469 = vunpack.c.h.b16 %v3309
  %v3470 = vunpack.c.h.b16 %v3310
  %v3471 = vunpack.c.h.b16 %v3311
  %v3472 = vunpack.c.h.b16 %v3312
  %v3473 = vunpack.c.l.b16 %v3313
  %v3474 = vunpack.c.l.b16 %v3314
  %v3475 = vunpack.c.l.b16 %v3315
  %v3476 = vunpack.c.l.b16 %v3316
  %v3477 = vunpack.c.l.b16 %v3317
  %v3478 = vunpack.c.l.b16 %v3318
  %v3479 = vunpack.c.l.b16 %v3319
  %v3480 = vunpack.c.l.b16 %v3320
  %v3481 = vunpack.c.h.b16 %v3313
  %v3482 = vunpack.c.h.b16 %v3314
  %v3483 = vunpack.c.h.b16 %v3315
  %v3484 = vunpack.c.h.b16 %v3316
  %v3485 = vunpack.c.h.b16 %v3317
  %v3486 = vunpack.c.h.b16 %v3318
  %v3487 = vunpack.c.h.b16 %v3319
  %v3488 = vunpack.c.h.b16 %v3320
  %v3489 = vunpack.c.l.b16 %v3321
  %v3490 = vunpack.c.l.b16 %v3322
  %v3491 = vunpack.c.l.b16 %v3323
  %v3492 = vunpack.c.l.b16 %v3324
  %v3493 = vunpack.c.l.b16 %v3325
  %v3494 = vunpack.c.l.b16 %v3326
  %v3495 = vunpack.c.l.b16 %v3327
  %v3496 = vunpack.c.l.b16 %v3328
  %v3497 = vunpack.c.h.b16 %v3321
  %v3498 = vunpack.c.h.b16 %v3322
  %v3499 = vunpack.c.h.b16 %v3323
  %v3500 = vunpack.c.h.b16 %v3324
  %v3501 = vunpack.c.h.b16 %v3325
  %v3502 = vunpack.c.h.b16 %v3326
  %v3503 = vunpack.c.h.b16 %v3327
  %v3504 = vunpack.c.h.b16 %v3328
  %v3505 = vunpack.c.l.b16 %v3329
  %v3506 = vunpack.c.l.b16 %v3330
  %v3507 = vunpack.c.l.b16 %v3331
  %v3508 = vunpack.c.l.b16 %v3332
  %v3509 = vunpack.c.l.b16 %v3333
  %v3510 = vunpack.c.l.b16 %v3334
  %v3511 = vunpack.c.l.b16 %v3335
  %v3512 = vunpack.c.l.b16 %v3336
  %v3513 = vunpack.c.h.b16 %v3329
  %v3514 = vunpack.c.h.b16 %v3330
  %v3515 = vunpack.c.h.b16 %v3331
  %v3516 = vunpack.c.h.b16 %v3332
  %v3517 = vunpack.c.h.b16 %v3333
  %v3518 = vunpack.c.h.b16 %v3334
  %v3519 = vunpack.c.h.b16 %v3335
  %v3520 = vunpack.c.h.b16 %v3336
  %v3521 = vunpack.c.l.b16 %v3337
  %v3522 = vunpack.c.l.b16 %v3338
  %v3523 = vunpack.c.l.b16 %v3339
  %v3524 = vunpack.c.l.b16 %v3340
  %v3525 = vunpack.c.l.b16 %v3341
  %v3526 = vunpack.c.l.b16 %v3342
  %v3527 = vunpack.c.l.b16 %v3343
  %v3528 = vunpack.c.l.b16 %v3344
  %v3529 = vunpack.c.h.b16 %v3337
  %v3530 = vunpack.c.h.b16 %v3338
  %v3531 = vunpack.c.h.b16 %v3339
  %v3532 = vunpack.c.h.b16 %v3340
  %v3533 = vunpack.c.h.b16 %v3341
  %v3534 = vunpack.c.h.b16 %v3342
  %v3535 = vunpack.c.h.b16 %v3343
  %v3536 = vunpack.c.h.b16 %v3344
  %v3537 = vpack.c.b16 %v3410, %v3409
  %v3538 = vpack.c.b16 %v3412, %v3411
  %v3539 = vpack.c.b16 %v3414, %v3413
  %v3540 = vpack.c.b16 %v3416, %v3415
  %v3541 = vpack.c.b16 %v3418, %v3417
  %v3542 = vpack.c.b16 %v3420, %v3419
  %v3543 = vpack.c.b16 %v3422, %v3421
  %v3544 = vpack.c.b16 %v3424, %v3423
  %v3545 = vpack.c.b16 %v3426, %v3425
  %v3546 = vpack.c.b16 %v3428, %v3427
  %v3547 = vpack.c.b16 %v3430, %v3429
  %v3548 = vpack.c.b16 %v3432, %v3431
  %v3549 = vpack.c.b16 %v3434, %v3433
  %v3550 = vpack.c.b16 %v3436, %v3435
  %v3551 = vpack.c.b16 %v3438, %v3437
  %v3552 = vpack.c.b16 %v3440, %v3439
  %v3553 = vpack.c.b16 %v3442, %v3441
  %v3554 = vpack.c.b16 %v3444, %v3443
  %v3555 = vpack.c.b16 %v3446, %v3445
  %v3556 = vpack.c.b16 %v3448, %v3447
  %v3557 = vpack.c.b16 %v3450, %v3449
  %v3558 = vpack.c.b16 %v3452, %v3451
  %v3559 = vpack.c.b16 %v3454, %v3453
  %v3560 = vpack.c.b16 %v3456, %v3455
  %v3561 = vpack.c.b16 %v3458, %v3457
  %v3562 = vpack.c.b16 %v3460, %v3459
  %v3563 = vpack.c.b16 %v3462, %v3461
  %v3564 = vpack.c.b16 %v3464, %v3463
  %v3565 = vpack.c.b16 %v3466, %v3465
  %v3566 = vpack.c.b16 %v3468, %v3467
  %v3567 = vpack.c.b16 %v3470, %v3469
  %v3568 = vpack.c.b16 %v3472, %v3471
  %v3569 = vpack.c.b16 %v3474, %v3473
  %v3570 = vpack.c.b16 %v3476, %v3475
  %v3571 = vpack.c.b16 %v3478, %v3477
  %v3572 = vpack.c.b16 %v3480, %v3479
  %v3573 = vpack.c.b16 %v3482, %v3481
  %v3574 = vpack.c.b16 %v3484, %v3483
  %v3575 = vpack.c.b16 %v3486, %v3485
  %v3576 = vpack.c.b16 %v3488, %v3487
  %v3577 = vpack.c.b16 %v3490, %v3489
  %v3578 = vpack.c.b16 %v3492, %v3491
  %v3579 = vpack.c.b16 %v3494, %v3493
  %v3580 = vpack.c.b16 %v3496, %v3495
  %v3581 = vpack.c.b16 %v3498, %v3497
  %v3582 = vpack.c.b16 %v3500, %v3499
  %v3583 = vpack.c.b16 %v3502, %v3501
  %v3584 = vpack.c.b16 %v3504, %v3503
  %v3585 = vpack.c.b16 %v3506, %v3505
  %v3586 = vpack.c.b16 %v3508, %v3507
  %v3587 = vpack.c.b16 %v3510, %v3509
  %v3588 = vpack.c.b16 %v3512, %v3511
  %v3589 = vpack.c.b16 %v3514, %v3513
  %v3590 = vpack.c.b16 %v3516, %v3515
  %v3591 = vpack.c.b16 %v3518, %v3517
  %v3592 = vpack.c.b16 %v3520, %v3519
  %v3593 = vpack.c.b16 %v3522, %v3521
  %v3594 = vpack.c.b16 %v3524, %v3523
  %v3595 = vpack.c.b16 %v3526, %v3525
  %v3596 = vpack.c.b16 %v3528, %v3527
  %v3597 = vpack.c.b16 %v3530, %v3529
  %v3598 = vpack.c.b16 %v3532, %v3531
  %v3599 = vpack.c.b16 %v3534, %v3533
  %v3600 = vpack.c.b16 %v3536, %v3535
  %3665 = vst [vmem:[%s4] sm:$0xff] %v3537
  %3666 = vst [vmem:[%s4 + $0x8] sm:$0xff] %v3538
  %3667 = vst [vmem:[%s4 + $0x10] sm:$0xff] %v3539
  %3668 = vst [vmem:[%s4 + $0x18] sm:$0xff] %v3540
  %3669 = vst [vmem:[%s4 + $0x20] sm:$0xff] %v3541
  %3670 = vst [vmem:[%s4 + $0x28] sm:$0xff] %v3542
  %3671 = vst [vmem:[%s4 + $0x30] sm:$0xff] %v3543
  %3672 = vst [vmem:[%s4 + $0x38] sm:$0xff] %v3544
  %3673 = vst [vmem:[%s4 + $0x40] sm:$0xff] %v3545
  %3674 = vst [vmem:[%s4 + $0x48] sm:$0xff] %v3546
  %3675 = vst [vmem:[%s4 + $0x50] sm:$0xff] %v3547
  %3676 = vst [vmem:[%s4 + $0x58] sm:$0xff] %v3548
  %3677 = vst [vmem:[%s4 + $0x60] sm:$0xff] %v3549
  %3678 = vst [vmem:[%s4 + $0x68] sm:$0xff] %v3550
  %3679 = vst [vmem:[%s4 + $0x70] sm:$0xff] %v3551
  %3680 = vst [vmem:[%s4 + $0x78] sm:$0xff] %v3552
  %3681 = vst [vmem:[%s4 + $0x80] sm:$0xff] %v3553
  %3682 = vst [vmem:[%s4 + $0x88] sm:$0xff] %v3554
  %3683 = vst [vmem:[%s4 + $0x90] sm:$0xff] %v3555
  %3684 = vst [vmem:[%s4 + $0x98] sm:$0xff] %v3556
  %3685 = vst [vmem:[%s4 + $0xa0] sm:$0xff] %v3557
  %3686 = vst [vmem:[%s4 + $0xa8] sm:$0xff] %v3558
  %3687 = vst [vmem:[%s4 + $0xb0] sm:$0xff] %v3559
  %3688 = vst [vmem:[%s4 + $0xb8] sm:$0xff] %v3560
  %3689 = vst [vmem:[%s4 + $0xc0] sm:$0xff] %v3561
  %3690 = vst [vmem:[%s4 + $0xc8] sm:$0xff] %v3562
  %3691 = vst [vmem:[%s4 + $0xd0] sm:$0xff] %v3563
  %3692 = vst [vmem:[%s4 + $0xd8] sm:$0xff] %v3564
  %3693 = vst [vmem:[%s4 + $0xe0] sm:$0xff] %v3565
  %3694 = vst [vmem:[%s4 + $0xe8] sm:$0xff] %v3566
  %3695 = vst [vmem:[%s4 + $0xf0] sm:$0xff] %v3567
  %3696 = vst [vmem:[%s4 + $0xf8] sm:$0xff] %v3568
  %3697 = vst [vmem:[%s4 + $0x100] sm:$0xff] %v3569
  %3698 = vst [vmem:[%s4 + $0x108] sm:$0xff] %v3570
  %3699 = vst [vmem:[%s4 + $0x110] sm:$0xff] %v3571
  %3700 = vst [vmem:[%s4 + $0x118] sm:$0xff] %v3572
  %3701 = vst [vmem:[%s4 + $0x120] sm:$0xff] %v3573
  %3702 = vst [vmem:[%s4 + $0x128] sm:$0xff] %v3574
  %3703 = vst [vmem:[%s4 + $0x130] sm:$0xff] %v3575
  %3704 = vst [vmem:[%s4 + $0x138] sm:$0xff] %v3576
  %3705 = vst [vmem:[%s4 + $0x140] sm:$0xff] %v3577
  %3706 = vst [vmem:[%s4 + $0x148] sm:$0xff] %v3578
  %3707 = vst [vmem:[%s4 + $0x150] sm:$0xff] %v3579
  %3708 = vst [vmem:[%s4 + $0x158] sm:$0xff] %v3580
  %3709 = vst [vmem:[%s4 + $0x160] sm:$0xff] %v3581
  %3710 = vst [vmem:[%s4 + $0x168] sm:$0xff] %v3582
  %3711 = vst [vmem:[%s4 + $0x170] sm:$0xff] %v3583
  %3712 = vst [vmem:[%s4 + $0x178] sm:$0xff] %v3584
  %3713 = vst [vmem:[%s4 + $0x180] sm:$0xff] %v3585
  %3714 = vst [vmem:[%s4 + $0x188] sm:$0xff] %v3586
  %3715 = vst [vmem:[%s4 + $0x190] sm:$0xff] %v3587
  %3716 = vst [vmem:[%s4 + $0x198] sm:$0xff] %v3588
  %3717 = vst [vmem:[%s4 + $0x1a0] sm:$0xff] %v3589
  %3718 = vst [vmem:[%s4 + $0x1a8] sm:$0xff] %v3590
  %3719 = vst [vmem:[%s4 + $0x1b0] sm:$0xff] %v3591
  %3720 = vst [vmem:[%s4 + $0x1b8] sm:$0xff] %v3592
  %3721 = vst [vmem:[%s4 + $0x1c0] sm:$0xff] %v3593
  %3722 = vst [vmem:[%s4 + $0x1c8] sm:$0xff] %v3594
  %3723 = vst [vmem:[%s4 + $0x1d0] sm:$0xff] %v3595
  %3724 = vst [vmem:[%s4 + $0x1d8] sm:$0xff] %v3596
  %3725 = vst [vmem:[%s4 + $0x1e0] sm:$0xff] %v3597
  %3726 = vst [vmem:[%s4 + $0x1e8] sm:$0xff] %v3598
  %3727 = vst [vmem:[%s4 + $0x1f0] sm:$0xff] %v3599
  %3728 = vst [vmem:[%s4 + $0x1f8] sm:$0xff] %v3600
  // Predicated region
  $region18: #{forward.2} parent=0 // pred_check
    _
  $region19: #{forward.2} parent=0 // pred_check_branch
    %3730 = sbr.rel (0) target = $region21
  $region20: #{forward.2} parent=0 // pred_region
    _
  $region21: #{forward.2} parent=0 // pred_fallthru
    _
  // Predicated region
  $region22: #{forward.2} parent=0 // pred_check
    _
  $region23: #{forward.2} parent=0 // pred_check_branch
    %3732 = sbr.rel (0) target = $region25
  $region24: #{forward.2} parent=0 // pred_region
    _
  $region25: #{forward.2} parent=0 // pred_fallthru
    _

</llo_original>
